<compile_context>
chip_gen: v7x
topology: tpu7x:2x2x1
jax: 0.10.0
libtpu: 0.0.40
codegen_flags: <defaults>
</compile_context>

<pallas_src>
import math

import jax
import jax.numpy as jnp
import numpy as np
from jax.experimental import pallas as pl
from jax.experimental.pallas import tpu as pltpu


def _pick_tile(dim, targets):
    """Largest target tile dividing `dim`, else the full dim.

    Fails loudly for large non-divisible dims instead of silently taking a
    huge full-extent block that would blow VMEM."""
    for t in targets:
        if dim >= t and dim % t == 0:
            return t
    if dim > 2 * max(targets):
        raise ValueError(f"dim {dim} is not divisible by any of {targets}; "
                         "pad the input instead of using a full-extent block")
    return dim


# ----------------------------------------------------------------------------
# QKV projection: (B, S, H) @ (H, H) + b  ->  (B, heads, S, D) bf16.
# One wide matmul per tile (N = full H); heads are split only in the epilogue.
# ----------------------------------------------------------------------------
def _qkv_proj_kernel(x_ref, w_ref, b_ref, o_ref, acc_ref):
    kk = pl.program_id(2)

    @pl.when(kk == 0)
    def _():
        acc_ref[...] = jnp.zeros_like(acc_ref)

    acc_ref[...] += jnp.dot(x_ref[0].astype(jnp.bfloat16),
                            w_ref[...].astype(jnp.bfloat16),
                            preferred_element_type=jnp.float32)

    @pl.when(kk == pl.num_programs(2) - 1)
    def _():
        y = acc_ref[...] + b_ref[...]                      # (ts, H) f32
        heads = o_ref.shape[1]
        d = o_ref.shape[3]
        for h in range(heads):                             # epilogue-only split
            o_ref[0, h] = y[:, h * d:(h + 1) * d].astype(o_ref.dtype)


def project_to_heads(x, w, b, heads):
    bsz, seq, h_in = x.shape
    h_out = w.shape[1]
    d = h_out // heads
    ts = _pick_tile(seq, (256, 128, 64, 32, 16, 8))
    tkk = _pick_tile(h_in, (512, 256, 128))

    grid = (bsz, seq // ts, h_in // tkk)
    return pl.pallas_call(
        _qkv_proj_kernel,
        out_shape=jax.ShapeDtypeStruct((bsz, heads, seq, d), jnp.bfloat16),
        grid=grid,
        in_specs=[
            pl.BlockSpec((1, ts, tkk), lambda bi, si, ki: (bi, si, ki)),
            pl.BlockSpec((tkk, h_out), lambda bi, si, ki: (ki, 0)),
            pl.BlockSpec((1, h_out), lambda bi, si, ki: (0, 0)),
        ],
        out_specs=pl.BlockSpec((1, heads, ts, d),
                               lambda bi, si, ki: (bi, 0, si, 0)),
        scratch_shapes=[pltpu.VMEM((ts, h_out), jnp.float32)],
        compiler_params=pltpu.CompilerParams(
            dimension_semantics=("parallel", "parallel", "arbitrary")),
    )(x, w, b)


# ----------------------------------------------------------------------------
# Final linear: (B, S, H) @ (H, H) + b -> (B, S, H) f32  (plain wide matmul).
# ----------------------------------------------------------------------------
def _final_proj_kernel(x_ref, w_ref, b_ref, o_ref, acc_ref):
    kk = pl.program_id(2)

    @pl.when(kk == 0)
    def _():
        acc_ref[...] = jnp.zeros_like(acc_ref)

    acc_ref[...] += jnp.dot(x_ref[0].astype(jnp.bfloat16),
                            w_ref[...].astype(jnp.bfloat16),
                            preferred_element_type=jnp.float32)

    @pl.when(kk == pl.num_programs(2) - 1)
    def _():
        o_ref[0] = (acc_ref[...] + b_ref[...]).astype(o_ref.dtype)


def final_projection(x, w, b):
    bsz, seq, h_in = x.shape
    h_out = w.shape[1]
    ts = _pick_tile(seq, (256, 128, 64, 32, 16, 8))
    tkk = _pick_tile(h_in, (512, 256, 128))

    grid = (bsz, seq // ts, h_in // tkk)
    return pl.pallas_call(
        _final_proj_kernel,
        out_shape=jax.ShapeDtypeStruct((bsz, seq, h_out), jnp.float32),
        grid=grid,
        in_specs=[
            pl.BlockSpec((1, ts, tkk), lambda bi, si, ki: (bi, si, ki)),
            pl.BlockSpec((tkk, h_out), lambda bi, si, ki: (ki, 0)),
            pl.BlockSpec((1, h_out), lambda bi, si, ki: (0, 0)),
        ],
        out_specs=pl.BlockSpec((1, ts, h_out), lambda bi, si, ki: (bi, si, 0)),
        scratch_shapes=[pltpu.VMEM((ts, h_out), jnp.float32)],
        compiler_params=pltpu.CompilerParams(
            dimension_semantics=("parallel", "parallel", "arbitrary")),
    )(x, w, b)


# ----------------------------------------------------------------------------
# Relation-aware flash attention, blocked over query AND key axes.
#   scores[h,q,k] = (Q[h,q]·K[h,k] + (Q[h,q]*Kp[h])·R[q,k]) / sqrt(D)
#   out[q, h*D:] = softmax_k(scores) @ (V[h] , R[q]*Vp[h])
# R is pre-transposed to (B, S_q, S_k, D) bf16 so both relational terms are
# q-batched MXU matmuls; all heads are processed together (no head loop).
# ----------------------------------------------------------------------------
def _rat_attn_kernel(q_ref, k_ref, v_ref, r_ref, kp_ref, vp_ref, o_ref,
                     m_scr, l_scr, acc_scr, qkp_scr):
    ki = pl.program_id(2)
    heads = q_ref.shape[1]
    d = q_ref.shape[3]
    scale = 1.0 / math.sqrt(float(d))

    @pl.when(ki == 0)
    def _():
        m_scr[...] = jnp.full_like(m_scr, -jnp.inf)
        l_scr[...] = jnp.zeros_like(l_scr)
        acc_scr[...] = jnp.zeros_like(acc_scr)
        # qkp[q,h,d] = Q[h,q,d] * Kp[h,d]  -- computed once per query block.
        q_f32 = q_ref[0].astype(jnp.float32)                    # (heads,tq,D)
        qkp = q_f32 * kp_ref[...][:, None, :]                   # (heads,tq,D)
        qkp_scr[...] = jnp.transpose(qkp, (1, 0, 2)).astype(jnp.bfloat16)

    q_b = q_ref[0]       # (heads, tq, D) bf16
    k_b = k_ref[0]       # (heads, tk, D) bf16
    v_b = v_ref[0]       # (heads, tk, D) bf16
    r_b = r_ref[0]       # (tq, tk, D)    bf16, q-major: r[q,k,d]=rel[k,q,d]

    # --- scores: both terms on the MXU with f32 accumulation ---------------
    s_std = jnp.einsum('hqd,hkd->hqk', q_b, k_b,
                       preferred_element_type=jnp.float32)      # (heads,tq,tk)
    s_rel = jnp.einsum('qhd,qkd->qhk', qkp_scr[...], r_b,
                       preferred_element_type=jnp.float32)      # (tq,heads,tk)
    s = (s_std + jnp.transpose(s_rel, (1, 0, 2))) * scale       # (heads,tq,tk)

    # --- online softmax over the key axis, vectorized over heads -----------
    m_prev = m_scr[...]                                         # (heads,tq,1)
    m_new = jnp.maximum(m_prev, jnp.max(s, axis=-1, keepdims=True))
    alpha = jnp.exp(m_prev - m_new)
    p = jnp.exp(s - m_new)                                      # f32
    p_b = p.astype(jnp.bfloat16)

    # --- value terms, both on the MXU ---------------------------------------
    pv = jnp.einsum('hqk,hkd->hqd', p_b, v_b,
                    preferred_element_type=jnp.float32)         # (heads,tq,D)
    t_rel = jnp.einsum('qhk,qkd->qhd', jnp.transpose(p_b, (1, 0, 2)), r_b,
                       preferred_element_type=jnp.float32)      # (tq,heads,D)
    rv = jnp.transpose(t_rel, (1, 0, 2)) * vp_ref[...][:, None, :]

    m_scr[...] = m_new
    l_scr[...] = alpha * l_scr[...] + jnp.sum(p, axis=-1, keepdims=True)
    acc_scr[...] = alpha * acc_scr[...] + pv + rv

    @pl.when(ki == pl.num_programs(2) - 1)
    def _():
        inv_l = pl.reciprocal(l_scr[...], approx=True)          # (heads,tq,1)
        out = acc_scr[...] * inv_l                              # (heads,tq,D)
        # merge heads along the lane axis -> (tq, heads*D): lane-dense store.
        o_ref[0] = jnp.concatenate(
            [out[h] for h in range(heads)], axis=-1).astype(o_ref.dtype)


def rat_attention(q, k, v, r_t, kp, vp):
    """q,k,v: (B, heads, S, D) bf16; r_t: (B, S_q, S_k, D) bf16;
    kp, vp: (heads, D) f32.  Returns (B, S, heads*D) bf16."""
    bsz, heads, seq, d = q.shape
    hidden = heads * d
    tq = _pick_tile(seq, (128, 64, 32, 16, 8))
    tk = _pick_tile(seq, (128, 64, 32, 16, 8))
    grid = (bsz, seq // tq, seq // tk)

    return pl.pallas_call(
        _rat_attn_kernel,
        out_shape=jax.ShapeDtypeStruct((bsz, seq, hidden), jnp.bfloat16),
        grid=grid,
        in_specs=[
            pl.BlockSpec((1, heads, tq, d), lambda bi, qi, ki: (bi, 0, qi, 0)),
            pl.BlockSpec((1, heads, tk, d), lambda bi, qi, ki: (bi, 0, ki, 0)),
            pl.BlockSpec((1, heads, tk, d), lambda bi, qi, ki: (bi, 0, ki, 0)),
            pl.BlockSpec((1, tq, tk, d),    lambda bi, qi, ki: (bi, qi, ki, 0)),
            pl.BlockSpec((heads, d),        lambda bi, qi, ki: (0, 0)),
            pl.BlockSpec((heads, d),        lambda bi, qi, ki: (0, 0)),
        ],
        out_specs=pl.BlockSpec((1, tq, hidden), lambda bi, qi, ki: (bi, qi, 0)),
        scratch_shapes=[
            pltpu.VMEM((heads, tq, 1), jnp.float32),    # running max
            pltpu.VMEM((heads, tq, 1), jnp.float32),    # running denominator
            pltpu.VMEM((heads, tq, d), jnp.float32),    # running numerator
            pltpu.VMEM((tq, heads, d), jnp.bfloat16),   # Q*Kp (q-major), cached
        ],
        compiler_params=pltpu.CompilerParams(
            dimension_semantics=("parallel", "parallel", "arbitrary")),
    )(q, k, v, r_t, kp, vp)


# ----------------------------------------------------------------------------
# Module-equivalent wrapper
# ----------------------------------------------------------------------------
def init_params(rng, hidden_size, heads_num):
    per_head = hidden_size // heads_num
    keys = jax.random.split(rng, 10)
    bound = 1.0 / math.sqrt(hidden_size)

    def lin(kw, kb):
        # stored pre-laid-out: (H_in, H_out) for x @ W, bias as (1, H_out)
        w = jax.random.uniform(kw, (hidden_size, hidden_size), jnp.float32,
                               -bound, bound)
        b = jax.random.uniform(kb, (1, hidden_size), jnp.float32, -bound, bound)
        return w, b

    wq, bq = lin(keys[0], keys[1])
    wk, bk = lin(keys[2], keys[3])
    wv, bv = lin(keys[4], keys[5])
    wo, bo = lin(keys[6], keys[7])
    kp = jax.random.uniform(keys[8], (heads_num, per_head), jnp.float32)  # U(0,1)
    vp = jax.random.uniform(keys[9], (heads_num, per_head), jnp.float32)  # U(0,1)
    return dict(Wq=wq, bq=bq, Wk=wk, bk=bk, Wv=wv, bv=bv, Wo=wo, bo=bo,
                Kp=kp, Vp=vp)


def rat_mha_forward(params, key_in, value_in, query_in, rel, heads_num):
    q = project_to_heads(query_in, params["Wq"], params["bq"], heads_num)
    k = project_to_heads(key_in, params["Wk"], params["bk"], heads_num)
    v = project_to_heads(value_in, params["Wv"], params["bv"], heads_num)
    # Pre-transpose R once (rel[b,k,q,d] -> r_t[b,q,k,d]) and stream it bf16.
    r_t = jnp.swapaxes(rel, 1, 2).astype(jnp.bfloat16)
    attn = rat_attention(q, k, v, r_t, params["Kp"], params["Vp"])  # (B,S,H)
    return final_projection(attn, params["Wo"], params["bo"])


# ----------------------------------------------------------------------------
# Pure-JAX f32 reference (mirrors the PyTorch forward exactly) for validation.
# ----------------------------------------------------------------------------
def reference_forward(params, key_in, value_in, query_in, rel, heads_num):
    b, s, h = key_in.shape
    d = h // heads_num

    def proj(x, w, bias):
        y = x.reshape(b * s, h) @ w + bias
        return y.reshape(b, s, heads_num, d).transpose(0, 2, 1, 3)

    q = proj(query_in, params["Wq"], params["bq"])
    k = proj(key_in, params["Wk"], params["bk"])
    v = proj(value_in, params["Wv"], params["bv"])
    kp, vp = params["Kp"], params["Vp"]

    scores = (jnp.einsum('bhxd,bhyd->bhxy', q, k)
              + jnp.einsum('bhxd,byxd,hd->bhxy', q, rel, kp)) / math.sqrt(float(d))
    probs = jax.nn.softmax(scores, axis=-1)
    out = (jnp.einsum('bhxy,bhyd->bhxd', probs, v)
           + jnp.einsum('bhxy,byxd,hd->bhxd', probs, rel, vp))
    out = out.transpose(0, 2, 1, 3).reshape(b * s, h)
    out = out @ params["Wo"] + params["bo"]
    return out.reshape(b, s, h)


if __name__ == "__main__":
    B, S, HIDDEN, HEADS = 2, 8, 32, 4
    D = HIDDEN // HEADS  # relationship_number == per_head_size

    root = jax.random.PRNGKey(0)
    kp_rng, k_key, k_val, k_qry, k_rel = jax.random.split(root, 5)
    params = init_params(kp_rng, HIDDEN, HEADS)

    key_in = jax.random.normal(k_key, (B, S, HIDDEN), jnp.float32)
    value_in = jax.random.normal(k_val, (B, S, HIDDEN), jnp.float32)
    query_in = jax.random.normal(k_qry, (B, S, HIDDEN), jnp.float32)
    rel_mat = jax.random.normal(k_rel, (B, S, S, D), jnp.float32)

    fwd = jax.jit(rat_mha_forward, static_argnames=("heads_num",))
    out = jax.block_until_ready(
        fwd(params, key_in, value_in, query_in, rel_mat, heads_num=HEADS))

    ref = reference_forward(params, key_in, value_in, query_in, rel_mat, HEADS)
    assert out.shape == (B, S, HIDDEN)
    # bf16 MXU operands / bf16 intermediates (f32 accumulation) -> bf16 tol.
    np.testing.assert_allclose(np.asarray(out), np.asarray(ref),
                               rtol=2e-2, atol=2e-2)
    print("KERNEL_OK")
</pallas_src>

<mosaic_0001>
module attributes {stable_mosaic.version = 11 : i64} {
  func.func @_qkv_proj_kernel(%arg0: i32, %arg1: i32, %arg2: i32, %arg3: memref<1x8x32xf32, #tpu.memory_space<vmem>>, %arg4: memref<32x32xf32, #tpu.memory_space<vmem>>, %arg5: memref<1x32xf32, #tpu.memory_space<vmem>>, %arg6: memref<1x4x8x8xbf16, #tpu.memory_space<vmem>>, %arg7: memref<8x32xf32, #tpu.memory_space<vmem>>) attributes {dimension_semantics = [#tpu.dimension_semantics<parallel>, #tpu.dimension_semantics<parallel>, #tpu.dimension_semantics<arbitrary>], iteration_bounds = array<i64: 2, 1, 1>, scalar_prefetch = 0 : i64, scratch_operands = 1 : i64, tpu.core_type = #tpu.core_type<tc>, window_params = [{transform_indices = @transform_0, window_bounds = array<i64: 1, 8, 32>}, {transform_indices = @transform_1, window_bounds = array<i64: 32, 32>}, {pipeline_mode = #tpu.pipeline_mode<synchronous>, transform_indices = @transform_2, window_bounds = array<i64: 1, 32>}, {transform_indices = @transform_3, window_bounds = array<i64: 1, 4, 8, 8>}]} {
    %c0_i32 = arith.constant 0 : i32
    %0 = arith.cmpi eq, %arg2, %c0_i32 : i32
    %1 = arith.extui %0 : i1 to i32
    %c0_i32_0 = arith.constant 0 : i32
    %2 = arith.cmpi ne, %1, %c0_i32_0 : i32
    scf.if %2 {
      %cst_11 = arith.constant 0.000000e+00 : f32
      %15 = vector.broadcast %cst_11 : f32 to vector<8x32xf32>
      %c0_12 = arith.constant 0 : index
      %c0_13 = arith.constant 0 : index
      %16 = vector.load %arg7[%c0_12, %c0_13] : memref<8x32xf32, #tpu.memory_space<vmem>>, vector<8x32xf32>
      tpu.vector_store %arg7[%c0_12, %c0_13], %15 {strides = array<i32>} : memref<8x32xf32, #tpu.memory_space<vmem>>, vector<8x32xf32>,
    } else {
    }
    %c0 = arith.constant 0 : index
    %c0_1 = arith.constant 0 : index
    %3 = vector.load %arg7[%c0, %c0_1] : memref<8x32xf32, #tpu.memory_space<vmem>>, vector<8x32xf32>
    %c0_2 = arith.constant 0 : index
    %c0_3 = arith.constant 0 : index
    %c0_4 = arith.constant 0 : index
    %4 = vector.load %arg3[%c0_2, %c0_3, %c0_4] : memref<1x8x32xf32, #tpu.memory_space<vmem>>, vector<1x8x32xf32>
    %5 = vector.shape_cast %4 : vector<1x8x32xf32> to vector<8x32xf32>
    %6 = arith.truncf %5 : vector<8x32xf32> to vector<8x32xbf16>
    %c0_5 = arith.constant 0 : index
    %c0_6 = arith.constant 0 : index
    %7 = vector.load %arg4[%c0_5, %c0_6] : memref<32x32xf32, #tpu.memory_space<vmem>>, vector<32x32xf32>
    %8 = arith.truncf %7 : vector<32x32xf32> to vector<32x32xbf16>
    %cst = arith.constant dense<0.000000e+00> : vector<8x32xf32>
    %9 = tpu.matmul %6, %8, %cst {dimension_numbers = #tpu.dot_dimension_numbers<[1], [0], [0], [1], [0, 0, 1, 1], [], []>} : vector<8x32xbf16>, vector<32x32xbf16>, vector<8x32xf32> -> vector<8x32xf32>
    %10 = arith.addf %3, %9 : vector<8x32xf32>
    %c0_7 = arith.constant 0 : index
    %c0_8 = arith.constant 0 : index
    %11 = vector.load %arg7[%c0_7, %c0_8] : memref<8x32xf32, #tpu.memory_space<vmem>>, vector<8x32xf32>
    tpu.vector_store %arg7[%c0_7, %c0_8], %10 {strides = array<i32>} : memref<8x32xf32, #tpu.memory_space<vmem>>, vector<8x32xf32>,
    %c0_i32_9 = arith.constant 0 : i32
    %12 = arith.cmpi eq, %arg2, %c0_i32_9 : i32
    %13 = arith.extui %12 : i1 to i32
    %c0_i32_10 = arith.constant 0 : i32
    %14 = arith.cmpi ne, %13, %c0_i32_10 : i32
    scf.if %14 {
      %c0_11 = arith.constant 0 : index
      %c0_12 = arith.constant 0 : index
      %15 = vector.load %arg7[%c0_11, %c0_12] : memref<8x32xf32, #tpu.memory_space<vmem>>, vector<8x32xf32>
      %c0_13 = arith.constant 0 : index
      %c0_14 = arith.constant 0 : index
      %16 = vector.load %arg5[%c0_13, %c0_14] : memref<1x32xf32, #tpu.memory_space<vmem>>, vector<1x32xf32>
      %17 = vector.broadcast %16 : vector<1x32xf32> to vector<8x32xf32>
      %18 = arith.addf %15, %17 : vector<8x32xf32>
      %19 = vector.extract_strided_slice %18 {offsets = [0, 0], sizes = [8, 8], strides = [1, 1]} : vector<8x32xf32> to vector<8x8xf32>
      %20 = arith.truncf %19 : vector<8x8xf32> to vector<8x8xbf16>
      %c0_15 = arith.constant 0 : index
      %c0_16 = arith.constant 0 : index
      %c0_17 = arith.constant 0 : index
      %c0_18 = arith.constant 0 : index
      %21 = vector.load %arg6[%c0_15, %c0_16, %c0_17, %c0_18] : memref<1x4x8x8xbf16, #tpu.memory_space<vmem>>, vector<1x1x8x8xbf16>
      %22 = vector.shape_cast %21 : vector<1x1x8x8xbf16> to vector<8x8xbf16>
      %23 = vector.shape_cast %20 : vector<8x8xbf16> to vector<1x1x8x8xbf16>
      tpu.vector_store %arg6[%c0_15, %c0_16, %c0_17, %c0_18], %23 {strides = array<i32>} : memref<1x4x8x8xbf16, #tpu.memory_space<vmem>>, vector<1x1x8x8xbf16>,
      %24 = vector.extract_strided_slice %18 {offsets = [0, 8], sizes = [8, 8], strides = [1, 1]} : vector<8x32xf32> to vector<8x8xf32>
      %25 = arith.truncf %24 : vector<8x8xf32> to vector<8x8xbf16>
      %c0_19 = arith.constant 0 : index
      %c1 = arith.constant 1 : index
      %c0_20 = arith.constant 0 : index
      %c0_21 = arith.constant 0 : index
      %26 = vector.load %arg6[%c0_19, %c1, %c0_20, %c0_21] : memref<1x4x8x8xbf16, #tpu.memory_space<vmem>>, vector<1x1x8x8xbf16>
      %27 = vector.shape_cast %26 : vector<1x1x8x8xbf16> to vector<8x8xbf16>
      %28 = vector.shape_cast %25 : vector<8x8xbf16> to vector<1x1x8x8xbf16>
      tpu.vector_store %arg6[%c0_19, %c1, %c0_20, %c0_21], %28 {strides = array<i32>} : memref<1x4x8x8xbf16, #tpu.memory_space<vmem>>, vector<1x1x8x8xbf16>,
      %29 = vector.extract_strided_slice %18 {offsets = [0, 16], sizes = [8, 8], strides = [1, 1]} : vector<8x32xf32> to vector<8x8xf32>
      %30 = arith.truncf %29 : vector<8x8xf32> to vector<8x8xbf16>
      %c0_22 = arith.constant 0 : index
      %c2 = arith.constant 2 : index
      %c0_23 = arith.constant 0 : index
      %c0_24 = arith.constant 0 : index
      %31 = vector.load %arg6[%c0_22, %c2, %c0_23, %c0_24] : memref<1x4x8x8xbf16, #tpu.memory_space<vmem>>, vector<1x1x8x8xbf16>
      %32 = vector.shape_cast %31 : vector<1x1x8x8xbf16> to vector<8x8xbf16>
      %33 = vector.shape_cast %30 : vector<8x8xbf16> to vector<1x1x8x8xbf16>
      tpu.vector_store %arg6[%c0_22, %c2, %c0_23, %c0_24], %33 {strides = array<i32>} : memref<1x4x8x8xbf16, #tpu.memory_space<vmem>>, vector<1x1x8x8xbf16>,
      %34 = vector.extract_strided_slice %18 {offsets = [0, 24], sizes = [8, 8], strides = [1, 1]} : vector<8x32xf32> to vector<8x8xf32>
      %35 = arith.truncf %34 : vector<8x8xf32> to vector<8x8xbf16>
      %c0_25 = arith.constant 0 : index
      %c3 = arith.constant 3 : index
      %c0_26 = arith.constant 0 : index
      %c0_27 = arith.constant 0 : index
      %36 = vector.load %arg6[%c0_25, %c3, %c0_26, %c0_27] : memref<1x4x8x8xbf16, #tpu.memory_space<vmem>>, vector<1x1x8x8xbf16>
      %37 = vector.shape_cast %36 : vector<1x1x8x8xbf16> to vector<8x8xbf16>
      %38 = vector.shape_cast %35 : vector<8x8xbf16> to vector<1x1x8x8xbf16>
      tpu.vector_store %arg6[%c0_25, %c3, %c0_26, %c0_27], %38 {strides = array<i32>} : memref<1x4x8x8xbf16, #tpu.memory_space<vmem>>, vector<1x1x8x8xbf16>,
    } else {
    }
    return
  }
  func.func @transform_0(%arg0: i32, %arg1: i32, %arg2: i32) -> (i32, i32, i32) {
    %c0_i32 = arith.constant 0 : i32
    return %arg0, %arg1, %arg2 : i32, i32, i32
  }
  func.func @transform_1(%arg0: i32, %arg1: i32, %arg2: i32) -> (i32, i32) {
    %c0_i32 = arith.constant 0 : i32
    %c0_i32_0 = arith.constant 0 : i32
    return %arg2, %c0_i32 : i32, i32
  }
  func.func @transform_2(%arg0: i32, %arg1: i32, %arg2: i32) -> (i32, i32) {
    %c0_i32 = arith.constant 0 : i32
    %c0_i32_0 = arith.constant 0 : i32
    %c0_i32_1 = arith.constant 0 : i32
    return %c0_i32, %c0_i32_0 : i32, i32
  }
  func.func @transform_3(%arg0: i32, %arg1: i32, %arg2: i32) -> (i32, i32, i32, i32) {
    %c0_i32 = arith.constant 0 : i32
    %c0_i32_0 = arith.constant 0 : i32
    %c0_i32_1 = arith.constant 0 : i32
    return %arg0, %c0_i32, %arg1, %c0_i32_0 : i32, i32, i32, i32
  }
}

module attributes {stable_mosaic.version = 11 : i64} {
  func.func @_qkv_proj_kernel(%arg0: i32, %arg1: i32, %arg2: i32, %arg3: memref<1x8x32xf32, #tpu.memory_space<vmem>>, %arg4: memref<32x32xf32, #tpu.memory_space<vmem>>, %arg5: memref<1x32xf32, #tpu.memory_space<vmem>>, %arg6: memref<1x4x8x8xbf16, #tpu.memory_space<vmem>>, %arg7: memref<8x32xf32, #tpu.memory_space<vmem>>) attributes {dimension_semantics = [#tpu.dimension_semantics<parallel>, #tpu.dimension_semantics<parallel>, #tpu.dimension_semantics<arbitrary>], iteration_bounds = array<i64: 2, 1, 1>, scalar_prefetch = 0 : i64, scratch_operands = 1 : i64, tpu.core_type = #tpu.core_type<tc>, window_params = [{transform_indices = @transform_0, window_bounds = array<i64: 1, 8, 32>}, {transform_indices = @transform_1, window_bounds = array<i64: 32, 32>}, {pipeline_mode = #tpu.pipeline_mode<synchronous>, transform_indices = @transform_2, window_bounds = array<i64: 1, 32>}, {transform_indices = @transform_3, window_bounds = array<i64: 1, 4, 8, 8>}]} {
    %c0_i32 = arith.constant 0 : i32
    %0 = arith.cmpi eq, %arg2, %c0_i32 : i32
    %1 = arith.extui %0 : i1 to i32
    %c0_i32_0 = arith.constant 0 : i32
    %2 = arith.cmpi ne, %1, %c0_i32_0 : i32
    scf.if %2 {
      %cst_11 = arith.constant 0.000000e+00 : f32
      %15 = vector.broadcast %cst_11 : f32 to vector<8x32xf32>
      %c0_12 = arith.constant 0 : index
      %c0_13 = arith.constant 0 : index
      %16 = vector.load %arg7[%c0_12, %c0_13] : memref<8x32xf32, #tpu.memory_space<vmem>>, vector<8x32xf32>
      tpu.vector_store %arg7[%c0_12, %c0_13], %15 {strides = array<i32>} : memref<8x32xf32, #tpu.memory_space<vmem>>, vector<8x32xf32>,
    } else {
    }
    %c0 = arith.constant 0 : index
    %c0_1 = arith.constant 0 : index
    %3 = vector.load %arg7[%c0, %c0_1] : memref<8x32xf32, #tpu.memory_space<vmem>>, vector<8x32xf32>
    %c0_2 = arith.constant 0 : index
    %c0_3 = arith.constant 0 : index
    %c0_4 = arith.constant 0 : index
    %4 = vector.load %arg3[%c0_2, %c0_3, %c0_4] : memref<1x8x32xf32, #tpu.memory_space<vmem>>, vector<1x8x32xf32>
    %5 = vector.shape_cast %4 : vector<1x8x32xf32> to vector<8x32xf32>
    %6 = arith.truncf %5 : vector<8x32xf32> to vector<8x32xbf16>
    %c0_5 = arith.constant 0 : index
    %c0_6 = arith.constant 0 : index
    %7 = vector.load %arg4[%c0_5, %c0_6] : memref<32x32xf32, #tpu.memory_space<vmem>>, vector<32x32xf32>
    %8 = arith.truncf %7 : vector<32x32xf32> to vector<32x32xbf16>
    %cst = arith.constant dense<0.000000e+00> : vector<8x32xf32>
    %9 = tpu.matmul %6, %8, %cst {dimension_numbers = #tpu.dot_dimension_numbers<[1], [0], [0], [1], [0, 0, 1, 1], [], []>} : vector<8x32xbf16>, vector<32x32xbf16>, vector<8x32xf32> -> vector<8x32xf32>
    %10 = arith.addf %3, %9 : vector<8x32xf32>
    %c0_7 = arith.constant 0 : index
    %c0_8 = arith.constant 0 : index
    %11 = vector.load %arg7[%c0_7, %c0_8] : memref<8x32xf32, #tpu.memory_space<vmem>>, vector<8x32xf32>
    tpu.vector_store %arg7[%c0_7, %c0_8], %10 {strides = array<i32>} : memref<8x32xf32, #tpu.memory_space<vmem>>, vector<8x32xf32>,
    %c0_i32_9 = arith.constant 0 : i32
    %12 = arith.cmpi eq, %arg2, %c0_i32_9 : i32
    %13 = arith.extui %12 : i1 to i32
    %c0_i32_10 = arith.constant 0 : i32
    %14 = arith.cmpi ne, %13, %c0_i32_10 : i32
    scf.if %14 {
      %c0_11 = arith.constant 0 : index
      %c0_12 = arith.constant 0 : index
      %15 = vector.load %arg7[%c0_11, %c0_12] : memref<8x32xf32, #tpu.memory_space<vmem>>, vector<8x32xf32>
      %c0_13 = arith.constant 0 : index
      %c0_14 = arith.constant 0 : index
      %16 = vector.load %arg5[%c0_13, %c0_14] : memref<1x32xf32, #tpu.memory_space<vmem>>, vector<1x32xf32>
      %17 = vector.broadcast %16 : vector<1x32xf32> to vector<8x32xf32>
      %18 = arith.addf %15, %17 : vector<8x32xf32>
      %19 = vector.extract_strided_slice %18 {offsets = [0, 0], sizes = [8, 8], strides = [1, 1]} : vector<8x32xf32> to vector<8x8xf32>
      %20 = arith.truncf %19 : vector<8x8xf32> to vector<8x8xbf16>
      %c0_15 = arith.constant 0 : index
      %c0_16 = arith.constant 0 : index
      %c0_17 = arith.constant 0 : index
      %c0_18 = arith.constant 0 : index
      %21 = vector.load %arg6[%c0_15, %c0_16, %c0_17, %c0_18] : memref<1x4x8x8xbf16, #tpu.memory_space<vmem>>, vector<1x1x8x8xbf16>
      %22 = vector.shape_cast %21 : vector<1x1x8x8xbf16> to vector<8x8xbf16>
      %23 = vector.shape_cast %20 : vector<8x8xbf16> to vector<1x1x8x8xbf16>
      tpu.vector_store %arg6[%c0_15, %c0_16, %c0_17, %c0_18], %23 {strides = array<i32>} : memref<1x4x8x8xbf16, #tpu.memory_space<vmem>>, vector<1x1x8x8xbf16>,
      %24 = vector.extract_strided_slice %18 {offsets = [0, 8], sizes = [8, 8], strides = [1, 1]} : vector<8x32xf32> to vector<8x8xf32>
      %25 = arith.truncf %24 : vector<8x8xf32> to vector<8x8xbf16>
      %c0_19 = arith.constant 0 : index
      %c1 = arith.constant 1 : index
      %c0_20 = arith.constant 0 : index
      %c0_21 = arith.constant 0 : index
      %26 = vector.load %arg6[%c0_19, %c1, %c0_20, %c0_21] : memref<1x4x8x8xbf16, #tpu.memory_space<vmem>>, vector<1x1x8x8xbf16>
      %27 = vector.shape_cast %26 : vector<1x1x8x8xbf16> to vector<8x8xbf16>
      %28 = vector.shape_cast %25 : vector<8x8xbf16> to vector<1x1x8x8xbf16>
      tpu.vector_store %arg6[%c0_19, %c1, %c0_20, %c0_21], %28 {strides = array<i32>} : memref<1x4x8x8xbf16, #tpu.memory_space<vmem>>, vector<1x1x8x8xbf16>,
      %29 = vector.extract_strided_slice %18 {offsets = [0, 16], sizes = [8, 8], strides = [1, 1]} : vector<8x32xf32> to vector<8x8xf32>
      %30 = arith.truncf %29 : vector<8x8xf32> to vector<8x8xbf16>
      %c0_22 = arith.constant 0 : index
      %c2 = arith.constant 2 : index
      %c0_23 = arith.constant 0 : index
      %c0_24 = arith.constant 0 : index
      %31 = vector.load %arg6[%c0_22, %c2, %c0_23, %c0_24] : memref<1x4x8x8xbf16, #tpu.memory_space<vmem>>, vector<1x1x8x8xbf16>
      %32 = vector.shape_cast %31 : vector<1x1x8x8xbf16> to vector<8x8xbf16>
      %33 = vector.shape_cast %30 : vector<8x8xbf16> to vector<1x1x8x8xbf16>
      tpu.vector_store %arg6[%c0_22, %c2, %c0_23, %c0_24], %33 {strides = array<i32>} : memref<1x4x8x8xbf16, #tpu.memory_space<vmem>>, vector<1x1x8x8xbf16>,
      %34 = vector.extract_strided_slice %18 {offsets = [0, 24], sizes = [8, 8], strides = [1, 1]} : vector<8x32xf32> to vector<8x8xf32>
      %35 = arith.truncf %34 : vector<8x8xf32> to vector<8x8xbf16>
      %c0_25 = arith.constant 0 : index
      %c3 = arith.constant 3 : index
      %c0_26 = arith.constant 0 : index
      %c0_27 = arith.constant 0 : index
      %36 = vector.load %arg6[%c0_25, %c3, %c0_26, %c0_27] : memref<1x4x8x8xbf16, #tpu.memory_space<vmem>>, vector<1x1x8x8xbf16>
      %37 = vector.shape_cast %36 : vector<1x1x8x8xbf16> to vector<8x8xbf16>
      %38 = vector.shape_cast %35 : vector<8x8xbf16> to vector<1x1x8x8xbf16>
      tpu.vector_store %arg6[%c0_25, %c3, %c0_26, %c0_27], %38 {strides = array<i32>} : memref<1x4x8x8xbf16, #tpu.memory_space<vmem>>, vector<1x1x8x8xbf16>,
    } else {
    }
    return
  }
  func.func @transform_0(%arg0: i32, %arg1: i32, %arg2: i32) -> (i32, i32, i32) {
    %c0_i32 = arith.constant 0 : i32
    return %arg0, %arg1, %arg2 : i32, i32, i32
  }
  func.func @transform_1(%arg0: i32, %arg1: i32, %arg2: i32) -> (i32, i32) {
    %c0_i32 = arith.constant 0 : i32
    %c0_i32_0 = arith.constant 0 : i32
    return %arg2, %c0_i32 : i32, i32
  }
  func.func @transform_2(%arg0: i32, %arg1: i32, %arg2: i32) -> (i32, i32) {
    %c0_i32 = arith.constant 0 : i32
    %c0_i32_0 = arith.constant 0 : i32
    %c0_i32_1 = arith.constant 0 : i32
    return %c0_i32, %c0_i32_0 : i32, i32
  }
  func.func @transform_3(%arg0: i32, %arg1: i32, %arg2: i32) -> (i32, i32, i32, i32) {
    %c0_i32 = arith.constant 0 : i32
    %c0_i32_0 = arith.constant 0 : i32
    %c0_i32_1 = arith.constant 0 : i32
    return %arg0, %c0_i32, %arg1, %c0_i32_0 : i32, i32, i32, i32
  }
}

module attributes {stable_mosaic.version = 11 : i64} {
  func.func @_rat_attn_kernel(%arg0: i32, %arg1: i32, %arg2: i32, %arg3: memref<1x4x8x8xbf16, #tpu.memory_space<vmem>>, %arg4: memref<1x4x8x8xbf16, #tpu.memory_space<vmem>>, %arg5: memref<1x4x8x8xbf16, #tpu.memory_space<vmem>>, %arg6: memref<1x8x8x8xbf16, #tpu.memory_space<vmem>>, %arg7: memref<4x8xf32, #tpu.memory_space<vmem>>, %arg8: memref<4x8xf32, #tpu.memory_space<vmem>>, %arg9: memref<1x8x32xbf16, #tpu.memory_space<vmem>>, %arg10: memref<4x8x1xf32, #tpu.memory_space<vmem>>, %arg11: memref<4x8x1xf32, #tpu.memory_space<vmem>>, %arg12: memref<4x8x8xf32, #tpu.memory_space<vmem>>, %arg13: memref<8x4x8xbf16, #tpu.memory_space<vmem>>) attributes {dimension_semantics = [#tpu.dimension_semantics<parallel>, #tpu.dimension_semantics<parallel>, #tpu.dimension_semantics<arbitrary>], iteration_bounds = array<i64: 2, 1, 1>, scalar_prefetch = 0 : i64, scratch_operands = 4 : i64, tpu.core_type = #tpu.core_type<tc>, window_params = [{transform_indices = @transform_0, window_bounds = array<i64: 1, 4, 8, 8>}, {transform_indices = @transform_1, window_bounds = array<i64: 1, 4, 8, 8>}, {transform_indices = @transform_2, window_bounds = array<i64: 1, 4, 8, 8>}, {transform_indices = @transform_3, window_bounds = array<i64: 1, 8, 8, 8>}, {pipeline_mode = #tpu.pipeline_mode<synchronous>, transform_indices = @transform_4, window_bounds = array<i64: 4, 8>}, {pipeline_mode = #tpu.pipeline_mode<synchronous>, transform_indices = @transform_5, window_bounds = array<i64: 4, 8>}, {transform_indices = @transform_6, window_bounds = array<i64: 1, 8, 32>}]} {
    %c0_i32 = arith.constant 0 : i32
    %0 = arith.cmpi eq, %arg2, %c0_i32 : i32
    %1 = arith.extui %0 : i1 to i32
    %c0_i32_0 = arith.constant 0 : i32
    %2 = arith.cmpi ne, %1, %c0_i32_0 : i32
    scf.if %2 {
      %cst_47 = arith.constant 0xFF800000 : f32
      %52 = vector.broadcast %cst_47 : f32 to vector<4x8x1xf32>
      %c0_48 = arith.constant 0 : index
      %c0_49 = arith.constant 0 : index
      %c0_50 = arith.constant 0 : index
      %53 = vector.load %arg10[%c0_48, %c0_49, %c0_50] : memref<4x8x1xf32, #tpu.memory_space<vmem>>, vector<4x8x1xf32>
      tpu.vector_store %arg10[%c0_48, %c0_49, %c0_50], %52 {strides = array<i32>} : memref<4x8x1xf32, #tpu.memory_space<vmem>>, vector<4x8x1xf32>,
      %cst_51 = arith.constant 0.000000e+00 : f32
      %54 = vector.broadcast %cst_51 : f32 to vector<4x8x1xf32>
      %c0_52 = arith.constant 0 : index
      %c0_53 = arith.constant 0 : index
      %c0_54 = arith.constant 0 : index
      %55 = vector.load %arg11[%c0_52, %c0_53, %c0_54] : memref<4x8x1xf32, #tpu.memory_space<vmem>>, vector<4x8x1xf32>
      tpu.vector_store %arg11[%c0_52, %c0_53, %c0_54], %54 {strides = array<i32>} : memref<4x8x1xf32, #tpu.memory_space<vmem>>, vector<4x8x1xf32>,
      %cst_55 = arith.constant 0.000000e+00 : f32
      %56 = vector.broadcast %cst_55 : f32 to vector<4x8x8xf32>
      %c0_56 = arith.constant 0 : index
      %c0_57 = arith.constant 0 : index
      %c0_58 = arith.constant 0 : index
      %57 = vector.load %arg12[%c0_56, %c0_57, %c0_58] : memref<4x8x8xf32, #tpu.memory_space<vmem>>, vector<4x8x8xf32>
      tpu.vector_store %arg12[%c0_56, %c0_57, %c0_58], %56 {strides = array<i32>} : memref<4x8x8xf32, #tpu.memory_space<vmem>>, vector<4x8x8xf32>,
      %c0_59 = arith.constant 0 : index
      %c0_60 = arith.constant 0 : index
      %c0_61 = arith.constant 0 : index
      %c0_62 = arith.constant 0 : index
      %58 = vector.load %arg3[%c0_59, %c0_60, %c0_61, %c0_62] : memref<1x4x8x8xbf16, #tpu.memory_space<vmem>>, vector<1x4x8x8xbf16>
      %59 = vector.shape_cast %58 : vector<1x4x8x8xbf16> to vector<4x8x8xbf16>
      %60 = arith.extf %59 : vector<4x8x8xbf16> to vector<4x8x8xf32>
      %c0_63 = arith.constant 0 : index
      %c0_64 = arith.constant 0 : index
      %61 = vector.load %arg7[%c0_63, %c0_64] : memref<4x8xf32, #tpu.memory_space<vmem>>, vector<4x8xf32>
      %62 = vector.shape_cast %61 : vector<4x8xf32> to vector<4x1x8xf32>
      %63 = vector.broadcast %62 : vector<4x1x8xf32> to vector<4x8x8xf32>
      %64 = arith.mulf %60, %63 : vector<4x8x8xf32>
      %65 = tpu.transpose %64, [1, 0, 2] : vector<4x8x8xf32> -> vector<8x4x8xf32>
      %66 = arith.truncf %65 : vector<8x4x8xf32> to vector<8x4x8xbf16>
      %c0_65 = arith.constant 0 : index
      %c0_66 = arith.constant 0 : index
      %c0_67 = arith.constant 0 : index
      %67 = vector.load %arg13[%c0_65, %c0_66, %c0_67] : memref<8x4x8xbf16, #tpu.memory_space<vmem>>, vector<8x4x8xbf16>
      tpu.vector_store %arg13[%c0_65, %c0_66, %c0_67], %66 {strides = array<i32>} : memref<8x4x8xbf16, #tpu.memory_space<vmem>>, vector<8x4x8xbf16>,
    } else {
    }
    %c0 = arith.constant 0 : index
    %c0_1 = arith.constant 0 : index
    %c0_2 = arith.constant 0 : index
    %c0_3 = arith.constant 0 : index
    %3 = vector.load %arg3[%c0, %c0_1, %c0_2, %c0_3] : memref<1x4x8x8xbf16, #tpu.memory_space<vmem>>, vector<1x4x8x8xbf16>
    %4 = vector.shape_cast %3 : vector<1x4x8x8xbf16> to vector<4x8x8xbf16>
    %c0_4 = arith.constant 0 : index
    %c0_5 = arith.constant 0 : index
    %c0_6 = arith.constant 0 : index
    %c0_7 = arith.constant 0 : index
    %5 = vector.load %arg4[%c0_4, %c0_5, %c0_6, %c0_7] : memref<1x4x8x8xbf16, #tpu.memory_space<vmem>>, vector<1x4x8x8xbf16>
    %6 = vector.shape_cast %5 : vector<1x4x8x8xbf16> to vector<4x8x8xbf16>
    %c0_8 = arith.constant 0 : index
    %c0_9 = arith.constant 0 : index
    %c0_10 = arith.constant 0 : index
    %c0_11 = arith.constant 0 : index
    %7 = vector.load %arg5[%c0_8, %c0_9, %c0_10, %c0_11] : memref<1x4x8x8xbf16, #tpu.memory_space<vmem>>, vector<1x4x8x8xbf16>
    %8 = vector.shape_cast %7 : vector<1x4x8x8xbf16> to vector<4x8x8xbf16>
    %c0_12 = arith.constant 0 : index
    %c0_13 = arith.constant 0 : index
    %c0_14 = arith.constant 0 : index
    %c0_15 = arith.constant 0 : index
    %9 = vector.load %arg6[%c0_12, %c0_13, %c0_14, %c0_15] : memref<1x8x8x8xbf16, #tpu.memory_space<vmem>>, vector<1x8x8x8xbf16>
    %10 = vector.shape_cast %9 : vector<1x8x8x8xbf16> to vector<8x8x8xbf16>
    "tpu.trace_start"() <{level = 10 : i32, message = "hqd,hkd->hqk"}> : () -> ()
    %cst = arith.constant dense<0.000000e+00> : vector<4x8x8xf32>
    %11 = tpu.matmul %4, %6, %cst {dimension_numbers = #tpu.dot_dimension_numbers<[2], [2], [1], [1], [0, 0, 0, 1, 1, 1], [0], [0]>} : vector<4x8x8xbf16>, vector<4x8x8xbf16>, vector<4x8x8xf32> -> vector<4x8x8xf32>
    "tpu.trace_stop"() : () -> ()
    %c0_16 = arith.constant 0 : index
    %c0_17 = arith.constant 0 : index
    %c0_18 = arith.constant 0 : index
    %12 = vector.load %arg13[%c0_16, %c0_17, %c0_18] : memref<8x4x8xbf16, #tpu.memory_space<vmem>>, vector<8x4x8xbf16>
    "tpu.trace_start"() <{level = 10 : i32, message = "qhd,qkd->qhk"}> : () -> ()
    %cst_19 = arith.constant dense<0.000000e+00> : vector<8x4x8xf32>
    %13 = tpu.matmul %12, %10, %cst_19 {dimension_numbers = #tpu.dot_dimension_numbers<[2], [2], [1], [1], [0, 0, 0, 1, 1, 1], [0], [0]>} : vector<8x4x8xbf16>, vector<8x8x8xbf16>, vector<8x4x8xf32> -> vector<8x4x8xf32>
    "tpu.trace_stop"() : () -> ()
    %14 = tpu.transpose %13, [1, 0, 2] : vector<8x4x8xf32> -> vector<4x8x8xf32>
    %15 = arith.addf %11, %14 : vector<4x8x8xf32>
    %cst_20 = arith.constant 0.353553385 : f32
    %16 = vector.broadcast %cst_20 : f32 to vector<4x8x8xf32>
    %17 = arith.mulf %15, %16 : vector<4x8x8xf32>
    %c0_21 = arith.constant 0 : index
    %c0_22 = arith.constant 0 : index
    %c0_23 = arith.constant 0 : index
    %18 = vector.load %arg10[%c0_21, %c0_22, %c0_23] : memref<4x8x1xf32, #tpu.memory_space<vmem>>, vector<4x8x1xf32>
    %cst_24 = arith.constant dense<0xFF800000> : vector<4x8xf32>
    %19 = vector.multi_reduction <maximumf>, %17, %cst_24 [2] : vector<4x8x8xf32> to vector<4x8xf32>
    %20 = vector.shape_cast %19 : vector<4x8xf32> to vector<4x8x1xf32>
    %21 = arith.maximumf %18, %20 : vector<4x8x1xf32>
    %22 = arith.subf %18, %21 : vector<4x8x1xf32>
    %23 = math.exp %22 : vector<4x8x1xf32>
    %24 = vector.broadcast %21 : vector<4x8x1xf32> to vector<4x8x8xf32>
    %25 = arith.subf %17, %24 : vector<4x8x8xf32>
    %26 = math.exp %25 : vector<4x8x8xf32>
    %27 = arith.truncf %26 : vector<4x8x8xf32> to vector<4x8x8xbf16>
    "tpu.trace_start"() <{level = 10 : i32, message = "hqk,hkd->hqd"}> : () -> ()
    %cst_25 = arith.constant dense<0.000000e+00> : vector<4x8x8xf32>
    %28 = tpu.matmul %27, %8, %cst_25 {dimension_numbers = #tpu.dot_dimension_numbers<[2], [1], [1], [2], [0, 0, 0, 1, 1, 2], [0], [0]>} : vector<4x8x8xbf16>, vector<4x8x8xbf16>, vector<4x8x8xf32> -> vector<4x8x8xf32>
    "tpu.trace_stop"() : () -> ()
    %29 = tpu.transpose %27, [1, 0, 2] : vector<4x8x8xbf16> -> vector<8x4x8xbf16>
    "tpu.trace_start"() <{level = 10 : i32, message = "qhk,qkd->qhd"}> : () -> ()
    %cst_26 = arith.constant dense<0.000000e+00> : vector<8x4x8xf32>
    %30 = tpu.matmul %29, %10, %cst_26 {dimension_numbers = #tpu.dot_dimension_numbers<[2], [1], [1], [2], [0, 0, 0, 1, 1, 2], [0], [0]>} : vector<8x4x8xbf16>, vector<8x8x8xbf16>, vector<8x4x8xf32> -> vector<8x4x8xf32>
    "tpu.trace_stop"() : () -> ()
    %31 = tpu.transpose %30, [1, 0, 2] : vector<8x4x8xf32> -> vector<4x8x8xf32>
    %c0_27 = arith.constant 0 : index
    %c0_28 = arith.constant 0 : index
    %32 = vector.load %arg8[%c0_27, %c0_28] : memref<4x8xf32, #tpu.memory_space<vmem>>, vector<4x8xf32>
    %33 = vector.shape_cast %32 : vector<4x8xf32> to vector<4x1x8xf32>
    %34 = vector.broadcast %33 : vector<4x1x8xf32> to vector<4x8x8xf32>
    %35 = arith.mulf %31, %34 : vector<4x8x8xf32>
    %c0_29 = arith.constant 0 : index
    %c0_30 = arith.constant 0 : index
    %c0_31 = arith.constant 0 : index
    %36 = vector.load %arg10[%c0_29, %c0_30, %c0_31] : memref<4x8x1xf32, #tpu.memory_space<vmem>>, vector<4x8x1xf32>
    tpu.vector_store %arg10[%c0_29, %c0_30, %c0_31], %21 {strides = array<i32>} : memref<4x8x1xf32, #tpu.memory_space<vmem>>, vector<4x8x1xf32>,
    %c0_32 = arith.constant 0 : index
    %c0_33 = arith.constant 0 : index
    %c0_34 = arith.constant 0 : index
    %37 = vector.load %arg11[%c0_32, %c0_33, %c0_34] : memref<4x8x1xf32, #tpu.memory_space<vmem>>, vector<4x8x1xf32>
    %38 = arith.mulf %23, %37 : vector<4x8x1xf32>
    %cst_35 = arith.constant dense<0.000000e+00> : vector<4x8xf32>
    %39 = vector.multi_reduction <add>, %26, %cst_35 [2] : vector<4x8x8xf32> to vector<4x8xf32>
    %40 = vector.shape_cast %39 : vector<4x8xf32> to vector<4x8x1xf32>
    %41 = arith.addf %38, %40 : vector<4x8x1xf32>
    %c0_36 = arith.constant 0 : index
    %c0_37 = arith.constant 0 : index
    %c0_38 = arith.constant 0 : index
    %42 = vector.load %arg11[%c0_36, %c0_37, %c0_38] : memref<4x8x1xf32, #tpu.memory_space<vmem>>, vector<4x8x1xf32>
    tpu.vector_store %arg11[%c0_36, %c0_37, %c0_38], %41 {strides = array<i32>} : memref<4x8x1xf32, #tpu.memory_space<vmem>>, vector<4x8x1xf32>,
    %c0_39 = arith.constant 0 : index
    %c0_40 = arith.constant 0 : index
    %c0_41 = arith.constant 0 : index
    %43 = vector.load %arg12[%c0_39, %c0_40, %c0_41] : memref<4x8x8xf32, #tpu.memory_space<vmem>>, vector<4x8x8xf32>
    %44 = vector.broadcast %23 : vector<4x8x1xf32> to vector<4x8x8xf32>
    %45 = arith.mulf %44, %43 : vector<4x8x8xf32>
    %46 = arith.addf %45, %28 : vector<4x8x8xf32>
    %47 = arith.addf %46, %35 : vector<4x8x8xf32>
    %c0_42 = arith.constant 0 : index
    %c0_43 = arith.constant 0 : index
    %c0_44 = arith.constant 0 : index
    %48 = vector.load %arg12[%c0_42, %c0_43, %c0_44] : memref<4x8x8xf32, #tpu.memory_space<vmem>>, vector<4x8x8xf32>
    tpu.vector_store %arg12[%c0_42, %c0_43, %c0_44], %47 {strides = array<i32>} : memref<4x8x8xf32, #tpu.memory_space<vmem>>, vector<4x8x8xf32>,
    %c0_i32_45 = arith.constant 0 : i32
    %49 = arith.cmpi eq, %arg2, %c0_i32_45 : i32
    %50 = arith.extui %49 : i1 to i32
    %c0_i32_46 = arith.constant 0 : i32
    %51 = arith.cmpi ne, %50, %c0_i32_46 : i32
    scf.if %51 {
      %c0_47 = arith.constant 0 : index
      %c0_48 = arith.constant 0 : index
      %c0_49 = arith.constant 0 : index
      %52 = vector.load %arg11[%c0_47, %c0_48, %c0_49] : memref<4x8x1xf32, #tpu.memory_space<vmem>>, vector<4x8x1xf32>
      %53 = tpu.reciprocal %52 {approx = true} : vector<4x8x1xf32> -> vector<4x8x1xf32>
      %c0_50 = arith.constant 0 : index
      %c0_51 = arith.constant 0 : index
      %c0_52 = arith.constant 0 : index
      %54 = vector.load %arg12[%c0_50, %c0_51, %c0_52] : memref<4x8x8xf32, #tpu.memory_space<vmem>>, vector<4x8x8xf32>
      %55 = vector.broadcast %53 : vector<4x8x1xf32> to vector<4x8x8xf32>
      %56 = arith.mulf %54, %55 : vector<4x8x8xf32>
      %57 = vector.extract_strided_slice %56 {offsets = [0, 0, 0], sizes = [1, 8, 8], strides = [1, 1, 1]} : vector<4x8x8xf32> to vector<1x8x8xf32>
      %58 = vector.shape_cast %57 : vector<1x8x8xf32> to vector<8x8xf32>
      %59 = vector.extract_strided_slice %56 {offsets = [1, 0, 0], sizes = [1, 8, 8], strides = [1, 1, 1]} : vector<4x8x8xf32> to vector<1x8x8xf32>
      %60 = vector.shape_cast %59 : vector<1x8x8xf32> to vector<8x8xf32>
      %61 = vector.extract_strided_slice %56 {offsets = [2, 0, 0], sizes = [1, 8, 8], strides = [1, 1, 1]} : vector<4x8x8xf32> to vector<1x8x8xf32>
      %62 = vector.shape_cast %61 : vector<1x8x8xf32> to vector<8x8xf32>
      %63 = vector.extract_strided_slice %56 {offsets = [3, 0, 0], sizes = [1, 8, 8], strides = [1, 1, 1]} : vector<4x8x8xf32> to vector<1x8x8xf32>
      %64 = vector.shape_cast %63 : vector<1x8x8xf32> to vector<8x8xf32>
      %65 = tpu.concatenate %58, %60, %62, %64 in 1 : vector<8x8xf32>, vector<8x8xf32>, vector<8x8xf32>, vector<8x8xf32> -> vector<8x32xf32>
      %66 = arith.truncf %65 : vector<8x32xf32> to vector<8x32xbf16>
      %c0_53 = arith.constant 0 : index
      %c0_54 = arith.constant 0 : index
      %c0_55 = arith.constant 0 : index
      %67 = vector.load %arg9[%c0_53, %c0_54, %c0_55] : memref<1x8x32xbf16, #tpu.memory_space<vmem>>, vector<1x8x32xbf16>
      %68 = vector.shape_cast %67 : vector<1x8x32xbf16> to vector<8x32xbf16>
      %69 = vector.shape_cast %66 : vector<8x32xbf16> to vector<1x8x32xbf16>
      tpu.vector_store %arg9[%c0_53, %c0_54, %c0_55], %69 {strides = array<i32>} : memref<1x8x32xbf16, #tpu.memory_space<vmem>>, vector<1x8x32xbf16>,
    } else {
    }
    return
  }
  func.func @transform_0(%arg0: i32, %arg1: i32, %arg2: i32) -> (i32, i32, i32, i32) {
    %c0_i32 = arith.constant 0 : i32
    %c0_i32_0 = arith.constant 0 : i32
    %c0_i32_1 = arith.constant 0 : i32
    return %arg0, %c0_i32, %arg1, %c0_i32_0 : i32, i32, i32, i32
  }
  func.func @transform_1(%arg0: i32, %arg1: i32, %arg2: i32) -> (i32, i32, i32, i32) {
    %c0_i32 = arith.constant 0 : i32
    %c0_i32_0 = arith.constant 0 : i32
    %c0_i32_1 = arith.constant 0 : i32
    return %arg0, %c0_i32, %arg2, %c0_i32_0 : i32, i32, i32, i32
  }
  func.func @transform_2(%arg0: i32, %arg1: i32, %arg2: i32) -> (i32, i32, i32, i32) {
    %c0_i32 = arith.constant 0 : i32
    %c0_i32_0 = arith.constant 0 : i32
    %c0_i32_1 = arith.constant 0 : i32
    return %arg0, %c0_i32, %arg2, %c0_i32_0 : i32, i32, i32, i32
  }
  func.func @transform_3(%arg0: i32, %arg1: i32, %arg2: i32) -> (i32, i32, i32, i32) {
    %c0_i32 = arith.constant 0 : i32
    %c0_i32_0 = arith.constant 0 : i32
    return %arg0, %arg1, %arg2, %c0_i32 : i32, i32, i32, i32
  }
  func.func @transform_4(%arg0: i32, %arg1: i32, %arg2: i32) -> (i32, i32) {
    %c0_i32 = arith.constant 0 : i32
    %c0_i32_0 = arith.constant 0 : i32
    %c0_i32_1 = arith.constant 0 : i32
    return %c0_i32, %c0_i32_0 : i32, i32
  }
  func.func @transform_5(%arg0: i32, %arg1: i32, %arg2: i32) -> (i32, i32) {
    %c0_i32 = arith.constant 0 : i32
    %c0_i32_0 = arith.constant 0 : i32
    %c0_i32_1 = arith.constant 0 : i32
    return %c0_i32, %c0_i32_0 : i32, i32
  }
  func.func @transform_6(%arg0: i32, %arg1: i32, %arg2: i32) -> (i32, i32, i32) {
    %c0_i32 = arith.constant 0 : i32
    %c0_i32_0 = arith.constant 0 : i32
    return %arg0, %arg1, %c0_i32 : i32, i32, i32
  }
}

module attributes {stable_mosaic.version = 11 : i64} {
  func.func @_final_proj_kernel(%arg0: i32, %arg1: i32, %arg2: i32, %arg3: memref<1x8x32xbf16, #tpu.memory_space<vmem>>, %arg4: memref<32x32xf32, #tpu.memory_space<vmem>>, %arg5: memref<1x32xf32, #tpu.memory_space<vmem>>, %arg6: memref<1x8x32xf32, #tpu.memory_space<vmem>>, %arg7: memref<8x32xf32, #tpu.memory_space<vmem>>) attributes {dimension_semantics = [#tpu.dimension_semantics<parallel>, #tpu.dimension_semantics<parallel>, #tpu.dimension_semantics<arbitrary>], iteration_bounds = array<i64: 2, 1, 1>, scalar_prefetch = 0 : i64, scratch_operands = 1 : i64, tpu.core_type = #tpu.core_type<tc>, window_params = [{transform_indices = @transform_0, window_bounds = array<i64: 1, 8, 32>}, {transform_indices = @transform_1, window_bounds = array<i64: 32, 32>}, {pipeline_mode = #tpu.pipeline_mode<synchronous>, transform_indices = @transform_2, window_bounds = array<i64: 1, 32>}, {transform_indices = @transform_3, window_bounds = array<i64: 1, 8, 32>}]} {
    %c0_i32 = arith.constant 0 : i32
    %0 = arith.cmpi eq, %arg2, %c0_i32 : i32
    %1 = arith.extui %0 : i1 to i32
    %c0_i32_0 = arith.constant 0 : i32
    %2 = arith.cmpi ne, %1, %c0_i32_0 : i32
    scf.if %2 {
      %cst_11 = arith.constant 0.000000e+00 : f32
      %14 = vector.broadcast %cst_11 : f32 to vector<8x32xf32>
      %c0_12 = arith.constant 0 : index
      %c0_13 = arith.constant 0 : index
      %15 = vector.load %arg7[%c0_12, %c0_13] : memref<8x32xf32, #tpu.memory_space<vmem>>, vector<8x32xf32>
      tpu.vector_store %arg7[%c0_12, %c0_13], %14 {strides = array<i32>} : memref<8x32xf32, #tpu.memory_space<vmem>>, vector<8x32xf32>,
    } else {
    }
    %c0 = arith.constant 0 : index
    %c0_1 = arith.constant 0 : index
    %3 = vector.load %arg7[%c0, %c0_1] : memref<8x32xf32, #tpu.memory_space<vmem>>, vector<8x32xf32>
    %c0_2 = arith.constant 0 : index
    %c0_3 = arith.constant 0 : index
    %c0_4 = arith.constant 0 : index
    %4 = vector.load %arg3[%c0_2, %c0_3, %c0_4] : memref<1x8x32xbf16, #tpu.memory_space<vmem>>, vector<1x8x32xbf16>
    %5 = vector.shape_cast %4 : vector<1x8x32xbf16> to vector<8x32xbf16>
    %c0_5 = arith.constant 0 : index
    %c0_6 = arith.constant 0 : index
    %6 = vector.load %arg4[%c0_5, %c0_6] : memref<32x32xf32, #tpu.memory_space<vmem>>, vector<32x32xf32>
    %7 = arith.truncf %6 : vector<32x32xf32> to vector<32x32xbf16>
    %cst = arith.constant dense<0.000000e+00> : vector<8x32xf32>
    %8 = tpu.matmul %5, %7, %cst {dimension_numbers = #tpu.dot_dimension_numbers<[1], [0], [0], [1], [0, 0, 1, 1], [], []>} : vector<8x32xbf16>, vector<32x32xbf16>, vector<8x32xf32> -> vector<8x32xf32>
    %9 = arith.addf %3, %8 : vector<8x32xf32>
    %c0_7 = arith.constant 0 : index
    %c0_8 = arith.constant 0 : index
    %10 = vector.load %arg7[%c0_7, %c0_8] : memref<8x32xf32, #tpu.memory_space<vmem>>, vector<8x32xf32>
    tpu.vector_store %arg7[%c0_7, %c0_8], %9 {strides = array<i32>} : memref<8x32xf32, #tpu.memory_space<vmem>>, vector<8x32xf32>,
    %c0_i32_9 = arith.constant 0 : i32
    %11 = arith.cmpi eq, %arg2, %c0_i32_9 : i32
    %12 = arith.extui %11 : i1 to i32
    %c0_i32_10 = arith.constant 0 : i32
    %13 = arith.cmpi ne, %12, %c0_i32_10 : i32
    scf.if %13 {
      %c0_11 = arith.constant 0 : index
      %c0_12 = arith.constant 0 : index
      %14 = vector.load %arg7[%c0_11, %c0_12] : memref<8x32xf32, #tpu.memory_space<vmem>>, vector<8x32xf32>
      %c0_13 = arith.constant 0 : index
      %c0_14 = arith.constant 0 : index
      %15 = vector.load %arg5[%c0_13, %c0_14] : memref<1x32xf32, #tpu.memory_space<vmem>>, vector<1x32xf32>
      %16 = vector.broadcast %15 : vector<1x32xf32> to vector<8x32xf32>
      %17 = arith.addf %14, %16 : vector<8x32xf32>
      %c0_15 = arith.constant 0 : index
      %c0_16 = arith.constant 0 : index
      %c0_17 = arith.constant 0 : index
      %18 = vector.load %arg6[%c0_15, %c0_16, %c0_17] : memref<1x8x32xf32, #tpu.memory_space<vmem>>, vector<1x8x32xf32>
      %19 = vector.shape_cast %18 : vector<1x8x32xf32> to vector<8x32xf32>
      %20 = vector.shape_cast %17 : vector<8x32xf32> to vector<1x8x32xf32>
      tpu.vector_store %arg6[%c0_15, %c0_16, %c0_17], %20 {strides = array<i32>} : memref<1x8x32xf32, #tpu.memory_space<vmem>>, vector<1x8x32xf32>,
    } else {
    }
    return
  }
  func.func @transform_0(%arg0: i32, %arg1: i32, %arg2: i32) -> (i32, i32, i32) {
    %c0_i32 = arith.constant 0 : i32
    return %arg0, %arg1, %arg2 : i32, i32, i32
  }
  func.func @transform_1(%arg0: i32, %arg1: i32, %arg2: i32) -> (i32, i32) {
    %c0_i32 = arith.constant 0 : i32
    %c0_i32_0 = arith.constant 0 : i32
    return %arg2, %c0_i32 : i32, i32
  }
  func.func @transform_2(%arg0: i32, %arg1: i32, %arg2: i32) -> (i32, i32) {
    %c0_i32 = arith.constant 0 : i32
    %c0_i32_0 = arith.constant 0 : i32
    %c0_i32_1 = arith.constant 0 : i32
    return %c0_i32, %c0_i32_0 : i32, i32
  }
  func.func @transform_3(%arg0: i32, %arg1: i32, %arg2: i32) -> (i32, i32, i32) {
    %c0_i32 = arith.constant 0 : i32
    %c0_i32_0 = arith.constant 0 : i32
    return %arg0, %arg1, %c0_i32 : i32, i32, i32
  }
}

</mosaic_0001>

<llo_original>
// kernel: rat_mha_forward.6
$region0: #{rat_mha_forward.6}
  #allocation0 [shape = 'u32[]', space=smem, size = 0x4, offset = 0x4, fixed_abs, tag = 'smem constant byte address 0x4 - core index']
  #allocation1 [shape = 'u32[144,128]{1,0:T(1,128)}', space=vmem, size = 0x12000, scoped, tag = 'internal scratch']
  #allocation2 [shape = 'f32[8,32]{1,0:T(8,128)}', space=vmem, size = 0x1000, scoped, tag = 'scratch operand']
  %s0 = inlined_call_operand.vmem [shape: f32[2,8,32], index: 0, kind: input, shape index: {}]
  %s1 = inlined_call_operand.hbm [shape: f32[32,32], index: 1, kind: input, shape index: {}]
  %s2 = inlined_call_operand.vmem [shape: f32[1,32], index: 2, kind: input, shape index: {}]
  %s3 = inlined_call_operand.vmem [shape: bf16[2,4,8,8], index: 3, kind: output, shape index: {}]
  %s4 = sld [smem:[#allocation0]]
  $region57: #{rat_mha_forward.6} parent=0
    _
  %s6 = ssub.s32 1, %s4
  %s7 = scalar_select 0, %s6, %s4
  $region1: #{rat_mha_forward.6} parent=0
    #allocation3 [shape = 'u8[16384]{0}', space=vmem, size = 0x4000, scoped, tag = 'input window, operand 1, single buffered']
    #allocation4 [shape = 's32[2]{0}', space=sflag, size = 0x8, scoped, tag = 'scoped memory for rat_mha_forward.6']
    %8 = vsyncpa [#allocation4], 0
    loop: start=0, step=1, limit=4
    $region2: #{rat_mha_forward.6} parent=1 // loop_pre_header
      _
    $region3: #{rat_mha_forward.6} parent=1 // loop_header
      %s10 = sphi 0, %s14
      %p11 = scmp.ge.s32.totalorder %s10, 4
      %s17 = sphi 0, %s36
      %s18 = sphi 0, %s32
      %s19 = sphi 0, %s28
      %s20 = sphi 0, %s17
      %s21 = sphi 0, %s18
      %s22 = sphi 0, %s19
      %s23 = sphi 0, %s20
      %s24 = sphi 0, %s21
      %s25 = sphi 0, %s22
      %s43 = sphi 0, %s45
      %s46 = sphi 0, %s43
      %s47 = sphi 0, %s46
      %s63 = sphi 0, %s47
      %s69 = sphi 0, %s71
      %s72 = sphi 0, %s69
      %s73 = sphi 0, %s72
      %s89 = sphi 0, %s73
      %s93 = sphi 0, %s93
      %s95 = sphi 0, %s93
      %s96 = sphi 0, %s95
      %s110 = sphi 0, %s96
      %s118 = sphi 0, %s120
      %s121 = sphi 0, %s118
      %s122 = sphi 0, %s121
      %s138 = sphi 0, %s122
    $region4: #{rat_mha_forward.6} parent=1 // loop_header_branch
      %13 = sbr.rel (%p11) target = $region8
    $region5: #{rat_mha_forward.6} parent=1 // loop_body
      %s15 = ssub.s32 %s10, 1
      %s16 = ssub.s32 %s10, 2
      %s26 = sadd.s32 1, %s19
      %p27 = scmp.ge.s32.totalorder %s26, 1
      %s28 = scalar_select %p27, 0, %s26
      %s29 = sadd.s32 1, %s18
      %s30 = scalar_select %p27, %s29, %s18
      %p31 = scmp.ge.s32.totalorder %s30, 1
      %s32 = scalar_select %p31, 0, %s30
      %s33 = sadd.s32 1, %s17
      %s34 = scalar_select %p31, %s33, %s17
      %p35 = scmp.ge.s32.totalorder %s34, 2
      %s36 = scalar_select %p35, 0, %s34
      %s37 = ssub.s32 %s17, %s36
      %s38 = ssub.s32 %s18, %s32
      %s39 = sor.u32 %s37, %s38
      %s40 = ssub.s32 %s19, %s28
      %s41 = sor.u32 %s39, %s40
      %p42 = scmp.eq.s32.totalorder %s41, 0
      %s44 = sadd.s32 %s43, 1
      %s45 = scalar_select %p42, %s43, %s44
      %p48 = pneg %p42
      %p49 = scmp.eq.s32.totalorder %s10, 1
      %p50 = por %p48, %p49
      %p51 = scmp.ne.s32.totalorder %s43, %s46
      %p52 = scmp.eq.s32.totalorder %s10, 0
      %p53 = por %p51, %p52
      %p54 = scmp.ne.s32.totalorder %s43, %s46
      %p55 = scmp.eq.s32.totalorder %s15, 1
      %p56 = por %p54, %p55
      %p57 = scmp.ne.s32.totalorder %s46, %s47
      %p58 = scmp.eq.s32.totalorder %s15, 0
      %p59 = por %p57, %p58
      %p60 = scmp.ne.s32.totalorder %s46, %s47
      %p61 = scmp.eq.s32.totalorder %s16, 1
      %p62 = por %p60, %p61
      %p64 = scmp.ne.s32.totalorder %s47, %s63
      %p65 = scmp.eq.s32.totalorder %s16, 0
      %p66 = por %p64, %p65
      %s67 = ssub.s32 %s19, %s28
      %p68 = scmp.eq.s32.totalorder %s67, 0
      %s70 = sadd.s32 %s69, 1
      %s71 = scalar_select %p68, %s69, %s70
      %p74 = pneg %p68
      %p75 = scmp.eq.s32.totalorder %s10, 1
      %p76 = por %p74, %p75
      %p77 = scmp.ne.s32.totalorder %s69, %s72
      %p78 = scmp.eq.s32.totalorder %s10, 0
      %p79 = por %p77, %p78
      %p80 = scmp.ne.s32.totalorder %s69, %s72
      %p81 = scmp.eq.s32.totalorder %s15, 1
      %p82 = por %p80, %p81
      %p83 = scmp.ne.s32.totalorder %s72, %s73
      %p84 = scmp.eq.s32.totalorder %s15, 0
      %p85 = por %p83, %p84
      %p86 = scmp.ne.s32.totalorder %s72, %s73
      %p87 = scmp.eq.s32.totalorder %s16, 1
      %p88 = por %p86, %p87
      %p90 = scmp.ne.s32.totalorder %s73, %s89
      %p91 = scmp.eq.s32.totalorder %s16, 0
      %p92 = por %p90, %p91
      %s94 = sadd.s32 %s93, 1
      %p97 = scmp.eq.s32.totalorder %s10, 1
      %p98 = scmp.ne.s32.totalorder %s93, %s95
      %p99 = scmp.eq.s32.totalorder %s10, 0
      %p100 = por %p98, %p99
      %p101 = scmp.ne.s32.totalorder %s93, %s95
      %p102 = scmp.eq.s32.totalorder %s15, 1
      %p103 = por %p101, %p102
      %p104 = scmp.ne.s32.totalorder %s95, %s96
      %p105 = scmp.eq.s32.totalorder %s15, 0
      %p106 = por %p104, %p105
      %p107 = scmp.ne.s32.totalorder %s95, %s96
      %p108 = scmp.eq.s32.totalorder %s16, 1
      %p109 = por %p107, %p108
      %p111 = scmp.ne.s32.totalorder %s96, %s110
      %p112 = scmp.eq.s32.totalorder %s16, 0
      %p113 = por %p111, %p112
      %s114 = ssub.s32 %s17, %s36
      %s115 = ssub.s32 %s18, %s32
      %s116 = sor.u32 %s114, %s115
      %p117 = scmp.eq.s32.totalorder %s116, 0
      %s119 = sadd.s32 %s118, 1
      %s120 = scalar_select %p117, %s118, %s119
      %p123 = pneg %p117
      %p124 = scmp.eq.s32.totalorder %s10, 1
      %p125 = por %p123, %p124
      %p126 = scmp.ne.s32.totalorder %s118, %s121
      %p127 = scmp.eq.s32.totalorder %s10, 0
      %p128 = por %p126, %p127
      %p129 = scmp.ne.s32.totalorder %s118, %s121
      %p130 = scmp.eq.s32.totalorder %s15, 1
      %p131 = por %p129, %p130
      %p132 = scmp.ne.s32.totalorder %s121, %s122
      %p133 = scmp.eq.s32.totalorder %s15, 0
      %p134 = por %p132, %p133
      %p135 = scmp.ne.s32.totalorder %s121, %s122
      %p136 = scmp.eq.s32.totalorder %s16, 1
      %p137 = por %p135, %p136
      %p139 = scmp.ne.s32.totalorder %s122, %s138
      %p140 = scmp.eq.s32.totalorder %s16, 0
      %p141 = por %p139, %p140
      %p142 = scmp.le.s32.totalorder 1, %s10
      %p143 = scmp.lt.s32.totalorder %s10, 3
      %p144 = pnand %p142, %p143
      %p145 = pneg %p144
      // Predicated region
      $region9: #{rat_mha_forward.6} parent=5 // pred_check
        _
      $region10: #{rat_mha_forward.6} parent=5 // pred_check_branch
        %147 = sbr.rel (%p144) target = $region12
      $region11: #{rat_mha_forward.6} parent=5 // pred_region
        %s148 = ssub.s32 %s10, 1
        // Predicated region
        $region13: #{rat_mha_forward.6} parent=11 // pred_check
          %p149 = pneg %p85
        $region14: #{rat_mha_forward.6} parent=11 // pred_check_branch
          %151 = sbr.rel (%p149) target = $region16
        $region15: #{rat_mha_forward.6} parent=11 // pred_region
          %s152 = smul.u32 4, %s22
          %s154 = ssub.s32 512, 512
          %155 = vsyncadd [#allocation4], %s154
          %s156 = smul.addr %s152, 128
          %s157 = scalar_lea.hbm %s1, %s156
          %s158 = sshll.u32 [#allocation3], 4
          %s159 = int_to_ptr.vmem [resolvable:$true] %s158
          %164 = dma.hbm_to_vmem [thread:$0]  %s157, 512, %s159, [#allocation4], 128, 128, 8
        $region16: #{rat_mha_forward.6} parent=11 // pred_fallthru
          _
        // Predicated region
        $region17: #{rat_mha_forward.6} parent=11 // pred_check
          %p165 = pneg %p106
        $region18: #{rat_mha_forward.6} parent=11 // pred_check_branch
          %167 = sbr.rel (%p165) target = $region20
        $region19: #{rat_mha_forward.6} parent=11 // pred_region
          _
        $region20: #{rat_mha_forward.6} parent=11 // pred_fallthru
          _
      $region12: #{rat_mha_forward.6} parent=5 // pred_fallthru
        _
      %p168 = scmp.lt.s32.totalorder %s10, 2
      // Predicated region
      $region21: #{rat_mha_forward.6} parent=5 // pred_check
        %p169 = pneg %p168
      $region22: #{rat_mha_forward.6} parent=5 // pred_check_branch
        %171 = sbr.rel (%p169) target = $region24
      $region23: #{rat_mha_forward.6} parent=5 // pred_region
        // Predicated region
        $region25: #{rat_mha_forward.6} parent=23 // pred_check
          %p172 = pneg %p53
        $region26: #{rat_mha_forward.6} parent=23 // pred_check_branch
          %174 = sbr.rel (%p172) target = $region28
        $region27: #{rat_mha_forward.6} parent=23 // pred_region
          %p175 = scmp.lt.s32.totalorder %s17, 1
          %s176 = scalar_select %p175, %s17, 1
          %p177 = scmp.lt.s32.totalorder %s18, 0
          %s178 = scalar_select %p177, %s18, 0
          %p179 = scmp.lt.s32.totalorder %s19, 0
          %s180 = scalar_select %p179, %s19, 0
          %s181 = sadd.s32 %s180, %s178
          %s182 = sadd.s32 %s181, %s176
          %s183 = smul.addr %s182, 8
          %s184 = scalar_lea.vmem %s0, %s183
        $region28: #{rat_mha_forward.6} parent=23 // pred_fallthru
          _
      $region24: #{rat_mha_forward.6} parent=5 // pred_fallthru
        _
      %p185 = scmp.le.s32.totalorder 1, %s10
      %p186 = scmp.lt.s32.totalorder %s10, 3
      %p187 = pnand %p185, %p186
      %p188 = pneg %p187
      // Predicated region
      $region29: #{rat_mha_forward.6} parent=5 // pred_check
        _
      $region30: #{rat_mha_forward.6} parent=5 // pred_check_branch
        %190 = sbr.rel (%p187) target = $region32
      $region31: #{rat_mha_forward.6} parent=5 // pred_region
        %s191 = ssub.s32 %s10, 1
        // Predicated region
        $region33: #{rat_mha_forward.6} parent=31 // pred_check
          %p192 = pneg %p85
        $region34: #{rat_mha_forward.6} parent=31 // pred_check_branch
          %194 = sbr.rel (%p192) target = $region36
        $region35: #{rat_mha_forward.6} parent=31 // pred_region
          %195 = dma.done [#allocation4], 512
        $region36: #{rat_mha_forward.6} parent=31 // pred_fallthru
          _
        %p196 = scmp.lt.s32.totalorder %s20, 1
        %s197 = scalar_select %p196, %s20, 1
        %p198 = scmp.lt.s32.totalorder %s21, 0
        %s199 = scalar_select %p198, %s21, 0
        %p200 = scmp.lt.s32.totalorder %s22, 0
        %s201 = scalar_select %p200, %s22, 0
        %s202 = sadd.s32 %s201, %s199
        %s203 = sadd.s32 %s202, %s197
        %s204 = smul.addr %s203, 8
        %s205 = scalar_lea.vmem %s0, %s204
        %p206 = pneg %p59
        %p207 = pneg %p56
        %p208 = pneg %p85
        %p209 = pneg %p82
        %p210 = pneg %p106
        %p211 = pneg %p103
        %p212 = pneg %p134
        %p213 = pneg %p131
        %p214 = scmp.lt.s32.totalorder %s20, 1
        %s215 = scalar_select %p214, %s20, 1
        %p216 = scmp.lt.s32.totalorder %s21, 0
        %s217 = scalar_select %p216, %s21, 0
        %s218 = smul.addr %s215, 4
        %s219 = sadd.s32 %s217, %s218
        %s220 = smul.addr %s219, 4
        %s221 = scalar_lea.vmem %s3, %s220
        %p222 = scmp.lt.s32.totalorder %s20, 1
        %s223 = scalar_select %p222, %s20, 1
        %p224 = scmp.lt.s32.totalorder %s21, 0
        %s225 = scalar_select %p224, %s21, 0
        %p226 = scmp.lt.s32.totalorder %s22, 0
        %s227 = scalar_select %p226, %s22, 0
        %s228 = sadd.s32 %s227, %s225
        %s229 = sadd.s32 %s228, %s223
        %s230 = smul.addr %s229, 8
        %s231 = scalar_lea.vmem %s0, %s230
        %s232 = smul.u32 4, %s22
        %p233 = scmp.lt.s32.totalorder %s20, 1
        %s234 = scalar_select %p233, %s20, 1
        %p235 = scmp.lt.s32.totalorder %s21, 0
        %s236 = scalar_select %p235, %s21, 0
        %s237 = smul.addr %s234, 4
        %s238 = sadd.s32 %s236, %s237
        %s239 = smul.addr %s238, 4
        %s240 = scalar_lea.vmem %s3, %s239
        %p242 = scmp.eq.s32.totalorder %s22, 0
        // Predicated region
        $region37: #{rat_mha_forward.6} parent=31 // pred_check
          %p243 = pneg %p242
        $region38: #{rat_mha_forward.6} parent=31 // pred_check_branch
          %245 = sbr.rel (%p243) target = $region40
        $region39: #{rat_mha_forward.6} parent=31 // pred_region
          %vm246 = vcmask 261120
          %247 = vst.msk [vmem:[#allocation2] sm:$0xff] %vm246, 0.0
        $region40: #{rat_mha_forward.6} parent=31 // pred_fallthru
          _
        %v248 = vld [vmem:[#allocation2] sm:$0xff]
        %v249 = vld [vmem:[%s231] sm:$0xff]
        %v250 = vpack.c.bf16 %v249, %v249
        %v251 = vld [vmem:[#allocation3] sm:$0xff]
        %v252 = vld [vmem:[#allocation3 + $0x8] sm:$0xff]
        %v253 = vld [vmem:[#allocation3 + $0x10] sm:$0xff]
        %v254 = vld [vmem:[#allocation3 + $0x18] sm:$0xff]
        %v255 = vpack.c.bf16 %v252, %v251
        %v256 = vpack.c.bf16 %v254, %v253
        %vm257 = vcmask 261120
        %v259 = vsel %vm257, %v250, 0
        %261 = vmatprep.subr.bf16.mxu0 0
        %262 = vmatpush1.bf16.msra.mxu0 %v255
        %263 = vmatprep.subr.bf16.mxu0 0
        %264 = vmatpush1.bf16.msra.mxu0 %v256
        %265 = vmatprep.subr.bf16.mxu0 0
        %266 = vmatpush1.bf16.msra.mxu0 0
        %267 = vmatprep.subr.bf16.mxu0 0
        %268 = vmatpush1.bf16.msra.mxu0 0
        %269 = vmatprep.subr.bf16.mxu0 0
        %270 = vmatpush1.bf16.msra.mxu0 0
        %271 = vmatprep.subr.bf16.mxu0 0
        %272 = vmatpush1.bf16.msra.mxu0 0
        %273 = vmatprep.subr.bf16.mxu0 0
        %274 = vmatpush1.bf16.msra.mxu0 0
        %275 = vmatprep.subr.bf16.mxu0 0
        %276 = vmatpush1.bf16.msra.mxu0 0
        %277 = vmatprep.subr.bf16.mxu0 0
        %278 = vmatpush1.bf16.msra.mxu0 0
        %279 = vmatprep.subr.bf16.mxu0 0
        %280 = vmatpush1.bf16.msra.mxu0 0
        %281 = vmatprep.subr.bf16.mxu0 0
        %282 = vmatpush1.bf16.msra.mxu0 0
        %283 = vmatprep.subr.bf16.mxu0 0
        %284 = vmatpush1.bf16.msra.mxu0 0
        %285 = vmatprep.subr.bf16.mxu0 0
        %286 = vmatpush1.bf16.msra.mxu0 0
        %287 = vmatprep.subr.bf16.mxu0 0
        %288 = vmatpush1.bf16.msra.mxu0 0
        %289 = vmatprep.subr.bf16.mxu0 0
        %290 = vmatpush1.bf16.msra.mxu0 0
        %291 = vmatprep.subr.bf16.mxu0 0
        %292 = vmatpush1.bf16.msra.mxu0 0
        %293 = vmatprep.mubr.bf16.mxu0 0
        %294 = vmatmul.mubr.bf16.gmra.mrb[0].mxu0 %v259
        %v295 = vpop.f32.mrb[0].mxu0
        %v296 = vadd.f32 0.0, %v295
        %v297 = vpop.f32.mrb[0].mxu0
        %v298 = vpop.f32.mrb[0].mxu0
        %v299 = vpop.f32.mrb[0].mxu0
        %300 = vdwg.mxu0
        %v301 = vadd.f32 %v248, %v296
        %302 = vst.msk [vmem:[#allocation2] sm:$0xff] %vm257, %v301
        // Predicated region
        $region41: #{rat_mha_forward.6} parent=31 // pred_check
          %p303 = pneg %p242
        $region42: #{rat_mha_forward.6} parent=31 // pred_check_branch
          %305 = sbr.rel (%p303) target = $region44
        $region43: #{rat_mha_forward.6} parent=31 // pred_region
          %v306 = vld [vmem:[#allocation2] sm:$0xff]
          %v307 = vld [vmem:[%s2] sm:$0x1]
          %v309 = vlaneseq
          %v310 = vshrl.u32 %v309, 7
          %v311 = vsub.s32 0, %v310
          %v312 = vrot.slane %v307, %v311
          %v314 = vadd.f32 %v306, %v312
          %v315 = vpack.c.bf16 %v314, %v314
          %vm316 = vcmask 60416
          %317 = vst.msk [vmem:[%s240] sm:$0xf] %vm316, %v315
          %v319 = vunpack.c.l.b16 %v315
          %v320 = vpack.c.b16 %v319, %v319
          %321 = vrot.lane.b32.xlu0 %v320, 120
          %v322 = vpop.permute.xlu0 %321
          %s324 = scalar_lea.vmem %s240, 4
          %325 = vst.msk [vmem:[%s324] sm:$0xf] %vm316, %v322
          %326 = vrot.lane.b32.xlu0 %v320, 112
          %v327 = vpop.permute.xlu0 %326
          %s329 = scalar_lea.vmem %s240, 8
          %330 = vst.msk [vmem:[%s329] sm:$0xf] %vm316, %v327
          %331 = vrot.lane.b32.xlu0 %v320, 104
          %v332 = vpop.permute.xlu0 %331
          %s334 = scalar_lea.vmem %s240, 12
          %335 = vst.msk [vmem:[%s334] sm:$0xf] %vm316, %v332
        $region44: #{rat_mha_forward.6} parent=31 // pred_fallthru
          _
        %p336 = scmp.lt.s32.totalorder %s20, 1
        %s337 = scalar_select %p336, %s20, 1
        %p338 = scmp.lt.s32.totalorder %s21, 0
        %s339 = scalar_select %p338, %s21, 0
        %s340 = smul.addr %s337, 4
        %s341 = sadd.s32 %s339, %s340
        %s342 = smul.addr %s341, 4
        %s343 = scalar_lea.vmem %s3, %s342
        // Predicated region
        $region45: #{rat_mha_forward.6} parent=31 // pred_check
          %p344 = pneg %p131
        $region46: #{rat_mha_forward.6} parent=31 // pred_check_branch
          %346 = sbr.rel (%p344) target = $region48
        $region47: #{rat_mha_forward.6} parent=31 // pred_region
          _
        $region48: #{rat_mha_forward.6} parent=31 // pred_fallthru
          _
      $region32: #{rat_mha_forward.6} parent=5 // pred_fallthru
        _
      %p347 = scmp.le.s32.totalorder 2, %s10
      // Predicated region
      $region49: #{rat_mha_forward.6} parent=5 // pred_check
        %p348 = pneg %p347
      $region50: #{rat_mha_forward.6} parent=5 // pred_check_branch
        %350 = sbr.rel (%p348) target = $region52
      $region51: #{rat_mha_forward.6} parent=5 // pred_region
        %s351 = ssub.s32 %s10, 2
        // Predicated region
        $region53: #{rat_mha_forward.6} parent=51 // pred_check
          %p352 = pneg %p137
        $region54: #{rat_mha_forward.6} parent=51 // pred_check_branch
          %354 = sbr.rel (%p352) target = $region56
        $region55: #{rat_mha_forward.6} parent=51 // pred_region
          %p355 = scmp.lt.s32.totalorder %s23, 1
          %s356 = scalar_select %p355, %s23, 1
          %p357 = scmp.lt.s32.totalorder %s24, 0
          %s358 = scalar_select %p357, %s24, 0
          %s359 = smul.addr %s356, 4
          %s360 = sadd.s32 %s358, %s359
          %s361 = smul.addr %s360, 4
          %s362 = scalar_lea.vmem %s3, %s361
        $region56: #{rat_mha_forward.6} parent=51 // pred_fallthru
          _
      $region52: #{rat_mha_forward.6} parent=5 // pred_fallthru
        _
    $region6: #{rat_mha_forward.6} parent=1 // loop_footer
      %s14 = sadd.s32 1, %s10
    $region7: #{rat_mha_forward.6} parent=1 // loop_footer_branch
      %9 = sbr.rel target = $region3
    $region8: #{rat_mha_forward.6} parent=1 // loop_exit
      _
    %363 = vsyncpa [#allocation4], 1
    %s364 = scalar_lea.sflag [#allocation4], 1
    %365 = vsyncpa %s364, 1

// kernel: rat_mha_forward.5
$region0: #{rat_mha_forward.5}
  #allocation0 [shape = 'u32[]', space=smem, size = 0x4, offset = 0x4, fixed_abs, tag = 'smem constant byte address 0x4 - core index']
  #allocation1 [shape = 'u32[144,128]{1,0:T(1,128)}', space=vmem, size = 0x12000, scoped, tag = 'internal scratch']
  #allocation2 [shape = 'f32[8,32]{1,0:T(8,128)}', space=vmem, size = 0x1000, scoped, tag = 'scratch operand']
  %s0 = inlined_call_operand.vmem [shape: f32[2,8,32], index: 0, kind: input, shape index: {}]
  %s1 = inlined_call_operand.vmem [shape: f32[32,32], index: 1, kind: input, shape index: {}]
  %s2 = inlined_call_operand.vmem [shape: f32[1,32], index: 2, kind: input, shape index: {}]
  %s3 = inlined_call_operand.vmem [shape: bf16[2,4,8,8], index: 3, kind: output, shape index: {}]
  %s4 = sld [smem:[#allocation0]]
  $region53: #{rat_mha_forward.5} parent=0
    _
  %s6 = ssub.s32 1, %s4
  %s7 = scalar_select 0, %s6, %s4
  loop: start=0, step=1, limit=4
  $region2: #{rat_mha_forward.5} parent=0 // loop_pre_header
    _
  $region3: #{rat_mha_forward.5} parent=0 // loop_header
    %s9 = sphi 0, %s13
    %p10 = scmp.ge.s32.totalorder %s9, 4
    %s16 = sphi 0, %s35
    %s17 = sphi 0, %s31
    %s18 = sphi 0, %s27
    %s19 = sphi 0, %s16
    %s20 = sphi 0, %s17
    %s21 = sphi 0, %s18
    %s22 = sphi 0, %s19
    %s23 = sphi 0, %s20
    %s24 = sphi 0, %s21
    %s42 = sphi 0, %s44
    %s45 = sphi 0, %s42
    %s46 = sphi 0, %s45
    %s62 = sphi 0, %s46
    %s68 = sphi 0, %s70
    %s71 = sphi 0, %s68
    %s72 = sphi 0, %s71
    %s88 = sphi 0, %s72
    %s92 = sphi 0, %s92
    %s94 = sphi 0, %s92
    %s95 = sphi 0, %s94
    %s109 = sphi 0, %s95
    %s117 = sphi 0, %s119
    %s120 = sphi 0, %s117
    %s121 = sphi 0, %s120
    %s137 = sphi 0, %s121
  $region4: #{rat_mha_forward.5} parent=0 // loop_header_branch
    %12 = sbr.rel (%p10) target = $region8
  $region5: #{rat_mha_forward.5} parent=0 // loop_body
    %s14 = ssub.s32 %s9, 1
    %s15 = ssub.s32 %s9, 2
    %s25 = sadd.s32 1, %s18
    %p26 = scmp.ge.s32.totalorder %s25, 1
    %s27 = scalar_select %p26, 0, %s25
    %s28 = sadd.s32 1, %s17
    %s29 = scalar_select %p26, %s28, %s17
    %p30 = scmp.ge.s32.totalorder %s29, 1
    %s31 = scalar_select %p30, 0, %s29
    %s32 = sadd.s32 1, %s16
    %s33 = scalar_select %p30, %s32, %s16
    %p34 = scmp.ge.s32.totalorder %s33, 2
    %s35 = scalar_select %p34, 0, %s33
    %s36 = ssub.s32 %s16, %s35
    %s37 = ssub.s32 %s17, %s31
    %s38 = sor.u32 %s36, %s37
    %s39 = ssub.s32 %s18, %s27
    %s40 = sor.u32 %s38, %s39
    %p41 = scmp.eq.s32.totalorder %s40, 0
    %s43 = sadd.s32 %s42, 1
    %s44 = scalar_select %p41, %s42, %s43
    %p47 = pneg %p41
    %p48 = scmp.eq.s32.totalorder %s9, 1
    %p49 = por %p47, %p48
    %p50 = scmp.ne.s32.totalorder %s42, %s45
    %p51 = scmp.eq.s32.totalorder %s9, 0
    %p52 = por %p50, %p51
    %p53 = scmp.ne.s32.totalorder %s42, %s45
    %p54 = scmp.eq.s32.totalorder %s14, 1
    %p55 = por %p53, %p54
    %p56 = scmp.ne.s32.totalorder %s45, %s46
    %p57 = scmp.eq.s32.totalorder %s14, 0
    %p58 = por %p56, %p57
    %p59 = scmp.ne.s32.totalorder %s45, %s46
    %p60 = scmp.eq.s32.totalorder %s15, 1
    %p61 = por %p59, %p60
    %p63 = scmp.ne.s32.totalorder %s46, %s62
    %p64 = scmp.eq.s32.totalorder %s15, 0
    %p65 = por %p63, %p64
    %s66 = ssub.s32 %s18, %s27
    %p67 = scmp.eq.s32.totalorder %s66, 0
    %s69 = sadd.s32 %s68, 1
    %s70 = scalar_select %p67, %s68, %s69
    %p73 = pneg %p67
    %p74 = scmp.eq.s32.totalorder %s9, 1
    %p75 = por %p73, %p74
    %p76 = scmp.ne.s32.totalorder %s68, %s71
    %p77 = scmp.eq.s32.totalorder %s9, 0
    %p78 = por %p76, %p77
    %p79 = scmp.ne.s32.totalorder %s68, %s71
    %p80 = scmp.eq.s32.totalorder %s14, 1
    %p81 = por %p79, %p80
    %p82 = scmp.ne.s32.totalorder %s71, %s72
    %p83 = scmp.eq.s32.totalorder %s14, 0
    %p84 = por %p82, %p83
    %p85 = scmp.ne.s32.totalorder %s71, %s72
    %p86 = scmp.eq.s32.totalorder %s15, 1
    %p87 = por %p85, %p86
    %p89 = scmp.ne.s32.totalorder %s72, %s88
    %p90 = scmp.eq.s32.totalorder %s15, 0
    %p91 = por %p89, %p90
    %s93 = sadd.s32 %s92, 1
    %p96 = scmp.eq.s32.totalorder %s9, 1
    %p97 = scmp.ne.s32.totalorder %s92, %s94
    %p98 = scmp.eq.s32.totalorder %s9, 0
    %p99 = por %p97, %p98
    %p100 = scmp.ne.s32.totalorder %s92, %s94
    %p101 = scmp.eq.s32.totalorder %s14, 1
    %p102 = por %p100, %p101
    %p103 = scmp.ne.s32.totalorder %s94, %s95
    %p104 = scmp.eq.s32.totalorder %s14, 0
    %p105 = por %p103, %p104
    %p106 = scmp.ne.s32.totalorder %s94, %s95
    %p107 = scmp.eq.s32.totalorder %s15, 1
    %p108 = por %p106, %p107
    %p110 = scmp.ne.s32.totalorder %s95, %s109
    %p111 = scmp.eq.s32.totalorder %s15, 0
    %p112 = por %p110, %p111
    %s113 = ssub.s32 %s16, %s35
    %s114 = ssub.s32 %s17, %s31
    %s115 = sor.u32 %s113, %s114
    %p116 = scmp.eq.s32.totalorder %s115, 0
    %s118 = sadd.s32 %s117, 1
    %s119 = scalar_select %p116, %s117, %s118
    %p122 = pneg %p116
    %p123 = scmp.eq.s32.totalorder %s9, 1
    %p124 = por %p122, %p123
    %p125 = scmp.ne.s32.totalorder %s117, %s120
    %p126 = scmp.eq.s32.totalorder %s9, 0
    %p127 = por %p125, %p126
    %p128 = scmp.ne.s32.totalorder %s117, %s120
    %p129 = scmp.eq.s32.totalorder %s14, 1
    %p130 = por %p128, %p129
    %p131 = scmp.ne.s32.totalorder %s120, %s121
    %p132 = scmp.eq.s32.totalorder %s14, 0
    %p133 = por %p131, %p132
    %p134 = scmp.ne.s32.totalorder %s120, %s121
    %p135 = scmp.eq.s32.totalorder %s15, 1
    %p136 = por %p134, %p135
    %p138 = scmp.ne.s32.totalorder %s121, %s137
    %p139 = scmp.eq.s32.totalorder %s15, 0
    %p140 = por %p138, %p139
    %p141 = scmp.le.s32.totalorder 1, %s9
    %p142 = scmp.lt.s32.totalorder %s9, 3
    %p143 = pnand %p141, %p142
    %p144 = pneg %p143
    // Predicated region
    $region9: #{rat_mha_forward.5} parent=5 // pred_check
      _
    $region10: #{rat_mha_forward.5} parent=5 // pred_check_branch
      %146 = sbr.rel (%p143) target = $region12
    $region11: #{rat_mha_forward.5} parent=5 // pred_region
      %s147 = ssub.s32 %s9, 1
      // Predicated region
      $region13: #{rat_mha_forward.5} parent=11 // pred_check
        %p148 = pneg %p84
      $region14: #{rat_mha_forward.5} parent=11 // pred_check_branch
        %150 = sbr.rel (%p148) target = $region16
      $region15: #{rat_mha_forward.5} parent=11 // pred_region
        %s151 = smul.u32 4, %s21
        %p152 = scmp.lt.s32.totalorder %s151, 3
        %s153 = scalar_select %p152, %s151, 3
        %s154 = smul.addr %s153, 8
        %s155 = scalar_lea.vmem %s1, %s154
        %s156 = smul.u32 4, %s21
      $region16: #{rat_mha_forward.5} parent=11 // pred_fallthru
        _
      // Predicated region
      $region17: #{rat_mha_forward.5} parent=11 // pred_check
        %p157 = pneg %p105
      $region18: #{rat_mha_forward.5} parent=11 // pred_check_branch
        %159 = sbr.rel (%p157) target = $region20
      $region19: #{rat_mha_forward.5} parent=11 // pred_region
        _
      $region20: #{rat_mha_forward.5} parent=11 // pred_fallthru
        _
    $region12: #{rat_mha_forward.5} parent=5 // pred_fallthru
      _
    %p160 = scmp.lt.s32.totalorder %s9, 2
    // Predicated region
    $region21: #{rat_mha_forward.5} parent=5 // pred_check
      %p161 = pneg %p160
    $region22: #{rat_mha_forward.5} parent=5 // pred_check_branch
      %163 = sbr.rel (%p161) target = $region24
    $region23: #{rat_mha_forward.5} parent=5 // pred_region
      // Predicated region
      $region25: #{rat_mha_forward.5} parent=23 // pred_check
        %p164 = pneg %p52
      $region26: #{rat_mha_forward.5} parent=23 // pred_check_branch
        %166 = sbr.rel (%p164) target = $region28
      $region27: #{rat_mha_forward.5} parent=23 // pred_region
        %p167 = scmp.lt.s32.totalorder %s16, 1
        %s168 = scalar_select %p167, %s16, 1
        %p169 = scmp.lt.s32.totalorder %s17, 0
        %s170 = scalar_select %p169, %s17, 0
        %p171 = scmp.lt.s32.totalorder %s18, 0
        %s172 = scalar_select %p171, %s18, 0
        %s173 = sadd.s32 %s172, %s170
        %s174 = sadd.s32 %s173, %s168
        %s175 = smul.addr %s174, 8
        %s176 = scalar_lea.vmem %s0, %s175
      $region28: #{rat_mha_forward.5} parent=23 // pred_fallthru
        _
    $region24: #{rat_mha_forward.5} parent=5 // pred_fallthru
      _
    %p177 = scmp.le.s32.totalorder 1, %s9
    %p178 = scmp.lt.s32.totalorder %s9, 3
    %p179 = pnand %p177, %p178
    %p180 = pneg %p179
    // Predicated region
    $region29: #{rat_mha_forward.5} parent=5 // pred_check
      _
    $region30: #{rat_mha_forward.5} parent=5 // pred_check_branch
      %182 = sbr.rel (%p179) target = $region32
    $region31: #{rat_mha_forward.5} parent=5 // pred_region
      %s183 = ssub.s32 %s9, 1
      %p184 = scmp.lt.s32.totalorder %s19, 1
      %s185 = scalar_select %p184, %s19, 1
      %p186 = scmp.lt.s32.totalorder %s20, 0
      %s187 = scalar_select %p186, %s20, 0
      %p188 = scmp.lt.s32.totalorder %s21, 0
      %s189 = scalar_select %p188, %s21, 0
      %s190 = sadd.s32 %s189, %s187
      %s191 = sadd.s32 %s190, %s185
      %s192 = smul.addr %s191, 8
      %s193 = scalar_lea.vmem %s0, %s192
      %p194 = pneg %p58
      %p195 = pneg %p55
      %s196 = smul.u32 4, %s21
      %p197 = scmp.lt.s32.totalorder %s196, 3
      %s198 = scalar_select %p197, %s196, 3
      %s199 = smul.addr %s198, 8
      %s200 = scalar_lea.vmem %s1, %s199
      %p201 = pneg %p84
      %p202 = pneg %p81
      %p203 = pneg %p105
      %p204 = pneg %p102
      %p205 = pneg %p133
      %p206 = pneg %p130
      %p207 = scmp.lt.s32.totalorder %s19, 1
      %s208 = scalar_select %p207, %s19, 1
      %p209 = scmp.lt.s32.totalorder %s20, 0
      %s210 = scalar_select %p209, %s20, 0
      %s211 = smul.addr %s208, 4
      %s212 = sadd.s32 %s210, %s211
      %s213 = smul.addr %s212, 4
      %s214 = scalar_lea.vmem %s3, %s213
      %p215 = scmp.lt.s32.totalorder %s19, 1
      %s216 = scalar_select %p215, %s19, 1
      %p217 = scmp.lt.s32.totalorder %s20, 0
      %s218 = scalar_select %p217, %s20, 0
      %p219 = scmp.lt.s32.totalorder %s21, 0
      %s220 = scalar_select %p219, %s21, 0
      %s221 = sadd.s32 %s220, %s218
      %s222 = sadd.s32 %s221, %s216
      %s223 = smul.addr %s222, 8
      %s224 = scalar_lea.vmem %s0, %s223
      %s225 = smul.u32 4, %s21
      %p226 = scmp.lt.s32.totalorder %s225, 3
      %s227 = scalar_select %p226, %s225, 3
      %s228 = smul.addr %s227, 8
      %s229 = scalar_lea.vmem %s1, %s228
      %s230 = smul.u32 4, %s21
      %p231 = scmp.lt.s32.totalorder %s19, 1
      %s232 = scalar_select %p231, %s19, 1
      %p233 = scmp.lt.s32.totalorder %s20, 0
      %s234 = scalar_select %p233, %s20, 0
      %s235 = smul.addr %s232, 4
      %s236 = sadd.s32 %s234, %s235
      %s237 = smul.addr %s236, 4
      %s238 = scalar_lea.vmem %s3, %s237
      %p240 = scmp.eq.s32.totalorder %s21, 0
      // Predicated region
      $region33: #{rat_mha_forward.5} parent=31 // pred_check
        %p241 = pneg %p240
      $region34: #{rat_mha_forward.5} parent=31 // pred_check_branch
        %243 = sbr.rel (%p241) target = $region36
      $region35: #{rat_mha_forward.5} parent=31 // pred_region
        %vm244 = vcmask 261120
        %245 = vst.msk [vmem:[#allocation2] sm:$0xff] %vm244, 0.0
      $region36: #{rat_mha_forward.5} parent=31 // pred_fallthru
        _
      %v246 = vld [vmem:[#allocation2] sm:$0xff]
      %v247 = vld [vmem:[%s224] sm:$0xff]
      %v248 = vpack.c.bf16 %v247, %v247
      %v249 = vld [vmem:[%s229] sm:$0xff]
      %v250 = vld [vmem:[%s229 + $0x8] sm:$0xff]
      %v251 = vld [vmem:[%s229 + $0x10] sm:$0xff]
      %v252 = vld [vmem:[%s229 + $0x18] sm:$0xff]
      %v253 = vpack.c.bf16 %v250, %v249
      %v254 = vpack.c.bf16 %v252, %v251
      %vm255 = vcmask 261120
      %v257 = vsel %vm255, %v248, 0
      %259 = vmatprep.subr.bf16.mxu0 0
      %260 = vmatpush1.bf16.msra.mxu0 %v253
      %261 = vmatprep.subr.bf16.mxu0 0
      %262 = vmatpush1.bf16.msra.mxu0 %v254
      %263 = vmatprep.subr.bf16.mxu0 0
      %264 = vmatpush1.bf16.msra.mxu0 0
      %265 = vmatprep.subr.bf16.mxu0 0
      %266 = vmatpush1.bf16.msra.mxu0 0
      %267 = vmatprep.subr.bf16.mxu0 0
      %268 = vmatpush1.bf16.msra.mxu0 0
      %269 = vmatprep.subr.bf16.mxu0 0
      %270 = vmatpush1.bf16.msra.mxu0 0
      %271 = vmatprep.subr.bf16.mxu0 0
      %272 = vmatpush1.bf16.msra.mxu0 0
      %273 = vmatprep.subr.bf16.mxu0 0
      %274 = vmatpush1.bf16.msra.mxu0 0
      %275 = vmatprep.subr.bf16.mxu0 0
      %276 = vmatpush1.bf16.msra.mxu0 0
      %277 = vmatprep.subr.bf16.mxu0 0
      %278 = vmatpush1.bf16.msra.mxu0 0
      %279 = vmatprep.subr.bf16.mxu0 0
      %280 = vmatpush1.bf16.msra.mxu0 0
      %281 = vmatprep.subr.bf16.mxu0 0
      %282 = vmatpush1.bf16.msra.mxu0 0
      %283 = vmatprep.subr.bf16.mxu0 0
      %284 = vmatpush1.bf16.msra.mxu0 0
      %285 = vmatprep.subr.bf16.mxu0 0
      %286 = vmatpush1.bf16.msra.mxu0 0
      %287 = vmatprep.subr.bf16.mxu0 0
      %288 = vmatpush1.bf16.msra.mxu0 0
      %289 = vmatprep.subr.bf16.mxu0 0
      %290 = vmatpush1.bf16.msra.mxu0 0
      %291 = vmatprep.mubr.bf16.mxu0 0
      %292 = vmatmul.mubr.bf16.gmra.mrb[0].mxu0 %v257
      %v293 = vpop.f32.mrb[0].mxu0
      %v294 = vadd.f32 0.0, %v293
      %v295 = vpop.f32.mrb[0].mxu0
      %v296 = vpop.f32.mrb[0].mxu0
      %v297 = vpop.f32.mrb[0].mxu0
      %298 = vdwg.mxu0
      %v299 = vadd.f32 %v246, %v294
      %300 = vst.msk [vmem:[#allocation2] sm:$0xff] %vm255, %v299
      // Predicated region
      $region37: #{rat_mha_forward.5} parent=31 // pred_check
        %p301 = pneg %p240
      $region38: #{rat_mha_forward.5} parent=31 // pred_check_branch
        %303 = sbr.rel (%p301) target = $region40
      $region39: #{rat_mha_forward.5} parent=31 // pred_region
        %v304 = vld [vmem:[#allocation2] sm:$0xff]
        %v305 = vld [vmem:[%s2] sm:$0x1]
        %v307 = vlaneseq
        %v308 = vshrl.u32 %v307, 7
        %v309 = vsub.s32 0, %v308
        %v310 = vrot.slane %v305, %v309
        %v312 = vadd.f32 %v304, %v310
        %v313 = vpack.c.bf16 %v312, %v312
        %vm314 = vcmask 60416
        %315 = vst.msk [vmem:[%s238] sm:$0xf] %vm314, %v313
        %v317 = vunpack.c.l.b16 %v313
        %v318 = vpack.c.b16 %v317, %v317
        %319 = vrot.lane.b32.xlu0 %v318, 120
        %v320 = vpop.permute.xlu0 %319
        %s322 = scalar_lea.vmem %s238, 4
        %323 = vst.msk [vmem:[%s322] sm:$0xf] %vm314, %v320
        %324 = vrot.lane.b32.xlu0 %v318, 112
        %v325 = vpop.permute.xlu0 %324
        %s327 = scalar_lea.vmem %s238, 8
        %328 = vst.msk [vmem:[%s327] sm:$0xf] %vm314, %v325
        %329 = vrot.lane.b32.xlu0 %v318, 104
        %v330 = vpop.permute.xlu0 %329
        %s332 = scalar_lea.vmem %s238, 12
        %333 = vst.msk [vmem:[%s332] sm:$0xf] %vm314, %v330
      $region40: #{rat_mha_forward.5} parent=31 // pred_fallthru
        _
      %p334 = scmp.lt.s32.totalorder %s19, 1
      %s335 = scalar_select %p334, %s19, 1
      %p336 = scmp.lt.s32.totalorder %s20, 0
      %s337 = scalar_select %p336, %s20, 0
      %s338 = smul.addr %s335, 4
      %s339 = sadd.s32 %s337, %s338
      %s340 = smul.addr %s339, 4
      %s341 = scalar_lea.vmem %s3, %s340
      // Predicated region
      $region41: #{rat_mha_forward.5} parent=31 // pred_check
        %p342 = pneg %p130
      $region42: #{rat_mha_forward.5} parent=31 // pred_check_branch
        %344 = sbr.rel (%p342) target = $region44
      $region43: #{rat_mha_forward.5} parent=31 // pred_region
        _
      $region44: #{rat_mha_forward.5} parent=31 // pred_fallthru
        _
    $region32: #{rat_mha_forward.5} parent=5 // pred_fallthru
      _
    %p345 = scmp.le.s32.totalorder 2, %s9
    // Predicated region
    $region45: #{rat_mha_forward.5} parent=5 // pred_check
      %p346 = pneg %p345
    $region46: #{rat_mha_forward.5} parent=5 // pred_check_branch
      %348 = sbr.rel (%p346) target = $region48
    $region47: #{rat_mha_forward.5} parent=5 // pred_region
      %s349 = ssub.s32 %s9, 2
      // Predicated region
      $region49: #{rat_mha_forward.5} parent=47 // pred_check
        %p350 = pneg %p136
      $region50: #{rat_mha_forward.5} parent=47 // pred_check_branch
        %352 = sbr.rel (%p350) target = $region52
      $region51: #{rat_mha_forward.5} parent=47 // pred_region
        %p353 = scmp.lt.s32.totalorder %s22, 1
        %s354 = scalar_select %p353, %s22, 1
        %p355 = scmp.lt.s32.totalorder %s23, 0
        %s356 = scalar_select %p355, %s23, 0
        %s357 = smul.addr %s354, 4
        %s358 = sadd.s32 %s356, %s357
        %s359 = smul.addr %s358, 4
        %s360 = scalar_lea.vmem %s3, %s359
      $region52: #{rat_mha_forward.5} parent=47 // pred_fallthru
        _
    $region48: #{rat_mha_forward.5} parent=5 // pred_fallthru
      _
  $region6: #{rat_mha_forward.5} parent=0 // loop_footer
    %s13 = sadd.s32 1, %s9
  $region7: #{rat_mha_forward.5} parent=0 // loop_footer_branch
    %8 = sbr.rel target = $region3
  $region8: #{rat_mha_forward.5} parent=0 // loop_exit
    _

// kernel: rat_mha_forward.9
$region0: #{rat_mha_forward.9}
  #allocation0 [shape = 'u32[]', space=smem, size = 0x4, offset = 0x4, fixed_abs, tag = 'smem constant byte address 0x4 - core index']
  #allocation1 [shape = 'u32[144,128]{1,0:T(1,128)}', space=vmem, size = 0x12000, scoped, tag = 'internal scratch']
  #allocation2 [shape = 'f32[8,32]{1,0:T(8,128)}', space=vmem, size = 0x1000, scoped, tag = 'scratch operand']
  %s0 = inlined_call_operand.vmem [shape: bf16[2,8,32], index: 0, kind: input, shape index: {}]
  %s1 = inlined_call_operand.vmem [shape: f32[32,32], index: 1, kind: input, shape index: {}]
  %s2 = inlined_call_operand.vmem [shape: f32[1,32], index: 2, kind: input, shape index: {}]
  %s3 = inlined_call_operand.hbm [shape: f32[2,8,32], index: 3, kind: output, shape index: {}]
  %s4 = sld [smem:[#allocation0]]
  $region53: #{rat_mha_forward.9} parent=0
    _
  %s6 = ssub.s32 1, %s4
  %s7 = scalar_select 0, %s6, %s4
  $region1: #{rat_mha_forward.9} parent=0
    #allocation3 [shape = 'u8[8192]{0}', space=vmem, size = 0x2000, scoped, tag = 'output window, operand 0']
    #allocation4 [shape = 's32[2]{0}', space=sflag, size = 0x8, scoped, tag = 'scoped memory for rat_mha_forward.9']
    %8 = vsyncpa [#allocation4], 0
    %s9 = scalar_lea.sflag [#allocation4], 1
    %10 = vsyncpa %s9, 0
    loop: start=0, step=1, limit=4
    $region2: #{rat_mha_forward.9} parent=1 // loop_pre_header
      _
    $region3: #{rat_mha_forward.9} parent=1 // loop_header
      %s12 = sphi 0, %s16
      %p13 = scmp.ge.s32.totalorder %s12, 4
      %s19 = sphi 0, %s38
      %s20 = sphi 0, %s34
      %s21 = sphi 0, %s30
      %s22 = sphi 0, %s19
      %s23 = sphi 0, %s20
      %s24 = sphi 0, %s21
      %s25 = sphi 0, %s22
      %s26 = sphi 0, %s23
      %s27 = sphi 0, %s24
      %s45 = sphi 0, %s47
      %s48 = sphi 0, %s45
      %s49 = sphi 0, %s48
      %s65 = sphi 0, %s49
      %s71 = sphi 0, %s73
      %s74 = sphi 0, %s71
      %s75 = sphi 0, %s74
      %s91 = sphi 0, %s75
      %s95 = sphi 0, %s95
      %s97 = sphi 0, %s95
      %s98 = sphi 0, %s97
      %s112 = sphi 0, %s98
      %s120 = sphi 0, %s122
      %s123 = sphi 0, %s120
      %s124 = sphi 0, %s123
      %s140 = sphi 0, %s124
    $region4: #{rat_mha_forward.9} parent=1 // loop_header_branch
      %15 = sbr.rel (%p13) target = $region8
    $region5: #{rat_mha_forward.9} parent=1 // loop_body
      %s17 = ssub.s32 %s12, 1
      %s18 = ssub.s32 %s12, 2
      %s28 = sadd.s32 1, %s21
      %p29 = scmp.ge.s32.totalorder %s28, 1
      %s30 = scalar_select %p29, 0, %s28
      %s31 = sadd.s32 1, %s20
      %s32 = scalar_select %p29, %s31, %s20
      %p33 = scmp.ge.s32.totalorder %s32, 1
      %s34 = scalar_select %p33, 0, %s32
      %s35 = sadd.s32 1, %s19
      %s36 = scalar_select %p33, %s35, %s19
      %p37 = scmp.ge.s32.totalorder %s36, 2
      %s38 = scalar_select %p37, 0, %s36
      %s39 = ssub.s32 %s19, %s38
      %s40 = ssub.s32 %s20, %s34
      %s41 = sor.u32 %s39, %s40
      %s42 = ssub.s32 %s21, %s30
      %s43 = sor.u32 %s41, %s42
      %p44 = scmp.eq.s32.totalorder %s43, 0
      %s46 = sadd.s32 %s45, 1
      %s47 = scalar_select %p44, %s45, %s46
      %p50 = pneg %p44
      %p51 = scmp.eq.s32.totalorder %s12, 1
      %p52 = por %p50, %p51
      %p53 = scmp.ne.s32.totalorder %s45, %s48
      %p54 = scmp.eq.s32.totalorder %s12, 0
      %p55 = por %p53, %p54
      %p56 = scmp.ne.s32.totalorder %s45, %s48
      %p57 = scmp.eq.s32.totalorder %s17, 1
      %p58 = por %p56, %p57
      %p59 = scmp.ne.s32.totalorder %s48, %s49
      %p60 = scmp.eq.s32.totalorder %s17, 0
      %p61 = por %p59, %p60
      %p62 = scmp.ne.s32.totalorder %s48, %s49
      %p63 = scmp.eq.s32.totalorder %s18, 1
      %p64 = por %p62, %p63
      %p66 = scmp.ne.s32.totalorder %s49, %s65
      %p67 = scmp.eq.s32.totalorder %s18, 0
      %p68 = por %p66, %p67
      %s69 = ssub.s32 %s21, %s30
      %p70 = scmp.eq.s32.totalorder %s69, 0
      %s72 = sadd.s32 %s71, 1
      %s73 = scalar_select %p70, %s71, %s72
      %p76 = pneg %p70
      %p77 = scmp.eq.s32.totalorder %s12, 1
      %p78 = por %p76, %p77
      %p79 = scmp.ne.s32.totalorder %s71, %s74
      %p80 = scmp.eq.s32.totalorder %s12, 0
      %p81 = por %p79, %p80
      %p82 = scmp.ne.s32.totalorder %s71, %s74
      %p83 = scmp.eq.s32.totalorder %s17, 1
      %p84 = por %p82, %p83
      %p85 = scmp.ne.s32.totalorder %s74, %s75
      %p86 = scmp.eq.s32.totalorder %s17, 0
      %p87 = por %p85, %p86
      %p88 = scmp.ne.s32.totalorder %s74, %s75
      %p89 = scmp.eq.s32.totalorder %s18, 1
      %p90 = por %p88, %p89
      %p92 = scmp.ne.s32.totalorder %s75, %s91
      %p93 = scmp.eq.s32.totalorder %s18, 0
      %p94 = por %p92, %p93
      %s96 = sadd.s32 %s95, 1
      %p99 = scmp.eq.s32.totalorder %s12, 1
      %p100 = scmp.ne.s32.totalorder %s95, %s97
      %p101 = scmp.eq.s32.totalorder %s12, 0
      %p102 = por %p100, %p101
      %p103 = scmp.ne.s32.totalorder %s95, %s97
      %p104 = scmp.eq.s32.totalorder %s17, 1
      %p105 = por %p103, %p104
      %p106 = scmp.ne.s32.totalorder %s97, %s98
      %p107 = scmp.eq.s32.totalorder %s17, 0
      %p108 = por %p106, %p107
      %p109 = scmp.ne.s32.totalorder %s97, %s98
      %p110 = scmp.eq.s32.totalorder %s18, 1
      %p111 = por %p109, %p110
      %p113 = scmp.ne.s32.totalorder %s98, %s112
      %p114 = scmp.eq.s32.totalorder %s18, 0
      %p115 = por %p113, %p114
      %s116 = ssub.s32 %s19, %s38
      %s117 = ssub.s32 %s20, %s34
      %s118 = sor.u32 %s116, %s117
      %p119 = scmp.eq.s32.totalorder %s118, 0
      %s121 = sadd.s32 %s120, 1
      %s122 = scalar_select %p119, %s120, %s121
      %p125 = pneg %p119
      %p126 = scmp.eq.s32.totalorder %s12, 1
      %p127 = por %p125, %p126
      %p128 = scmp.ne.s32.totalorder %s120, %s123
      %p129 = scmp.eq.s32.totalorder %s12, 0
      %p130 = por %p128, %p129
      %p131 = scmp.ne.s32.totalorder %s120, %s123
      %p132 = scmp.eq.s32.totalorder %s17, 1
      %p133 = por %p131, %p132
      %p134 = scmp.ne.s32.totalorder %s123, %s124
      %p135 = scmp.eq.s32.totalorder %s17, 0
      %p136 = por %p134, %p135
      %p137 = scmp.ne.s32.totalorder %s123, %s124
      %p138 = scmp.eq.s32.totalorder %s18, 1
      %p139 = por %p137, %p138
      %p141 = scmp.ne.s32.totalorder %s124, %s140
      %p142 = scmp.eq.s32.totalorder %s18, 0
      %p143 = por %p141, %p142
      %p144 = scmp.le.s32.totalorder 1, %s12
      %p145 = scmp.lt.s32.totalorder %s12, 3
      %p146 = pnand %p144, %p145
      %p147 = pneg %p146
      // Predicated region
      $region9: #{rat_mha_forward.9} parent=5 // pred_check
        _
      $region10: #{rat_mha_forward.9} parent=5 // pred_check_branch
        %149 = sbr.rel (%p146) target = $region12
      $region11: #{rat_mha_forward.9} parent=5 // pred_region
        %s150 = ssub.s32 %s12, 1
        // Predicated region
        $region13: #{rat_mha_forward.9} parent=11 // pred_check
          %p151 = pneg %p87
        $region14: #{rat_mha_forward.9} parent=11 // pred_check_branch
          %153 = sbr.rel (%p151) target = $region16
        $region15: #{rat_mha_forward.9} parent=11 // pred_region
          %s154 = smul.u32 4, %s24
          %p155 = scmp.lt.s32.totalorder %s154, 3
          %s156 = scalar_select %p155, %s154, 3
          %s157 = smul.addr %s156, 8
          %s158 = scalar_lea.vmem %s1, %s157
          %s159 = smul.u32 4, %s24
        $region16: #{rat_mha_forward.9} parent=11 // pred_fallthru
          _
        // Predicated region
        $region17: #{rat_mha_forward.9} parent=11 // pred_check
          %p160 = pneg %p108
        $region18: #{rat_mha_forward.9} parent=11 // pred_check_branch
          %162 = sbr.rel (%p160) target = $region20
        $region19: #{rat_mha_forward.9} parent=11 // pred_region
          _
        $region20: #{rat_mha_forward.9} parent=11 // pred_fallthru
          _
      $region12: #{rat_mha_forward.9} parent=5 // pred_fallthru
        _
      %p163 = scmp.lt.s32.totalorder %s12, 2
      // Predicated region
      $region21: #{rat_mha_forward.9} parent=5 // pred_check
        %p164 = pneg %p163
      $region22: #{rat_mha_forward.9} parent=5 // pred_check_branch
        %166 = sbr.rel (%p164) target = $region24
      $region23: #{rat_mha_forward.9} parent=5 // pred_region
        // Predicated region
        $region25: #{rat_mha_forward.9} parent=23 // pred_check
          %p167 = pneg %p55
        $region26: #{rat_mha_forward.9} parent=23 // pred_check_branch
          %169 = sbr.rel (%p167) target = $region28
        $region27: #{rat_mha_forward.9} parent=23 // pred_region
          %p170 = scmp.lt.s32.totalorder %s19, 1
          %s171 = scalar_select %p170, %s19, 1
          %p172 = scmp.lt.s32.totalorder %s20, 0
          %s173 = scalar_select %p172, %s20, 0
          %p174 = scmp.lt.s32.totalorder %s21, 0
          %s175 = scalar_select %p174, %s21, 0
          %s176 = sadd.s32 %s175, %s173
          %s177 = sadd.s32 %s176, %s171
          %s178 = smul.addr %s177, 4
          %s179 = scalar_lea.vmem %s0, %s178
        $region28: #{rat_mha_forward.9} parent=23 // pred_fallthru
          _
      $region24: #{rat_mha_forward.9} parent=5 // pred_fallthru
        _
      %p180 = scmp.le.s32.totalorder 1, %s12
      %p181 = scmp.lt.s32.totalorder %s12, 3
      %p182 = pnand %p180, %p181
      %p183 = pneg %p182
      // Predicated region
      $region29: #{rat_mha_forward.9} parent=5 // pred_check
        _
      $region30: #{rat_mha_forward.9} parent=5 // pred_check_branch
        %185 = sbr.rel (%p182) target = $region32
      $region31: #{rat_mha_forward.9} parent=5 // pred_region
        %s186 = ssub.s32 %s12, 1
        %p187 = scmp.lt.s32.totalorder %s22, 1
        %s188 = scalar_select %p187, %s22, 1
        %p189 = scmp.lt.s32.totalorder %s23, 0
        %s190 = scalar_select %p189, %s23, 0
        %p191 = scmp.lt.s32.totalorder %s24, 0
        %s192 = scalar_select %p191, %s24, 0
        %s193 = sadd.s32 %s192, %s190
        %s194 = sadd.s32 %s193, %s188
        %s195 = smul.addr %s194, 4
        %s196 = scalar_lea.vmem %s0, %s195
        %p197 = pneg %p61
        %p198 = pneg %p58
        %s199 = smul.u32 4, %s24
        %p200 = scmp.lt.s32.totalorder %s199, 3
        %s201 = scalar_select %p200, %s199, 3
        %s202 = smul.addr %s201, 8
        %s203 = scalar_lea.vmem %s1, %s202
        %p204 = pneg %p87
        %p205 = pneg %p84
        %p206 = pneg %p108
        %p207 = pneg %p105
        %p208 = pneg %p136
        %p209 = pneg %p133
        %s210 = sand.u32 %s123, 1
        %s211 = scalar_lea.sflag [#allocation4], %s210
        %s212 = sand.u32 %s123, 1
        %s213 = smul.addr %s212, 8
        %s214 = scalar_lea.vmem [#allocation3], %s213
        %p215 = scmp.lt.s32.totalorder %s22, 1
        %s216 = scalar_select %p215, %s22, 1
        %p217 = scmp.lt.s32.totalorder %s23, 0
        %s218 = scalar_select %p217, %s23, 0
        %p219 = scmp.lt.s32.totalorder %s24, 0
        %s220 = scalar_select %p219, %s24, 0
        %s221 = sadd.s32 %s220, %s218
        %s222 = sadd.s32 %s221, %s216
        %s223 = smul.addr %s222, 4
        %s224 = scalar_lea.vmem %s0, %s223
        %s225 = smul.u32 4, %s24
        %p226 = scmp.lt.s32.totalorder %s225, 3
        %s227 = scalar_select %p226, %s225, 3
        %s228 = smul.addr %s227, 8
        %s229 = scalar_lea.vmem %s1, %s228
        %s230 = smul.u32 4, %s24
        %p232 = scmp.eq.s32.totalorder %s24, 0
        // Predicated region
        $region33: #{rat_mha_forward.9} parent=31 // pred_check
          %p233 = pneg %p232
        $region34: #{rat_mha_forward.9} parent=31 // pred_check_branch
          %235 = sbr.rel (%p233) target = $region36
        $region35: #{rat_mha_forward.9} parent=31 // pred_region
          %vm236 = vcmask 261120
          %237 = vst.msk [vmem:[#allocation2] sm:$0xff] %vm236, 0.0
        $region36: #{rat_mha_forward.9} parent=31 // pred_fallthru
          _
        %v238 = vld [vmem:[#allocation2] sm:$0xff]
        %v239 = vld [vmem:[%s224] sm:$0xf]
        %v240 = vld [vmem:[%s229] sm:$0xff]
        %v241 = vld [vmem:[%s229 + $0x8] sm:$0xff]
        %v242 = vld [vmem:[%s229 + $0x10] sm:$0xff]
        %v243 = vld [vmem:[%s229 + $0x18] sm:$0xff]
        %v244 = vpack.c.bf16 %v241, %v240
        %v245 = vpack.c.bf16 %v243, %v242
        %vm246 = vcmask 261120
        %v248 = vsel %vm246, %v239, 0
        %250 = vmatprep.subr.bf16.mxu0 0
        %251 = vmatpush1.bf16.msra.mxu0 %v244
        %252 = vmatprep.subr.bf16.mxu0 0
        %253 = vmatpush1.bf16.msra.mxu0 %v245
        %254 = vmatprep.subr.bf16.mxu0 0
        %255 = vmatpush1.bf16.msra.mxu0 0
        %256 = vmatprep.subr.bf16.mxu0 0
        %257 = vmatpush1.bf16.msra.mxu0 0
        %258 = vmatprep.subr.bf16.mxu0 0
        %259 = vmatpush1.bf16.msra.mxu0 0
        %260 = vmatprep.subr.bf16.mxu0 0
        %261 = vmatpush1.bf16.msra.mxu0 0
        %262 = vmatprep.subr.bf16.mxu0 0
        %263 = vmatpush1.bf16.msra.mxu0 0
        %264 = vmatprep.subr.bf16.mxu0 0
        %265 = vmatpush1.bf16.msra.mxu0 0
        %266 = vmatprep.subr.bf16.mxu0 0
        %267 = vmatpush1.bf16.msra.mxu0 0
        %268 = vmatprep.subr.bf16.mxu0 0
        %269 = vmatpush1.bf16.msra.mxu0 0
        %270 = vmatprep.subr.bf16.mxu0 0
        %271 = vmatpush1.bf16.msra.mxu0 0
        %272 = vmatprep.subr.bf16.mxu0 0
        %273 = vmatpush1.bf16.msra.mxu0 0
        %274 = vmatprep.subr.bf16.mxu0 0
        %275 = vmatpush1.bf16.msra.mxu0 0
        %276 = vmatprep.subr.bf16.mxu0 0
        %277 = vmatpush1.bf16.msra.mxu0 0
        %278 = vmatprep.subr.bf16.mxu0 0
        %279 = vmatpush1.bf16.msra.mxu0 0
        %280 = vmatprep.subr.bf16.mxu0 0
        %281 = vmatpush1.bf16.msra.mxu0 0
        %282 = vmatprep.mubr.bf16.mxu0 0
        %283 = vmatmul.mubr.bf16.gmra.mrb[0].mxu0 %v248
        %v284 = vpop.f32.mrb[0].mxu0
        %v285 = vadd.f32 0.0, %v284
        %v286 = vpop.f32.mrb[0].mxu0
        %v287 = vpop.f32.mrb[0].mxu0
        %v288 = vpop.f32.mrb[0].mxu0
        %289 = vdwg.mxu0
        %v290 = vadd.f32 %v238, %v285
        %291 = vst.msk [vmem:[#allocation2] sm:$0xff] %vm246, %v290
        // Predicated region
        $region37: #{rat_mha_forward.9} parent=31 // pred_check
          %p292 = pneg %p232
        $region38: #{rat_mha_forward.9} parent=31 // pred_check_branch
          %294 = sbr.rel (%p292) target = $region40
        $region39: #{rat_mha_forward.9} parent=31 // pred_region
          %v295 = vld [vmem:[#allocation2] sm:$0xff]
          %v296 = vld [vmem:[%s2] sm:$0x1]
          %v298 = vlaneseq
          %v299 = vshrl.u32 %v298, 7
          %v300 = vsub.s32 0, %v299
          %v301 = vrot.slane %v296, %v300
          %v303 = vadd.f32 %v295, %v301
          %304 = vst.msk [vmem:[%s214] sm:$0xff] %vm246, %v303
        $region40: #{rat_mha_forward.9} parent=31 // pred_fallthru
          _
        %s305 = sand.u32 %s123, 1
        %s306 = scalar_lea.sflag [#allocation4], %s305
        %s307 = sand.u32 %s123, 1
        %s308 = smul.addr %s307, 8
        %s309 = scalar_lea.vmem [#allocation3], %s308
        // Predicated region
        $region41: #{rat_mha_forward.9} parent=31 // pred_check
          %p310 = pneg %p133
        $region42: #{rat_mha_forward.9} parent=31 // pred_check_branch
          %312 = sbr.rel (%p310) target = $region44
        $region43: #{rat_mha_forward.9} parent=31 // pred_region
          %s314 = ssub.s32 128, 128
          %315 = vsyncadd %s306, %s314
          %s316 = sadd.s32 %s23, %s22
          %s317 = smul.addr %s316, 128
          %s318 = scalar_lea.hbm %s3, %s317
          %s320 = sshll.u32 %s309, 4
          %s321 = int_to_ptr.vmem [resolvable:$true] %s320
          %323 = dma.vmem_to_hbm [thread:$0]  %s321, 128, %s318, %s306
        $region44: #{rat_mha_forward.9} parent=31 // pred_fallthru
          _
      $region32: #{rat_mha_forward.9} parent=5 // pred_fallthru
        _
      %p324 = scmp.le.s32.totalorder 2, %s12
      // Predicated region
      $region45: #{rat_mha_forward.9} parent=5 // pred_check
        %p325 = pneg %p324
      $region46: #{rat_mha_forward.9} parent=5 // pred_check_branch
        %327 = sbr.rel (%p325) target = $region48
      $region47: #{rat_mha_forward.9} parent=5 // pred_region
        %s328 = ssub.s32 %s12, 2
        // Predicated region
        $region49: #{rat_mha_forward.9} parent=47 // pred_check
          %p329 = pneg %p139
        $region50: #{rat_mha_forward.9} parent=47 // pred_check_branch
          %331 = sbr.rel (%p329) target = $region52
        $region51: #{rat_mha_forward.9} parent=47 // pred_region
          %s332 = sand.u32 %s124, 1
          %s333 = scalar_lea.sflag [#allocation4], %s332
          %s334 = sand.u32 %s124, 1
          %s335 = smul.addr %s334, 8
          %s336 = scalar_lea.vmem [#allocation3], %s335
          %337 = dma.done %s333, 128
        $region52: #{rat_mha_forward.9} parent=47 // pred_fallthru
          _
      $region48: #{rat_mha_forward.9} parent=5 // pred_fallthru
        _
    $region6: #{rat_mha_forward.9} parent=1 // loop_footer
      %s16 = sadd.s32 1, %s12
    $region7: #{rat_mha_forward.9} parent=1 // loop_footer_branch
      %11 = sbr.rel target = $region3
    $region8: #{rat_mha_forward.9} parent=1 // loop_exit
      _
    %338 = vsyncpa [#allocation4], 1
    %s339 = scalar_lea.sflag [#allocation4], 1
    %340 = vsyncpa %s339, 1

// kernel: rat_mha_forward.8
$region0: #{rat_mha_forward.8}
  #allocation0 [shape = 'u32[]', space=smem, size = 0x4, offset = 0x4, fixed_abs, tag = 'smem constant byte address 0x4 - core index']
  #allocation1 [shape = 'u32[144,128]{1,0:T(1,128)}', space=vmem, size = 0x12000, scoped, tag = 'internal scratch']
  #allocation2 [shape = 'f32[4,8,1]{2,1,0:T(8,128)}', space=vmem, size = 0x4000, scoped, tag = 'scratch operand']
  #allocation3 [shape = 'f32[4,8,1]{2,1,0:T(8,128)}', space=vmem, size = 0x4000, scoped, tag = 'scratch operand']
  #allocation4 [shape = 'f32[4,8,8]{2,1,0:T(8,128)}', space=vmem, size = 0x4000, scoped, tag = 'scratch operand']
  #allocation5 [shape = 'bf16[8,4,8]{2,1,0:T(4,128)(2,1)}', space=vmem, size = 0x2000, scoped, tag = 'scratch operand']
  %s0 = inlined_call_operand.vmem [shape: bf16[2,4,8,8], index: 0, kind: input, shape index: {}]
  %s1 = inlined_call_operand.vmem [shape: bf16[2,4,8,8], index: 1, kind: input, shape index: {}]
  %s2 = inlined_call_operand.vmem [shape: bf16[2,4,8,8], index: 2, kind: input, shape index: {}]
  %s3 = inlined_call_operand.vmem [shape: bf16[2,8,8,8], index: 3, kind: input, shape index: {}]
  %s4 = inlined_call_operand.vmem [shape: f32[4,8], index: 4, kind: input, shape index: {}]
  %s5 = inlined_call_operand.vmem [shape: f32[4,8], index: 5, kind: input, shape index: {}]
  %s6 = inlined_call_operand.vmem [shape: bf16[2,8,32], index: 6, kind: output, shape index: {}]
  %s7 = sld [smem:[#allocation0]]
  $region65: #{rat_mha_forward.8} parent=0
    _
  %s9 = ssub.s32 1, %s7
  %s10 = scalar_select 0, %s9, %s7
  loop: start=0, step=1, limit=4
  $region2: #{rat_mha_forward.8} parent=0 // loop_pre_header
    _
  $region3: #{rat_mha_forward.8} parent=0 // loop_header
    %s12 = sphi 0, %s16
    %p13 = scmp.ge.s32.totalorder %s12, 4
    %s19 = sphi 0, %s38
    %s20 = sphi 0, %s34
    %s21 = sphi 0, %s30
    %s22 = sphi 0, %s19
    %s23 = sphi 0, %s20
    %s24 = sphi 0, %s21
    %s25 = sphi 0, %s22
    %s26 = sphi 0, %s23
    %s27 = sphi 0, %s24
    %s43 = sphi 0, %s45
    %s46 = sphi 0, %s43
    %s47 = sphi 0, %s46
    %s63 = sphi 0, %s47
    %s71 = sphi 0, %s73
    %s74 = sphi 0, %s71
    %s75 = sphi 0, %s74
    %s91 = sphi 0, %s75
    %s99 = sphi 0, %s101
    %s102 = sphi 0, %s99
    %s103 = sphi 0, %s102
    %s119 = sphi 0, %s103
    %s129 = sphi 0, %s131
    %s132 = sphi 0, %s129
    %s133 = sphi 0, %s132
    %s149 = sphi 0, %s133
    %s153 = sphi 0, %s153
    %s155 = sphi 0, %s153
    %s156 = sphi 0, %s155
    %s170 = sphi 0, %s156
    %s174 = sphi 0, %s174
    %s176 = sphi 0, %s174
    %s177 = sphi 0, %s176
    %s191 = sphi 0, %s177
    %s199 = sphi 0, %s201
    %s202 = sphi 0, %s199
    %s203 = sphi 0, %s202
    %s219 = sphi 0, %s203
  $region4: #{rat_mha_forward.8} parent=0 // loop_header_branch
    %15 = sbr.rel (%p13) target = $region8
  $region5: #{rat_mha_forward.8} parent=0 // loop_body
    %s17 = ssub.s32 %s12, 1
    %s18 = ssub.s32 %s12, 2
    %s28 = sadd.s32 1, %s21
    %p29 = scmp.ge.s32.totalorder %s28, 1
    %s30 = scalar_select %p29, 0, %s28
    %s31 = sadd.s32 1, %s20
    %s32 = scalar_select %p29, %s31, %s20
    %p33 = scmp.ge.s32.totalorder %s32, 1
    %s34 = scalar_select %p33, 0, %s32
    %s35 = sadd.s32 1, %s19
    %s36 = scalar_select %p33, %s35, %s19
    %p37 = scmp.ge.s32.totalorder %s36, 2
    %s38 = scalar_select %p37, 0, %s36
    %s39 = ssub.s32 %s19, %s38
    %s40 = ssub.s32 %s20, %s34
    %s41 = sor.u32 %s39, %s40
    %p42 = scmp.eq.s32.totalorder %s41, 0
    %s44 = sadd.s32 %s43, 1
    %s45 = scalar_select %p42, %s43, %s44
    %p48 = pneg %p42
    %p49 = scmp.eq.s32.totalorder %s12, 1
    %p50 = por %p48, %p49
    %p51 = scmp.ne.s32.totalorder %s43, %s46
    %p52 = scmp.eq.s32.totalorder %s12, 0
    %p53 = por %p51, %p52
    %p54 = scmp.ne.s32.totalorder %s43, %s46
    %p55 = scmp.eq.s32.totalorder %s17, 1
    %p56 = por %p54, %p55
    %p57 = scmp.ne.s32.totalorder %s46, %s47
    %p58 = scmp.eq.s32.totalorder %s17, 0
    %p59 = por %p57, %p58
    %p60 = scmp.ne.s32.totalorder %s46, %s47
    %p61 = scmp.eq.s32.totalorder %s18, 1
    %p62 = por %p60, %p61
    %p64 = scmp.ne.s32.totalorder %s47, %s63
    %p65 = scmp.eq.s32.totalorder %s18, 0
    %p66 = por %p64, %p65
    %s67 = ssub.s32 %s19, %s38
    %s68 = ssub.s32 %s21, %s30
    %s69 = sor.u32 %s67, %s68
    %p70 = scmp.eq.s32.totalorder %s69, 0
    %s72 = sadd.s32 %s71, 1
    %s73 = scalar_select %p70, %s71, %s72
    %p76 = pneg %p70
    %p77 = scmp.eq.s32.totalorder %s12, 1
    %p78 = por %p76, %p77
    %p79 = scmp.ne.s32.totalorder %s71, %s74
    %p80 = scmp.eq.s32.totalorder %s12, 0
    %p81 = por %p79, %p80
    %p82 = scmp.ne.s32.totalorder %s71, %s74
    %p83 = scmp.eq.s32.totalorder %s17, 1
    %p84 = por %p82, %p83
    %p85 = scmp.ne.s32.totalorder %s74, %s75
    %p86 = scmp.eq.s32.totalorder %s17, 0
    %p87 = por %p85, %p86
    %p88 = scmp.ne.s32.totalorder %s74, %s75
    %p89 = scmp.eq.s32.totalorder %s18, 1
    %p90 = por %p88, %p89
    %p92 = scmp.ne.s32.totalorder %s75, %s91
    %p93 = scmp.eq.s32.totalorder %s18, 0
    %p94 = por %p92, %p93
    %s95 = ssub.s32 %s19, %s38
    %s96 = ssub.s32 %s21, %s30
    %s97 = sor.u32 %s95, %s96
    %p98 = scmp.eq.s32.totalorder %s97, 0
    %s100 = sadd.s32 %s99, 1
    %s101 = scalar_select %p98, %s99, %s100
    %p104 = pneg %p98
    %p105 = scmp.eq.s32.totalorder %s12, 1
    %p106 = por %p104, %p105
    %p107 = scmp.ne.s32.totalorder %s99, %s102
    %p108 = scmp.eq.s32.totalorder %s12, 0
    %p109 = por %p107, %p108
    %p110 = scmp.ne.s32.totalorder %s99, %s102
    %p111 = scmp.eq.s32.totalorder %s17, 1
    %p112 = por %p110, %p111
    %p113 = scmp.ne.s32.totalorder %s102, %s103
    %p114 = scmp.eq.s32.totalorder %s17, 0
    %p115 = por %p113, %p114
    %p116 = scmp.ne.s32.totalorder %s102, %s103
    %p117 = scmp.eq.s32.totalorder %s18, 1
    %p118 = por %p116, %p117
    %p120 = scmp.ne.s32.totalorder %s103, %s119
    %p121 = scmp.eq.s32.totalorder %s18, 0
    %p122 = por %p120, %p121
    %s123 = ssub.s32 %s19, %s38
    %s124 = ssub.s32 %s20, %s34
    %s125 = sor.u32 %s123, %s124
    %s126 = ssub.s32 %s21, %s30
    %s127 = sor.u32 %s125, %s126
    %p128 = scmp.eq.s32.totalorder %s127, 0
    %s130 = sadd.s32 %s129, 1
    %s131 = scalar_select %p128, %s129, %s130
    %p134 = pneg %p128
    %p135 = scmp.eq.s32.totalorder %s12, 1
    %p136 = por %p134, %p135
    %p137 = scmp.ne.s32.totalorder %s129, %s132
    %p138 = scmp.eq.s32.totalorder %s12, 0
    %p139 = por %p137, %p138
    %p140 = scmp.ne.s32.totalorder %s129, %s132
    %p141 = scmp.eq.s32.totalorder %s17, 1
    %p142 = por %p140, %p141
    %p143 = scmp.ne.s32.totalorder %s132, %s133
    %p144 = scmp.eq.s32.totalorder %s17, 0
    %p145 = por %p143, %p144
    %p146 = scmp.ne.s32.totalorder %s132, %s133
    %p147 = scmp.eq.s32.totalorder %s18, 1
    %p148 = por %p146, %p147
    %p150 = scmp.ne.s32.totalorder %s133, %s149
    %p151 = scmp.eq.s32.totalorder %s18, 0
    %p152 = por %p150, %p151
    %s154 = sadd.s32 %s153, 1
    %p157 = scmp.eq.s32.totalorder %s12, 1
    %p158 = scmp.ne.s32.totalorder %s153, %s155
    %p159 = scmp.eq.s32.totalorder %s12, 0
    %p160 = por %p158, %p159
    %p161 = scmp.ne.s32.totalorder %s153, %s155
    %p162 = scmp.eq.s32.totalorder %s17, 1
    %p163 = por %p161, %p162
    %p164 = scmp.ne.s32.totalorder %s155, %s156
    %p165 = scmp.eq.s32.totalorder %s17, 0
    %p166 = por %p164, %p165
    %p167 = scmp.ne.s32.totalorder %s155, %s156
    %p168 = scmp.eq.s32.totalorder %s18, 1
    %p169 = por %p167, %p168
    %p171 = scmp.ne.s32.totalorder %s156, %s170
    %p172 = scmp.eq.s32.totalorder %s18, 0
    %p173 = por %p171, %p172
    %s175 = sadd.s32 %s174, 1
    %p178 = scmp.eq.s32.totalorder %s12, 1
    %p179 = scmp.ne.s32.totalorder %s174, %s176
    %p180 = scmp.eq.s32.totalorder %s12, 0
    %p181 = por %p179, %p180
    %p182 = scmp.ne.s32.totalorder %s174, %s176
    %p183 = scmp.eq.s32.totalorder %s17, 1
    %p184 = por %p182, %p183
    %p185 = scmp.ne.s32.totalorder %s176, %s177
    %p186 = scmp.eq.s32.totalorder %s17, 0
    %p187 = por %p185, %p186
    %p188 = scmp.ne.s32.totalorder %s176, %s177
    %p189 = scmp.eq.s32.totalorder %s18, 1
    %p190 = por %p188, %p189
    %p192 = scmp.ne.s32.totalorder %s177, %s191
    %p193 = scmp.eq.s32.totalorder %s18, 0
    %p194 = por %p192, %p193
    %s195 = ssub.s32 %s19, %s38
    %s196 = ssub.s32 %s20, %s34
    %s197 = sor.u32 %s195, %s196
    %p198 = scmp.eq.s32.totalorder %s197, 0
    %s200 = sadd.s32 %s199, 1
    %s201 = scalar_select %p198, %s199, %s200
    %p204 = pneg %p198
    %p205 = scmp.eq.s32.totalorder %s12, 1
    %p206 = por %p204, %p205
    %p207 = scmp.ne.s32.totalorder %s199, %s202
    %p208 = scmp.eq.s32.totalorder %s12, 0
    %p209 = por %p207, %p208
    %p210 = scmp.ne.s32.totalorder %s199, %s202
    %p211 = scmp.eq.s32.totalorder %s17, 1
    %p212 = por %p210, %p211
    %p213 = scmp.ne.s32.totalorder %s202, %s203
    %p214 = scmp.eq.s32.totalorder %s17, 0
    %p215 = por %p213, %p214
    %p216 = scmp.ne.s32.totalorder %s202, %s203
    %p217 = scmp.eq.s32.totalorder %s18, 1
    %p218 = por %p216, %p217
    %p220 = scmp.ne.s32.totalorder %s203, %s219
    %p221 = scmp.eq.s32.totalorder %s18, 0
    %p222 = por %p220, %p221
    %p223 = scmp.le.s32.totalorder 1, %s12
    %p224 = scmp.lt.s32.totalorder %s12, 3
    %p225 = pnand %p223, %p224
    %p226 = pneg %p225
    // Predicated region
    $region9: #{rat_mha_forward.8} parent=5 // pred_check
      _
    $region10: #{rat_mha_forward.8} parent=5 // pred_check_branch
      %228 = sbr.rel (%p225) target = $region12
    $region11: #{rat_mha_forward.8} parent=5 // pred_region
      %s229 = ssub.s32 %s12, 1
      // Predicated region
      $region13: #{rat_mha_forward.8} parent=11 // pred_check
        %p230 = pneg %p166
      $region14: #{rat_mha_forward.8} parent=11 // pred_check_branch
        %232 = sbr.rel (%p230) target = $region16
      $region15: #{rat_mha_forward.8} parent=11 // pred_region
        _
      $region16: #{rat_mha_forward.8} parent=11 // pred_fallthru
        _
      // Predicated region
      $region17: #{rat_mha_forward.8} parent=11 // pred_check
        %p233 = pneg %p187
      $region18: #{rat_mha_forward.8} parent=11 // pred_check_branch
        %235 = sbr.rel (%p233) target = $region20
      $region19: #{rat_mha_forward.8} parent=11 // pred_region
        _
      $region20: #{rat_mha_forward.8} parent=11 // pred_fallthru
        _
    $region12: #{rat_mha_forward.8} parent=5 // pred_fallthru
      _
    %p236 = scmp.lt.s32.totalorder %s12, 2
    // Predicated region
    $region21: #{rat_mha_forward.8} parent=5 // pred_check
      %p237 = pneg %p236
    $region22: #{rat_mha_forward.8} parent=5 // pred_check_branch
      %239 = sbr.rel (%p237) target = $region24
    $region23: #{rat_mha_forward.8} parent=5 // pred_region
      // Predicated region
      $region25: #{rat_mha_forward.8} parent=23 // pred_check
        %p240 = pneg %p53
      $region26: #{rat_mha_forward.8} parent=23 // pred_check_branch
        %242 = sbr.rel (%p240) target = $region28
      $region27: #{rat_mha_forward.8} parent=23 // pred_region
        %p243 = scmp.lt.s32.totalorder %s19, 1
        %s244 = scalar_select %p243, %s19, 1
        %p245 = scmp.lt.s32.totalorder %s20, 0
        %s246 = scalar_select %p245, %s20, 0
        %s247 = smul.addr %s244, 4
        %s248 = sadd.s32 %s246, %s247
        %s249 = smul.addr %s248, 4
        %s250 = scalar_lea.vmem %s0, %s249
      $region28: #{rat_mha_forward.8} parent=23 // pred_fallthru
        _
      // Predicated region
      $region29: #{rat_mha_forward.8} parent=23 // pred_check
        %p251 = pneg %p81
      $region30: #{rat_mha_forward.8} parent=23 // pred_check_branch
        %253 = sbr.rel (%p251) target = $region32
      $region31: #{rat_mha_forward.8} parent=23 // pred_region
        %p254 = scmp.lt.s32.totalorder %s19, 1
        %s255 = scalar_select %p254, %s19, 1
        %p256 = scmp.lt.s32.totalorder %s21, 0
        %s257 = scalar_select %p256, %s21, 0
        %s258 = smul.addr %s255, 4
        %s259 = sadd.s32 %s257, %s258
        %s260 = smul.addr %s259, 4
        %s261 = scalar_lea.vmem %s1, %s260
      $region32: #{rat_mha_forward.8} parent=23 // pred_fallthru
        _
      // Predicated region
      $region33: #{rat_mha_forward.8} parent=23 // pred_check
        %p262 = pneg %p109
      $region34: #{rat_mha_forward.8} parent=23 // pred_check_branch
        %264 = sbr.rel (%p262) target = $region36
      $region35: #{rat_mha_forward.8} parent=23 // pred_region
        %p265 = scmp.lt.s32.totalorder %s19, 1
        %s266 = scalar_select %p265, %s19, 1
        %p267 = scmp.lt.s32.totalorder %s21, 0
        %s268 = scalar_select %p267, %s21, 0
        %s269 = smul.addr %s266, 4
        %s270 = sadd.s32 %s268, %s269
        %s271 = smul.addr %s270, 4
        %s272 = scalar_lea.vmem %s2, %s271
      $region36: #{rat_mha_forward.8} parent=23 // pred_fallthru
        _
      // Predicated region
      $region37: #{rat_mha_forward.8} parent=23 // pred_check
        %p273 = pneg %p139
      $region38: #{rat_mha_forward.8} parent=23 // pred_check_branch
        %275 = sbr.rel (%p273) target = $region40
      $region39: #{rat_mha_forward.8} parent=23 // pred_region
        %s276 = smul.u32 8, %s20
        %p277 = scmp.lt.s32.totalorder %s19, 1
        %s278 = scalar_select %p277, %s19, 1
        %p279 = scmp.lt.s32.totalorder %s276, 7
        %s280 = scalar_select %p279, %s276, 7
        %p281 = scmp.lt.s32.totalorder %s21, 0
        %s282 = scalar_select %p281, %s21, 0
        %s283 = sadd.s32 %s282, %s280
        %s284 = smul.addr %s278, 8
        %s285 = sadd.s32 %s283, %s284
        %s286 = smul.addr %s285, 4
        %s287 = scalar_lea.vmem %s3, %s286
        %s288 = smul.u32 8, %s20
      $region40: #{rat_mha_forward.8} parent=23 // pred_fallthru
        _
    $region24: #{rat_mha_forward.8} parent=5 // pred_fallthru
      _
    %p289 = scmp.le.s32.totalorder 1, %s12
    %p290 = scmp.lt.s32.totalorder %s12, 3
    %p291 = pnand %p289, %p290
    %p292 = pneg %p291
    // Predicated region
    $region41: #{rat_mha_forward.8} parent=5 // pred_check
      _
    $region42: #{rat_mha_forward.8} parent=5 // pred_check_branch
      %294 = sbr.rel (%p291) target = $region44
    $region43: #{rat_mha_forward.8} parent=5 // pred_region
      %s295 = ssub.s32 %s12, 1
      %p296 = scmp.lt.s32.totalorder %s22, 1
      %s297 = scalar_select %p296, %s22, 1
      %p298 = scmp.lt.s32.totalorder %s23, 0
      %s299 = scalar_select %p298, %s23, 0
      %s300 = smul.addr %s297, 4
      %s301 = sadd.s32 %s299, %s300
      %s302 = smul.addr %s301, 4
      %s303 = scalar_lea.vmem %s0, %s302
      %p304 = pneg %p59
      %p305 = pneg %p56
      %p306 = scmp.lt.s32.totalorder %s22, 1
      %s307 = scalar_select %p306, %s22, 1
      %p308 = scmp.lt.s32.totalorder %s24, 0
      %s309 = scalar_select %p308, %s24, 0
      %s310 = smul.addr %s307, 4
      %s311 = sadd.s32 %s309, %s310
      %s312 = smul.addr %s311, 4
      %s313 = scalar_lea.vmem %s1, %s312
      %p314 = pneg %p87
      %p315 = pneg %p84
      %p316 = scmp.lt.s32.totalorder %s22, 1
      %s317 = scalar_select %p316, %s22, 1
      %p318 = scmp.lt.s32.totalorder %s24, 0
      %s319 = scalar_select %p318, %s24, 0
      %s320 = smul.addr %s317, 4
      %s321 = sadd.s32 %s319, %s320
      %s322 = smul.addr %s321, 4
      %s323 = scalar_lea.vmem %s2, %s322
      %p324 = pneg %p115
      %p325 = pneg %p112
      %s326 = smul.u32 8, %s23
      %p327 = scmp.lt.s32.totalorder %s22, 1
      %s328 = scalar_select %p327, %s22, 1
      %p329 = scmp.lt.s32.totalorder %s326, 7
      %s330 = scalar_select %p329, %s326, 7
      %p331 = scmp.lt.s32.totalorder %s24, 0
      %s332 = scalar_select %p331, %s24, 0
      %s333 = sadd.s32 %s332, %s330
      %s334 = smul.addr %s328, 8
      %s335 = sadd.s32 %s333, %s334
      %s336 = smul.addr %s335, 4
      %s337 = scalar_lea.vmem %s3, %s336
      %p338 = pneg %p145
      %p339 = pneg %p142
      %p340 = pneg %p166
      %p341 = pneg %p163
      %p342 = pneg %p187
      %p343 = pneg %p184
      %p344 = pneg %p215
      %p345 = pneg %p212
      %p346 = scmp.lt.s32.totalorder %s22, 1
      %s347 = scalar_select %p346, %s22, 1
      %p348 = scmp.lt.s32.totalorder %s23, 0
      %s349 = scalar_select %p348, %s23, 0
      %s350 = sadd.s32 %s349, %s347
      %s351 = smul.addr %s350, 4
      %s352 = scalar_lea.vmem %s6, %s351
      %p353 = scmp.lt.s32.totalorder %s22, 1
      %s354 = scalar_select %p353, %s22, 1
      %p355 = scmp.lt.s32.totalorder %s23, 0
      %s356 = scalar_select %p355, %s23, 0
      %s357 = smul.addr %s354, 4
      %s358 = sadd.s32 %s356, %s357
      %s359 = smul.addr %s358, 4
      %s360 = scalar_lea.vmem %s0, %s359
      %p361 = scmp.lt.s32.totalorder %s22, 1
      %s362 = scalar_select %p361, %s22, 1
      %p363 = scmp.lt.s32.totalorder %s24, 0
      %s364 = scalar_select %p363, %s24, 0
      %s365 = smul.addr %s362, 4
      %s366 = sadd.s32 %s364, %s365
      %s367 = smul.addr %s366, 4
      %s368 = scalar_lea.vmem %s1, %s367
      %p369 = scmp.lt.s32.totalorder %s22, 1
      %s370 = scalar_select %p369, %s22, 1
      %p371 = scmp.lt.s32.totalorder %s24, 0
      %s372 = scalar_select %p371, %s24, 0
      %s373 = smul.addr %s370, 4
      %s374 = sadd.s32 %s372, %s373
      %s375 = smul.addr %s374, 4
      %s376 = scalar_lea.vmem %s2, %s375
      %s377 = smul.u32 8, %s23
      %p378 = scmp.lt.s32.totalorder %s22, 1
      %s379 = scalar_select %p378, %s22, 1
      %p380 = scmp.lt.s32.totalorder %s377, 7
      %s381 = scalar_select %p380, %s377, 7
      %p382 = scmp.lt.s32.totalorder %s24, 0
      %s383 = scalar_select %p382, %s24, 0
      %s384 = sadd.s32 %s383, %s381
      %s385 = smul.addr %s379, 8
      %s386 = sadd.s32 %s384, %s385
      %s387 = smul.addr %s386, 4
      %s388 = scalar_lea.vmem %s3, %s387
      %s389 = smul.u32 8, %s23
      %p390 = scmp.lt.s32.totalorder %s22, 1
      %s391 = scalar_select %p390, %s22, 1
      %p392 = scmp.lt.s32.totalorder %s23, 0
      %s393 = scalar_select %p392, %s23, 0
      %s394 = sadd.s32 %s393, %s391
      %s395 = smul.addr %s394, 4
      %s396 = scalar_lea.vmem %s6, %s395
      %p398 = scmp.eq.s32.totalorder %s24, 0
      // Predicated region
      $region45: #{rat_mha_forward.8} parent=43 // pred_check
        %p399 = pneg %p398
      $region46: #{rat_mha_forward.8} parent=43 // pred_check_branch
        %401 = sbr.rel (%p399) target = $region48
      $region47: #{rat_mha_forward.8} parent=43 // pred_region
        %vm402 = vcmask 7168
        %403 = vst.msk [vmem:[#allocation2] sm:$0xff] %vm402, -inf
        %404 = vst.msk [vmem:[#allocation2 + $0x8] sm:$0xff] %vm402, -inf
        %405 = vst.msk [vmem:[#allocation2 + $0x10] sm:$0xff] %vm402, -inf
        %406 = vst.msk [vmem:[#allocation2 + $0x18] sm:$0xff] %vm402, -inf
        %407 = vst.msk [vmem:[#allocation3] sm:$0xff] %vm402, 0.0
        %408 = vst.msk [vmem:[#allocation3 + $0x8] sm:$0xff] %vm402, 0.0
        %409 = vst.msk [vmem:[#allocation3 + $0x10] sm:$0xff] %vm402, 0.0
        %410 = vst.msk [vmem:[#allocation3 + $0x18] sm:$0xff] %vm402, 0.0
        %vm411 = vcmask 64512
        %412 = vst.msk [vmem:[#allocation4] sm:$0xff] %vm411, 0.0
        %413 = vst.msk [vmem:[#allocation4 + $0x8] sm:$0xff] %vm411, 0.0
        %414 = vst.msk [vmem:[#allocation4 + $0x10] sm:$0xff] %vm411, 0.0
        %415 = vst.msk [vmem:[#allocation4 + $0x18] sm:$0xff] %vm411, 0.0
        %v416 = vld [vmem:[%s360] sm:$0xf]
        %v417 = vld [vmem:[%s360 + $0x4] sm:$0xf]
        %v418 = vld [vmem:[%s360 + $0x8] sm:$0xf]
        %v419 = vld [vmem:[%s360 + $0xc] sm:$0xf]
        %v420 = vunpack.c.l.bf16 %v416
        %v421 = vunpack.c.l.bf16 %v417
        %v422 = vunpack.c.l.bf16 %v418
        %v423 = vunpack.c.l.bf16 %v419
        %v424 = vld [vmem:[%s4] sm:$0xf]
        %v427 = vunpack.c.l.s4 1966171168
        %v428 = vunpack.c.0.s8 %v427
        %v429 = vlaneseq
        %v430 = vshrl.u32 %v429, 7
        %v431 = vsub.s32 %v428, %v430
        %v432 = vrot.slane %v424, %v431
        %v433 = vcombine.high %v432, %v432
        %v435 = vunpack.c.l.s4 1966171168
        %v436 = vunpack.c.0.s8 %v435
        %v437 = vlaneseq
        %v438 = vshrl.u32 %v437, 7
        %v439 = vsub.s32 %v436, %v438
        %v440 = vrot.slane %v432, %v439
        %v442 = vunpack.c.l.s4 1966171168
        %v443 = vunpack.c.0.s8 %v442
        %v444 = vlaneseq
        %v445 = vshrl.u32 %v444, 7
        %v446 = vsub.s32 %v443, %v445
        %v447 = vrot.slane %v433, %v446
        %v448 = vcombine.high %v440, %v440
        %v449 = vcombine.high %v447, %v447
        %v450 = vlaneseq
        %v451 = vshrl.u32 %v450, 7
        %v452 = vsub.s32 0, %v451
        %v453 = vrot.slane %v440, %v452
        %v454 = vlaneseq
        %v455 = vshrl.u32 %v454, 7
        %v456 = vsub.s32 0, %v455
        %v457 = vrot.slane %v447, %v456
        %v458 = vlaneseq
        %v459 = vshrl.u32 %v458, 7
        %v460 = vsub.s32 0, %v459
        %v461 = vrot.slane %v448, %v460
        %v462 = vlaneseq
        %v463 = vshrl.u32 %v462, 7
        %v464 = vsub.s32 0, %v463
        %v465 = vrot.slane %v449, %v464
        %v470 = vmul.f32 %v420, %v453
        %v471 = vmul.f32 %v421, %v457
        %v472 = vmul.f32 %v422, %v461
        %v473 = vmul.f32 %v423, %v465
        %v474 = vcombine.low %v470, %v472
        %v475 = vcombine.high %v470, %v472
        %v477 = vunpack.c.l.s4 1983009808
        %v478 = vunpack.c.0.s8 %v477
        %v479 = vlaneseq
        %v480 = vshrl.u32 %v479, 7
        %v481 = vsub.s32 %v478, %v480
        %v482 = vrot.slane %v474, %v481
        %v484 = vunpack.c.l.s4 1983009808
        %v485 = vunpack.c.0.s8 %v484
        %v486 = vlaneseq
        %v487 = vshrl.u32 %v486, 7
        %v488 = vsub.s32 %v485, %v487
        %v489 = vrot.slane %v475, %v488
        %v490 = vcombine.low %v471, %v473
        %v491 = vcombine.high %v471, %v473
        %v493 = vunpack.c.l.s4 1983009808
        %v494 = vunpack.c.0.s8 %v493
        %v495 = vlaneseq
        %v496 = vshrl.u32 %v495, 7
        %v497 = vsub.s32 %v494, %v496
        %v498 = vrot.slane %v490, %v497
        %v500 = vunpack.c.l.s4 1983009808
        %v501 = vunpack.c.0.s8 %v500
        %v502 = vlaneseq
        %v503 = vshrl.u32 %v502, 7
        %v504 = vsub.s32 %v501, %v503
        %v505 = vrot.slane %v491, %v504
        %v506 = vcombine.low %v482, %v498
        %v507 = vcombine.high %v482, %v498
        %v509 = vunpack.c.l.s4 1934713408
        %v510 = vunpack.c.0.s8 %v509
        %v511 = vlaneseq
        %v512 = vshrl.u32 %v511, 7
        %v513 = vsub.s32 %v510, %v512
        %v514 = vrot.slane %v506, %v513
        %v516 = vunpack.c.l.s4 1934713408
        %v517 = vunpack.c.0.s8 %v516
        %v518 = vlaneseq
        %v519 = vshrl.u32 %v518, 7
        %v520 = vsub.s32 %v517, %v519
        %v521 = vrot.slane %v507, %v520
        %v522 = vcombine.low %v489, %v505
        %v523 = vcombine.high %v489, %v505
        %v525 = vunpack.c.l.s4 1934713408
        %v526 = vunpack.c.0.s8 %v525
        %v527 = vlaneseq
        %v528 = vshrl.u32 %v527, 7
        %v529 = vsub.s32 %v526, %v528
        %v530 = vrot.slane %v522, %v529
        %v532 = vunpack.c.l.s4 1934713408
        %v533 = vunpack.c.0.s8 %v532
        %v534 = vlaneseq
        %v535 = vshrl.u32 %v534, 7
        %v536 = vsub.s32 %v533, %v535
        %v537 = vrot.slane %v523, %v536
        %v538 = vcombine.high %v514, 0.0
        %v539 = vcombine.high %v521, 0.0
        %v540 = vcombine.high %v530, 0.0
        %v541 = vcombine.high %v537, 0.0
        %v542 = vpack.c.bf16 %v514, %v514
        %v543 = vpack.c.bf16 %v538, %v538
        %v544 = vpack.c.bf16 %v521, %v521
        %v545 = vpack.c.bf16 %v539, %v539
        %v546 = vpack.c.bf16 %v530, %v530
        %v547 = vpack.c.bf16 %v540, %v540
        %v548 = vpack.c.bf16 %v537, %v537
        %v549 = vpack.c.bf16 %v541, %v541
        %vm550 = vcmask 58368
        %551 = vst.msk [vmem:[#allocation5] sm:$0x3] %vm550, %v542
        %552 = vst.msk [vmem:[#allocation5 + $0x2] sm:$0x3] %vm550, %v543
        %553 = vst.msk [vmem:[#allocation5 + $0x4] sm:$0x3] %vm550, %v544
        %554 = vst.msk [vmem:[#allocation5 + $0x6] sm:$0x3] %vm550, %v545
        %555 = vst.msk [vmem:[#allocation5 + $0x8] sm:$0x3] %vm550, %v546
        %556 = vst.msk [vmem:[#allocation5 + $0xa] sm:$0x3] %vm550, %v547
        %557 = vst.msk [vmem:[#allocation5 + $0xc] sm:$0x3] %vm550, %v548
        %558 = vst.msk [vmem:[#allocation5 + $0xe] sm:$0x3] %vm550, %v549
      $region48: #{rat_mha_forward.8} parent=43 // pred_fallthru
        _
      %v559 = vld [vmem:[%s360] sm:$0xf]
      %v560 = vld [vmem:[%s360 + $0x4] sm:$0xf]
      %v561 = vld [vmem:[%s360 + $0x8] sm:$0xf]
      %v562 = vld [vmem:[%s360 + $0xc] sm:$0xf]
      %v563 = vld [vmem:[%s368] sm:$0xf]
      %v564 = vld [vmem:[%s368 + $0x4] sm:$0xf]
      %v565 = vld [vmem:[%s368 + $0x8] sm:$0xf]
      %v566 = vld [vmem:[%s368 + $0xc] sm:$0xf]
      %v567 = vld [vmem:[%s376] sm:$0xf]
      %v568 = vld [vmem:[%s376 + $0x4] sm:$0xf]
      %v569 = vld [vmem:[%s376 + $0x8] sm:$0xf]
      %v570 = vld [vmem:[%s376 + $0xc] sm:$0xf]
      %v571 = vld [vmem:[%s388] sm:$0xf]
      %v572 = vld [vmem:[%s388 + $0x4] sm:$0xf]
      %v573 = vld [vmem:[%s388 + $0x8] sm:$0xf]
      %v574 = vld [vmem:[%s388 + $0xc] sm:$0xf]
      %v575 = vld [vmem:[%s388 + $0x10] sm:$0xf]
      %v576 = vld [vmem:[%s388 + $0x14] sm:$0xf]
      %v577 = vld [vmem:[%s388 + $0x18] sm:$0xf]
      %v578 = vld [vmem:[%s388 + $0x1c] sm:$0xf]
      %v579 = vld [vmem:[#allocation5] sm:$0x3]
      %v580 = vld [vmem:[#allocation5 + $0x2] sm:$0x3]
      %v581 = vld [vmem:[#allocation5 + $0x4] sm:$0x3]
      %v582 = vld [vmem:[#allocation5 + $0x6] sm:$0x3]
      %v583 = vld [vmem:[#allocation5 + $0x8] sm:$0x3]
      %v584 = vld [vmem:[#allocation5 + $0xa] sm:$0x3]
      %v585 = vld [vmem:[#allocation5 + $0xc] sm:$0x3]
      %v586 = vld [vmem:[#allocation5 + $0xe] sm:$0x3]
      %vm587 = vcmask 64512
      %v589 = vsel %vm587, %v579, 0
      %v592 = vsel %vm587, %v571, 0
      %594 = vmatprep.subr.bf16.mxu0 0
      %595 = vmatpush1.bf16.xpose.msra.mxu0 %v592
      %596 = vmatprep.subr.bf16.mxu0 0
      %597 = vmatpush1.bf16.xpose.msra.mxu0 0
      %598 = vmatprep.subr.bf16.mxu0 0
      %599 = vmatpush1.bf16.xpose.msra.mxu0 0
      %600 = vmatprep.subr.bf16.mxu0 0
      %601 = vmatpush1.bf16.xpose.msra.mxu0 0
      %602 = vmatprep.subr.bf16.mxu0 0
      %603 = vmatpush1.bf16.xpose.msra.mxu0 0
      %604 = vmatprep.subr.bf16.mxu0 0
      %605 = vmatpush1.bf16.xpose.msra.mxu0 0
      %606 = vmatprep.subr.bf16.mxu0 0
      %607 = vmatpush1.bf16.xpose.msra.mxu0 0
      %608 = vmatprep.subr.bf16.mxu0 0
      %609 = vmatpush1.bf16.xpose.msra.mxu0 0
      %610 = vmatprep.subr.bf16.mxu0 0
      %611 = vmatpush1.bf16.xpose.msra.mxu0 0
      %612 = vmatprep.subr.bf16.mxu0 0
      %613 = vmatpush1.bf16.xpose.msra.mxu0 0
      %614 = vmatprep.subr.bf16.mxu0 0
      %615 = vmatpush1.bf16.xpose.msra.mxu0 0
      %616 = vmatprep.subr.bf16.mxu0 0
      %617 = vmatpush1.bf16.xpose.msra.mxu0 0
      %618 = vmatprep.subr.bf16.mxu0 0
      %619 = vmatpush1.bf16.xpose.msra.mxu0 0
      %620 = vmatprep.subr.bf16.mxu0 0
      %621 = vmatpush1.bf16.xpose.msra.mxu0 0
      %622 = vmatprep.subr.bf16.mxu0 0
      %623 = vmatpush1.bf16.xpose.msra.mxu0 0
      %624 = vmatprep.subr.bf16.mxu0 0
      %625 = vmatpush1.bf16.xpose.msra.mxu0 0
      %626 = vmatprep.mubr.bf16.mxu0 0
      %627 = vmatmul.mubr.bf16.gmra.mrb[0].mxu0 %v589
      %v628 = vpop.f32.mrb[0].mxu0
      %v629 = vadd.f32 0.0, %v628
      %v630 = vpop.f32.mrb[0].mxu0
      %v631 = vpop.f32.mrb[0].mxu0
      %v632 = vpop.f32.mrb[0].mxu0
      %633 = vdwg.mxu0
      %v635 = vsel %vm587, %v580, 0
      %v638 = vsel %vm587, %v572, 0
      %640 = vmatprep.subr.bf16.mxu0 0
      %641 = vmatpush1.bf16.xpose.msra.mxu0 %v638
      %642 = vmatprep.subr.bf16.mxu0 0
      %643 = vmatpush1.bf16.xpose.msra.mxu0 0
      %644 = vmatprep.subr.bf16.mxu0 0
      %645 = vmatpush1.bf16.xpose.msra.mxu0 0
      %646 = vmatprep.subr.bf16.mxu0 0
      %647 = vmatpush1.bf16.xpose.msra.mxu0 0
      %648 = vmatprep.subr.bf16.mxu0 0
      %649 = vmatpush1.bf16.xpose.msra.mxu0 0
      %650 = vmatprep.subr.bf16.mxu0 0
      %651 = vmatpush1.bf16.xpose.msra.mxu0 0
      %652 = vmatprep.subr.bf16.mxu0 0
      %653 = vmatpush1.bf16.xpose.msra.mxu0 0
      %654 = vmatprep.subr.bf16.mxu0 0
      %655 = vmatpush1.bf16.xpose.msra.mxu0 0
      %656 = vmatprep.subr.bf16.mxu0 0
      %657 = vmatpush1.bf16.xpose.msra.mxu0 0
      %658 = vmatprep.subr.bf16.mxu0 0
      %659 = vmatpush1.bf16.xpose.msra.mxu0 0
      %660 = vmatprep.subr.bf16.mxu0 0
      %661 = vmatpush1.bf16.xpose.msra.mxu0 0
      %662 = vmatprep.subr.bf16.mxu0 0
      %663 = vmatpush1.bf16.xpose.msra.mxu0 0
      %664 = vmatprep.subr.bf16.mxu0 0
      %665 = vmatpush1.bf16.xpose.msra.mxu0 0
      %666 = vmatprep.subr.bf16.mxu0 0
      %667 = vmatpush1.bf16.xpose.msra.mxu0 0
      %668 = vmatprep.subr.bf16.mxu0 0
      %669 = vmatpush1.bf16.xpose.msra.mxu0 0
      %670 = vmatprep.subr.bf16.mxu0 0
      %671 = vmatpush1.bf16.xpose.msra.mxu0 0
      %672 = vmatprep.mubr.bf16.mxu0 0
      %673 = vmatmul.mubr.bf16.gmra.mrb[0].mxu0 %v635
      %v674 = vpop.f32.mrb[0].mxu0
      %v675 = vadd.f32 0.0, %v674
      %v676 = vpop.f32.mrb[0].mxu0
      %v677 = vpop.f32.mrb[0].mxu0
      %v678 = vpop.f32.mrb[0].mxu0
      %679 = vdwg.mxu0
      %v681 = vsel %vm587, %v581, 0
      %v684 = vsel %vm587, %v573, 0
      %686 = vmatprep.subr.bf16.mxu0 0
      %687 = vmatpush1.bf16.xpose.msra.mxu0 %v684
      %688 = vmatprep.subr.bf16.mxu0 0
      %689 = vmatpush1.bf16.xpose.msra.mxu0 0
      %690 = vmatprep.subr.bf16.mxu0 0
      %691 = vmatpush1.bf16.xpose.msra.mxu0 0
      %692 = vmatprep.subr.bf16.mxu0 0
      %693 = vmatpush1.bf16.xpose.msra.mxu0 0
      %694 = vmatprep.subr.bf16.mxu0 0
      %695 = vmatpush1.bf16.xpose.msra.mxu0 0
      %696 = vmatprep.subr.bf16.mxu0 0
      %697 = vmatpush1.bf16.xpose.msra.mxu0 0
      %698 = vmatprep.subr.bf16.mxu0 0
      %699 = vmatpush1.bf16.xpose.msra.mxu0 0
      %700 = vmatprep.subr.bf16.mxu0 0
      %701 = vmatpush1.bf16.xpose.msra.mxu0 0
      %702 = vmatprep.subr.bf16.mxu0 0
      %703 = vmatpush1.bf16.xpose.msra.mxu0 0
      %704 = vmatprep.subr.bf16.mxu0 0
      %705 = vmatpush1.bf16.xpose.msra.mxu0 0
      %706 = vmatprep.subr.bf16.mxu0 0
      %707 = vmatpush1.bf16.xpose.msra.mxu0 0
      %708 = vmatprep.subr.bf16.mxu0 0
      %709 = vmatpush1.bf16.xpose.msra.mxu0 0
      %710 = vmatprep.subr.bf16.mxu0 0
      %711 = vmatpush1.bf16.xpose.msra.mxu0 0
      %712 = vmatprep.subr.bf16.mxu0 0
      %713 = vmatpush1.bf16.xpose.msra.mxu0 0
      %714 = vmatprep.subr.bf16.mxu0 0
      %715 = vmatpush1.bf16.xpose.msra.mxu0 0
      %716 = vmatprep.subr.bf16.mxu0 0
      %717 = vmatpush1.bf16.xpose.msra.mxu0 0
      %718 = vmatprep.mubr.bf16.mxu0 0
      %719 = vmatmul.mubr.bf16.gmra.mrb[0].mxu0 %v681
      %v720 = vpop.f32.mrb[0].mxu0
      %v721 = vadd.f32 0.0, %v720
      %v722 = vpop.f32.mrb[0].mxu0
      %v723 = vpop.f32.mrb[0].mxu0
      %v724 = vpop.f32.mrb[0].mxu0
      %725 = vdwg.mxu0
      %v727 = vsel %vm587, %v582, 0
      %v730 = vsel %vm587, %v574, 0
      %732 = vmatprep.subr.bf16.mxu0 0
      %733 = vmatpush1.bf16.xpose.msra.mxu0 %v730
      %734 = vmatprep.subr.bf16.mxu0 0
      %735 = vmatpush1.bf16.xpose.msra.mxu0 0
      %736 = vmatprep.subr.bf16.mxu0 0
      %737 = vmatpush1.bf16.xpose.msra.mxu0 0
      %738 = vmatprep.subr.bf16.mxu0 0
      %739 = vmatpush1.bf16.xpose.msra.mxu0 0
      %740 = vmatprep.subr.bf16.mxu0 0
      %741 = vmatpush1.bf16.xpose.msra.mxu0 0
      %742 = vmatprep.subr.bf16.mxu0 0
      %743 = vmatpush1.bf16.xpose.msra.mxu0 0
      %744 = vmatprep.subr.bf16.mxu0 0
      %745 = vmatpush1.bf16.xpose.msra.mxu0 0
      %746 = vmatprep.subr.bf16.mxu0 0
      %747 = vmatpush1.bf16.xpose.msra.mxu0 0
      %748 = vmatprep.subr.bf16.mxu0 0
      %749 = vmatpush1.bf16.xpose.msra.mxu0 0
      %750 = vmatprep.subr.bf16.mxu0 0
      %751 = vmatpush1.bf16.xpose.msra.mxu0 0
      %752 = vmatprep.subr.bf16.mxu0 0
      %753 = vmatpush1.bf16.xpose.msra.mxu0 0
      %754 = vmatprep.subr.bf16.mxu0 0
      %755 = vmatpush1.bf16.xpose.msra.mxu0 0
      %756 = vmatprep.subr.bf16.mxu0 0
      %757 = vmatpush1.bf16.xpose.msra.mxu0 0
      %758 = vmatprep.subr.bf16.mxu0 0
      %759 = vmatpush1.bf16.xpose.msra.mxu0 0
      %760 = vmatprep.subr.bf16.mxu0 0
      %761 = vmatpush1.bf16.xpose.msra.mxu0 0
      %762 = vmatprep.subr.bf16.mxu0 0
      %763 = vmatpush1.bf16.xpose.msra.mxu0 0
      %764 = vmatprep.mubr.bf16.mxu0 0
      %765 = vmatmul.mubr.bf16.gmra.mrb[0].mxu0 %v727
      %v766 = vpop.f32.mrb[0].mxu0
      %v767 = vadd.f32 0.0, %v766
      %v768 = vpop.f32.mrb[0].mxu0
      %v769 = vpop.f32.mrb[0].mxu0
      %v770 = vpop.f32.mrb[0].mxu0
      %771 = vdwg.mxu0
      %v773 = vsel %vm587, %v583, 0
      %v776 = vsel %vm587, %v575, 0
      %778 = vmatprep.subr.bf16.mxu0 0
      %779 = vmatpush1.bf16.xpose.msra.mxu0 %v776
      %780 = vmatprep.subr.bf16.mxu0 0
      %781 = vmatpush1.bf16.xpose.msra.mxu0 0
      %782 = vmatprep.subr.bf16.mxu0 0
      %783 = vmatpush1.bf16.xpose.msra.mxu0 0
      %784 = vmatprep.subr.bf16.mxu0 0
      %785 = vmatpush1.bf16.xpose.msra.mxu0 0
      %786 = vmatprep.subr.bf16.mxu0 0
      %787 = vmatpush1.bf16.xpose.msra.mxu0 0
      %788 = vmatprep.subr.bf16.mxu0 0
      %789 = vmatpush1.bf16.xpose.msra.mxu0 0
      %790 = vmatprep.subr.bf16.mxu0 0
      %791 = vmatpush1.bf16.xpose.msra.mxu0 0
      %792 = vmatprep.subr.bf16.mxu0 0
      %793 = vmatpush1.bf16.xpose.msra.mxu0 0
      %794 = vmatprep.subr.bf16.mxu0 0
      %795 = vmatpush1.bf16.xpose.msra.mxu0 0
      %796 = vmatprep.subr.bf16.mxu0 0
      %797 = vmatpush1.bf16.xpose.msra.mxu0 0
      %798 = vmatprep.subr.bf16.mxu0 0
      %799 = vmatpush1.bf16.xpose.msra.mxu0 0
      %800 = vmatprep.subr.bf16.mxu0 0
      %801 = vmatpush1.bf16.xpose.msra.mxu0 0
      %802 = vmatprep.subr.bf16.mxu0 0
      %803 = vmatpush1.bf16.xpose.msra.mxu0 0
      %804 = vmatprep.subr.bf16.mxu0 0
      %805 = vmatpush1.bf16.xpose.msra.mxu0 0
      %806 = vmatprep.subr.bf16.mxu0 0
      %807 = vmatpush1.bf16.xpose.msra.mxu0 0
      %808 = vmatprep.subr.bf16.mxu0 0
      %809 = vmatpush1.bf16.xpose.msra.mxu0 0
      %810 = vmatprep.mubr.bf16.mxu0 0
      %811 = vmatmul.mubr.bf16.gmra.mrb[0].mxu0 %v773
      %v812 = vpop.f32.mrb[0].mxu0
      %v813 = vadd.f32 0.0, %v812
      %v814 = vpop.f32.mrb[0].mxu0
      %v815 = vpop.f32.mrb[0].mxu0
      %v816 = vpop.f32.mrb[0].mxu0
      %817 = vdwg.mxu0
      %v819 = vsel %vm587, %v584, 0
      %v822 = vsel %vm587, %v576, 0
      %824 = vmatprep.subr.bf16.mxu0 0
      %825 = vmatpush1.bf16.xpose.msra.mxu0 %v822
      %826 = vmatprep.subr.bf16.mxu0 0
      %827 = vmatpush1.bf16.xpose.msra.mxu0 0
      %828 = vmatprep.subr.bf16.mxu0 0
      %829 = vmatpush1.bf16.xpose.msra.mxu0 0
      %830 = vmatprep.subr.bf16.mxu0 0
      %831 = vmatpush1.bf16.xpose.msra.mxu0 0
      %832 = vmatprep.subr.bf16.mxu0 0
      %833 = vmatpush1.bf16.xpose.msra.mxu0 0
      %834 = vmatprep.subr.bf16.mxu0 0
      %835 = vmatpush1.bf16.xpose.msra.mxu0 0
      %836 = vmatprep.subr.bf16.mxu0 0
      %837 = vmatpush1.bf16.xpose.msra.mxu0 0
      %838 = vmatprep.subr.bf16.mxu0 0
      %839 = vmatpush1.bf16.xpose.msra.mxu0 0
      %840 = vmatprep.subr.bf16.mxu0 0
      %841 = vmatpush1.bf16.xpose.msra.mxu0 0
      %842 = vmatprep.subr.bf16.mxu0 0
      %843 = vmatpush1.bf16.xpose.msra.mxu0 0
      %844 = vmatprep.subr.bf16.mxu0 0
      %845 = vmatpush1.bf16.xpose.msra.mxu0 0
      %846 = vmatprep.subr.bf16.mxu0 0
      %847 = vmatpush1.bf16.xpose.msra.mxu0 0
      %848 = vmatprep.subr.bf16.mxu0 0
      %849 = vmatpush1.bf16.xpose.msra.mxu0 0
      %850 = vmatprep.subr.bf16.mxu0 0
      %851 = vmatpush1.bf16.xpose.msra.mxu0 0
      %852 = vmatprep.subr.bf16.mxu0 0
      %853 = vmatpush1.bf16.xpose.msra.mxu0 0
      %854 = vmatprep.subr.bf16.mxu0 0
      %855 = vmatpush1.bf16.xpose.msra.mxu0 0
      %856 = vmatprep.mubr.bf16.mxu0 0
      %857 = vmatmul.mubr.bf16.gmra.mrb[0].mxu0 %v819
      %v858 = vpop.f32.mrb[0].mxu0
      %v859 = vadd.f32 0.0, %v858
      %v860 = vpop.f32.mrb[0].mxu0
      %v861 = vpop.f32.mrb[0].mxu0
      %v862 = vpop.f32.mrb[0].mxu0
      %863 = vdwg.mxu0
      %v865 = vsel %vm587, %v585, 0
      %v868 = vsel %vm587, %v577, 0
      %870 = vmatprep.subr.bf16.mxu0 0
      %871 = vmatpush1.bf16.xpose.msra.mxu0 %v868
      %872 = vmatprep.subr.bf16.mxu0 0
      %873 = vmatpush1.bf16.xpose.msra.mxu0 0
      %874 = vmatprep.subr.bf16.mxu0 0
      %875 = vmatpush1.bf16.xpose.msra.mxu0 0
      %876 = vmatprep.subr.bf16.mxu0 0
      %877 = vmatpush1.bf16.xpose.msra.mxu0 0
      %878 = vmatprep.subr.bf16.mxu0 0
      %879 = vmatpush1.bf16.xpose.msra.mxu0 0
      %880 = vmatprep.subr.bf16.mxu0 0
      %881 = vmatpush1.bf16.xpose.msra.mxu0 0
      %882 = vmatprep.subr.bf16.mxu0 0
      %883 = vmatpush1.bf16.xpose.msra.mxu0 0
      %884 = vmatprep.subr.bf16.mxu0 0
      %885 = vmatpush1.bf16.xpose.msra.mxu0 0
      %886 = vmatprep.subr.bf16.mxu0 0
      %887 = vmatpush1.bf16.xpose.msra.mxu0 0
      %888 = vmatprep.subr.bf16.mxu0 0
      %889 = vmatpush1.bf16.xpose.msra.mxu0 0
      %890 = vmatprep.subr.bf16.mxu0 0
      %891 = vmatpush1.bf16.xpose.msra.mxu0 0
      %892 = vmatprep.subr.bf16.mxu0 0
      %893 = vmatpush1.bf16.xpose.msra.mxu0 0
      %894 = vmatprep.subr.bf16.mxu0 0
      %895 = vmatpush1.bf16.xpose.msra.mxu0 0
      %896 = vmatprep.subr.bf16.mxu0 0
      %897 = vmatpush1.bf16.xpose.msra.mxu0 0
      %898 = vmatprep.subr.bf16.mxu0 0
      %899 = vmatpush1.bf16.xpose.msra.mxu0 0
      %900 = vmatprep.subr.bf16.mxu0 0
      %901 = vmatpush1.bf16.xpose.msra.mxu0 0
      %902 = vmatprep.mubr.bf16.mxu0 0
      %903 = vmatmul.mubr.bf16.gmra.mrb[0].mxu0 %v865
      %v904 = vpop.f32.mrb[0].mxu0
      %v905 = vadd.f32 0.0, %v904
      %v906 = vpop.f32.mrb[0].mxu0
      %v907 = vpop.f32.mrb[0].mxu0
      %v908 = vpop.f32.mrb[0].mxu0
      %909 = vdwg.mxu0
      %v911 = vsel %vm587, %v586, 0
      %v914 = vsel %vm587, %v578, 0
      %916 = vmatprep.subr.bf16.mxu0 0
      %917 = vmatpush1.bf16.xpose.msra.mxu0 %v914
      %918 = vmatprep.subr.bf16.mxu0 0
      %919 = vmatpush1.bf16.xpose.msra.mxu0 0
      %920 = vmatprep.subr.bf16.mxu0 0
      %921 = vmatpush1.bf16.xpose.msra.mxu0 0
      %922 = vmatprep.subr.bf16.mxu0 0
      %923 = vmatpush1.bf16.xpose.msra.mxu0 0
      %924 = vmatprep.subr.bf16.mxu0 0
      %925 = vmatpush1.bf16.xpose.msra.mxu0 0
      %926 = vmatprep.subr.bf16.mxu0 0
      %927 = vmatpush1.bf16.xpose.msra.mxu0 0
      %928 = vmatprep.subr.bf16.mxu0 0
      %929 = vmatpush1.bf16.xpose.msra.mxu0 0
      %930 = vmatprep.subr.bf16.mxu0 0
      %931 = vmatpush1.bf16.xpose.msra.mxu0 0
      %932 = vmatprep.subr.bf16.mxu0 0
      %933 = vmatpush1.bf16.xpose.msra.mxu0 0
      %934 = vmatprep.subr.bf16.mxu0 0
      %935 = vmatpush1.bf16.xpose.msra.mxu0 0
      %936 = vmatprep.subr.bf16.mxu0 0
      %937 = vmatpush1.bf16.xpose.msra.mxu0 0
      %938 = vmatprep.subr.bf16.mxu0 0
      %939 = vmatpush1.bf16.xpose.msra.mxu0 0
      %940 = vmatprep.subr.bf16.mxu0 0
      %941 = vmatpush1.bf16.xpose.msra.mxu0 0
      %942 = vmatprep.subr.bf16.mxu0 0
      %943 = vmatpush1.bf16.xpose.msra.mxu0 0
      %944 = vmatprep.subr.bf16.mxu0 0
      %945 = vmatpush1.bf16.xpose.msra.mxu0 0
      %946 = vmatprep.subr.bf16.mxu0 0
      %947 = vmatpush1.bf16.xpose.msra.mxu0 0
      %948 = vmatprep.mubr.bf16.mxu0 0
      %949 = vmatmul.mubr.bf16.gmra.mrb[0].mxu0 %v911
      %v950 = vpop.f32.mrb[0].mxu0
      %v951 = vadd.f32 0.0, %v950
      %v952 = vpop.f32.mrb[0].mxu0
      %v953 = vpop.f32.mrb[0].mxu0
      %v954 = vpop.f32.mrb[0].mxu0
      %955 = vdwg.mxu0
      %v956 = vcombine.low %v629, %v721
      %v958 = vunpack.c.l.s4 1983009808
      %v959 = vunpack.c.0.s8 %v958
      %v960 = vlaneseq
      %v961 = vshrl.u32 %v960, 7
      %v962 = vsub.s32 %v959, %v961
      %v963 = vrot.slane %v956, %v962
      %v964 = vcombine.low %v675, %v767
      %v966 = vunpack.c.l.s4 1983009808
      %v967 = vunpack.c.0.s8 %v966
      %v968 = vlaneseq
      %v969 = vshrl.u32 %v968, 7
      %v970 = vsub.s32 %v967, %v969
      %v971 = vrot.slane %v964, %v970
      %v972 = vcombine.low %v813, %v905
      %v974 = vunpack.c.l.s4 1983009808
      %v975 = vunpack.c.0.s8 %v974
      %v976 = vlaneseq
      %v977 = vshrl.u32 %v976, 7
      %v978 = vsub.s32 %v975, %v977
      %v979 = vrot.slane %v972, %v978
      %v980 = vcombine.low %v859, %v951
      %v982 = vunpack.c.l.s4 1983009808
      %v983 = vunpack.c.0.s8 %v982
      %v984 = vlaneseq
      %v985 = vshrl.u32 %v984, 7
      %v986 = vsub.s32 %v983, %v985
      %v987 = vrot.slane %v980, %v986
      %v988 = vcombine.low %v963, %v971
      %v989 = vcombine.high %v963, %v971
      %v991 = vunpack.c.l.s4 1934713408
      %v992 = vunpack.c.0.s8 %v991
      %v993 = vlaneseq
      %v994 = vshrl.u32 %v993, 7
      %v995 = vsub.s32 %v992, %v994
      %v996 = vrot.slane %v988, %v995
      %v998 = vunpack.c.l.s4 1934713408
      %v999 = vunpack.c.0.s8 %v998
      %v1000 = vlaneseq
      %v1001 = vshrl.u32 %v1000, 7
      %v1002 = vsub.s32 %v999, %v1001
      %v1003 = vrot.slane %v989, %v1002
      %v1004 = vcombine.low %v979, %v987
      %v1005 = vcombine.high %v979, %v987
      %v1007 = vunpack.c.l.s4 1934713408
      %v1008 = vunpack.c.0.s8 %v1007
      %v1009 = vlaneseq
      %v1010 = vshrl.u32 %v1009, 7
      %v1011 = vsub.s32 %v1008, %v1010
      %v1012 = vrot.slane %v1004, %v1011
      %v1014 = vunpack.c.l.s4 1934713408
      %v1015 = vunpack.c.0.s8 %v1014
      %v1016 = vlaneseq
      %v1017 = vshrl.u32 %v1016, 7
      %v1018 = vsub.s32 %v1015, %v1017
      %v1019 = vrot.slane %v1005, %v1018
      %v1020 = vcombine.low %v996, %v1012
      %v1021 = vcombine.high %v996, %v1012
      %v1022 = vcombine.low %v1003, %v1019
      %v1023 = vcombine.high %v1003, %v1019
      %v1025 = vsel %vm587, %v559, 0
      %v1028 = vsel %vm587, %v563, 0
      %1030 = vmatprep.subr.bf16.mxu0 0
      %1031 = vmatpush1.bf16.xpose.msra.mxu0 %v1028
      %1032 = vmatprep.subr.bf16.mxu0 0
      %1033 = vmatpush1.bf16.xpose.msra.mxu0 0
      %1034 = vmatprep.subr.bf16.mxu0 0
      %1035 = vmatpush1.bf16.xpose.msra.mxu0 0
      %1036 = vmatprep.subr.bf16.mxu0 0
      %1037 = vmatpush1.bf16.xpose.msra.mxu0 0
      %1038 = vmatprep.subr.bf16.mxu0 0
      %1039 = vmatpush1.bf16.xpose.msra.mxu0 0
      %1040 = vmatprep.subr.bf16.mxu0 0
      %1041 = vmatpush1.bf16.xpose.msra.mxu0 0
      %1042 = vmatprep.subr.bf16.mxu0 0
      %1043 = vmatpush1.bf16.xpose.msra.mxu0 0
      %1044 = vmatprep.subr.bf16.mxu0 0
      %1045 = vmatpush1.bf16.xpose.msra.mxu0 0
      %1046 = vmatprep.subr.bf16.mxu0 0
      %1047 = vmatpush1.bf16.xpose.msra.mxu0 0
      %1048 = vmatprep.subr.bf16.mxu0 0
      %1049 = vmatpush1.bf16.xpose.msra.mxu0 0
      %1050 = vmatprep.subr.bf16.mxu0 0
      %1051 = vmatpush1.bf16.xpose.msra.mxu0 0
      %1052 = vmatprep.subr.bf16.mxu0 0
      %1053 = vmatpush1.bf16.xpose.msra.mxu0 0
      %1054 = vmatprep.subr.bf16.mxu0 0
      %1055 = vmatpush1.bf16.xpose.msra.mxu0 0
      %1056 = vmatprep.subr.bf16.mxu0 0
      %1057 = vmatpush1.bf16.xpose.msra.mxu0 0
      %1058 = vmatprep.subr.bf16.mxu0 0
      %1059 = vmatpush1.bf16.xpose.msra.mxu0 0
      %1060 = vmatprep.subr.bf16.mxu0 0
      %1061 = vmatpush1.bf16.xpose.msra.mxu0 0
      %1062 = vmatprep.mubr.bf16.mxu0 0
      %1063 = vmatmul.mubr.bf16.gmra.mrb[0].mxu0 %v1025
      %v1064 = vpop.f32.mrb[0].mxu0
      %v1065 = vadd.f32 %v1020, %v1064
      %v1066 = vpop.f32.mrb[0].mxu0
      %v1067 = vpop.f32.mrb[0].mxu0
      %v1068 = vpop.f32.mrb[0].mxu0
      %1069 = vdwg.mxu0
      %v1071 = vsel %vm587, %v560, 0
      %v1074 = vsel %vm587, %v564, 0
      %1076 = vmatprep.subr.bf16.mxu0 0
      %1077 = vmatpush1.bf16.xpose.msra.mxu0 %v1074
      %1078 = vmatprep.subr.bf16.mxu0 0
      %1079 = vmatpush1.bf16.xpose.msra.mxu0 0
      %1080 = vmatprep.subr.bf16.mxu0 0
      %1081 = vmatpush1.bf16.xpose.msra.mxu0 0
      %1082 = vmatprep.subr.bf16.mxu0 0
      %1083 = vmatpush1.bf16.xpose.msra.mxu0 0
      %1084 = vmatprep.subr.bf16.mxu0 0
      %1085 = vmatpush1.bf16.xpose.msra.mxu0 0
      %1086 = vmatprep.subr.bf16.mxu0 0
      %1087 = vmatpush1.bf16.xpose.msra.mxu0 0
      %1088 = vmatprep.subr.bf16.mxu0 0
      %1089 = vmatpush1.bf16.xpose.msra.mxu0 0
      %1090 = vmatprep.subr.bf16.mxu0 0
      %1091 = vmatpush1.bf16.xpose.msra.mxu0 0
      %1092 = vmatprep.subr.bf16.mxu0 0
      %1093 = vmatpush1.bf16.xpose.msra.mxu0 0
      %1094 = vmatprep.subr.bf16.mxu0 0
      %1095 = vmatpush1.bf16.xpose.msra.mxu0 0
      %1096 = vmatprep.subr.bf16.mxu0 0
      %1097 = vmatpush1.bf16.xpose.msra.mxu0 0
      %1098 = vmatprep.subr.bf16.mxu0 0
      %1099 = vmatpush1.bf16.xpose.msra.mxu0 0
      %1100 = vmatprep.subr.bf16.mxu0 0
      %1101 = vmatpush1.bf16.xpose.msra.mxu0 0
      %1102 = vmatprep.subr.bf16.mxu0 0
      %1103 = vmatpush1.bf16.xpose.msra.mxu0 0
      %1104 = vmatprep.subr.bf16.mxu0 0
      %1105 = vmatpush1.bf16.xpose.msra.mxu0 0
      %1106 = vmatprep.subr.bf16.mxu0 0
      %1107 = vmatpush1.bf16.xpose.msra.mxu0 0
      %1108 = vmatprep.mubr.bf16.mxu0 0
      %1109 = vmatmul.mubr.bf16.gmra.mrb[0].mxu0 %v1071
      %v1110 = vpop.f32.mrb[0].mxu0
      %v1111 = vadd.f32 %v1021, %v1110
      %v1112 = vpop.f32.mrb[0].mxu0
      %v1113 = vpop.f32.mrb[0].mxu0
      %v1114 = vpop.f32.mrb[0].mxu0
      %1115 = vdwg.mxu0
      %v1117 = vsel %vm587, %v561, 0
      %v1120 = vsel %vm587, %v565, 0
      %1122 = vmatprep.subr.bf16.mxu0 0
      %1123 = vmatpush1.bf16.xpose.msra.mxu0 %v1120
      %1124 = vmatprep.subr.bf16.mxu0 0
      %1125 = vmatpush1.bf16.xpose.msra.mxu0 0
      %1126 = vmatprep.subr.bf16.mxu0 0
      %1127 = vmatpush1.bf16.xpose.msra.mxu0 0
      %1128 = vmatprep.subr.bf16.mxu0 0
      %1129 = vmatpush1.bf16.xpose.msra.mxu0 0
      %1130 = vmatprep.subr.bf16.mxu0 0
      %1131 = vmatpush1.bf16.xpose.msra.mxu0 0
      %1132 = vmatprep.subr.bf16.mxu0 0
      %1133 = vmatpush1.bf16.xpose.msra.mxu0 0
      %1134 = vmatprep.subr.bf16.mxu0 0
      %1135 = vmatpush1.bf16.xpose.msra.mxu0 0
      %1136 = vmatprep.subr.bf16.mxu0 0
      %1137 = vmatpush1.bf16.xpose.msra.mxu0 0
      %1138 = vmatprep.subr.bf16.mxu0 0
      %1139 = vmatpush1.bf16.xpose.msra.mxu0 0
      %1140 = vmatprep.subr.bf16.mxu0 0
      %1141 = vmatpush1.bf16.xpose.msra.mxu0 0
      %1142 = vmatprep.subr.bf16.mxu0 0
      %1143 = vmatpush1.bf16.xpose.msra.mxu0 0
      %1144 = vmatprep.subr.bf16.mxu0 0
      %1145 = vmatpush1.bf16.xpose.msra.mxu0 0
      %1146 = vmatprep.subr.bf16.mxu0 0
      %1147 = vmatpush1.bf16.xpose.msra.mxu0 0
      %1148 = vmatprep.subr.bf16.mxu0 0
      %1149 = vmatpush1.bf16.xpose.msra.mxu0 0
      %1150 = vmatprep.subr.bf16.mxu0 0
      %1151 = vmatpush1.bf16.xpose.msra.mxu0 0
      %1152 = vmatprep.subr.bf16.mxu0 0
      %1153 = vmatpush1.bf16.xpose.msra.mxu0 0
      %1154 = vmatprep.mubr.bf16.mxu0 0
      %1155 = vmatmul.mubr.bf16.gmra.mrb[0].mxu0 %v1117
      %v1156 = vpop.f32.mrb[0].mxu0
      %v1157 = vadd.f32 %v1022, %v1156
      %v1158 = vpop.f32.mrb[0].mxu0
      %v1159 = vpop.f32.mrb[0].mxu0
      %v1160 = vpop.f32.mrb[0].mxu0
      %1161 = vdwg.mxu0
      %v1163 = vsel %vm587, %v562, 0
      %v1166 = vsel %vm587, %v566, 0
      %1168 = vmatprep.subr.bf16.mxu0 0
      %1169 = vmatpush1.bf16.xpose.msra.mxu0 %v1166
      %1170 = vmatprep.subr.bf16.mxu0 0
      %1171 = vmatpush1.bf16.xpose.msra.mxu0 0
      %1172 = vmatprep.subr.bf16.mxu0 0
      %1173 = vmatpush1.bf16.xpose.msra.mxu0 0
      %1174 = vmatprep.subr.bf16.mxu0 0
      %1175 = vmatpush1.bf16.xpose.msra.mxu0 0
      %1176 = vmatprep.subr.bf16.mxu0 0
      %1177 = vmatpush1.bf16.xpose.msra.mxu0 0
      %1178 = vmatprep.subr.bf16.mxu0 0
      %1179 = vmatpush1.bf16.xpose.msra.mxu0 0
      %1180 = vmatprep.subr.bf16.mxu0 0
      %1181 = vmatpush1.bf16.xpose.msra.mxu0 0
      %1182 = vmatprep.subr.bf16.mxu0 0
      %1183 = vmatpush1.bf16.xpose.msra.mxu0 0
      %1184 = vmatprep.subr.bf16.mxu0 0
      %1185 = vmatpush1.bf16.xpose.msra.mxu0 0
      %1186 = vmatprep.subr.bf16.mxu0 0
      %1187 = vmatpush1.bf16.xpose.msra.mxu0 0
      %1188 = vmatprep.subr.bf16.mxu0 0
      %1189 = vmatpush1.bf16.xpose.msra.mxu0 0
      %1190 = vmatprep.subr.bf16.mxu0 0
      %1191 = vmatpush1.bf16.xpose.msra.mxu0 0
      %1192 = vmatprep.subr.bf16.mxu0 0
      %1193 = vmatpush1.bf16.xpose.msra.mxu0 0
      %1194 = vmatprep.subr.bf16.mxu0 0
      %1195 = vmatpush1.bf16.xpose.msra.mxu0 0
      %1196 = vmatprep.subr.bf16.mxu0 0
      %1197 = vmatpush1.bf16.xpose.msra.mxu0 0
      %1198 = vmatprep.subr.bf16.mxu0 0
      %1199 = vmatpush1.bf16.xpose.msra.mxu0 0
      %1200 = vmatprep.mubr.bf16.mxu0 0
      %1201 = vmatmul.mubr.bf16.gmra.mrb[0].mxu0 %v1163
      %v1202 = vpop.f32.mrb[0].mxu0
      %v1203 = vadd.f32 %v1023, %v1202
      %v1204 = vpop.f32.mrb[0].mxu0
      %v1205 = vpop.f32.mrb[0].mxu0
      %v1206 = vpop.f32.mrb[0].mxu0
      %1207 = vdwg.mxu0
      %v1208 = vmul.f32 %v1065, 0.35355338
      %v1209 = vmul.f32 %v1111, 0.35355338
      %v1210 = vmul.f32 %v1157, 0.35355338
      %v1211 = vmul.f32 %v1203, 0.35355338
      %v1212 = vld [vmem:[#allocation2] sm:$0xff]
      %v1213 = vld [vmem:[#allocation2 + $0x8] sm:$0xff]
      %v1214 = vld [vmem:[#allocation2 + $0x10] sm:$0xff]
      %v1215 = vld [vmem:[#allocation2 + $0x18] sm:$0xff]
      %v1216 = vsel %vm587, %v1208, -inf
      %1217 = vmax.xlane.f32.xlu0 %v1216
      %v1218 = vpop.xlane.xlu0 %1217
      %v1219 = vsel %vm587, %v1209, -inf
      %1220 = vmax.xlane.f32.xlu0 %v1219
      %v1221 = vpop.xlane.xlu0 %1220
      %v1222 = vsel %vm587, %v1210, -inf
      %1223 = vmax.xlane.f32.xlu0 %v1222
      %v1224 = vpop.xlane.xlu0 %1223
      %v1225 = vsel %vm587, %v1211, -inf
      %1226 = vmax.xlane.f32.xlu0 %v1225
      %v1227 = vpop.xlane.xlu0 %1226
      %v1228 = vmax.f32 %v1212, %v1218
      %v1229 = vmax.f32 %v1213, %v1221
      %v1230 = vmax.f32 %v1214, %v1224
      %v1231 = vmax.f32 %v1215, %v1227
      %v1232 = vsub.f32 %v1212, %v1228
      %v1233 = vsub.f32 %v1213, %v1229
      %v1234 = vsub.f32 %v1214, %v1230
      %v1235 = vsub.f32 %v1215, %v1231
      %v1236 = vmul.f32 %v1232, 1.442695
      %v1237 = vpow.pop %v1236
      %v1238 = vmul.f32 %v1233, 1.442695
      %v1239 = vpow.pop %v1238
      %v1240 = vmul.f32 %v1234, 1.442695
      %v1241 = vpow.pop %v1240
      %v1242 = vmul.f32 %v1235, 1.442695
      %v1243 = vpow.pop %v1242
      %1245 = vset.pattern.permute.xlu0 0
      %1246 = vperm.xlu0 %1245, %v1228
      %v1247 = vpop.permute.xlu0 %1246
      %1250 = vset.pattern.permute.xlu0 0
      %1251 = vperm.xlu0 %1250, %v1229
      %v1252 = vpop.permute.xlu0 %1251
      %1255 = vset.pattern.permute.xlu0 0
      %1256 = vperm.xlu0 %1255, %v1230
      %v1257 = vpop.permute.xlu0 %1256
      %1260 = vset.pattern.permute.xlu0 0
      %1261 = vperm.xlu0 %1260, %v1231
      %v1262 = vpop.permute.xlu0 %1261
      %v1264 = vsub.f32 %v1208, %v1247
      %v1265 = vsub.f32 %v1209, %v1252
      %v1266 = vsub.f32 %v1210, %v1257
      %v1267 = vsub.f32 %v1211, %v1262
      %v1268 = vmul.f32 %v1264, 1.442695
      %v1269 = vpow.pop %v1268
      %v1270 = vmul.f32 %v1265, 1.442695
      %v1271 = vpow.pop %v1270
      %v1272 = vmul.f32 %v1266, 1.442695
      %v1273 = vpow.pop %v1272
      %v1274 = vmul.f32 %v1267, 1.442695
      %v1275 = vpow.pop %v1274
      %v1276 = vpack.c.bf16 %v1269, %v1269
      %v1277 = vpack.c.bf16 %v1271, %v1271
      %v1278 = vpack.c.bf16 %v1273, %v1273
      %v1279 = vpack.c.bf16 %v1275, %v1275
      %v1281 = vsel %vm587, %v1276, 0
      %vm1283 = vcmask 1043456
      %v1285 = vsel %vm1283, %v567, 0
      %1287 = vmatprep.subr.bf16.mxu0 0
      %1288 = vmatpush1.bf16.msra.mxu0 %v1285
      %1289 = vmatprep.subr.bf16.mxu0 0
      %1290 = vmatpush1.bf16.msra.mxu0 0
      %1291 = vmatprep.subr.bf16.mxu0 0
      %1292 = vmatpush1.bf16.msra.mxu0 0
      %1293 = vmatprep.subr.bf16.mxu0 0
      %1294 = vmatpush1.bf16.msra.mxu0 0
      %1295 = vmatprep.subr.bf16.mxu0 0
      %1296 = vmatpush1.bf16.msra.mxu0 0
      %1297 = vmatprep.subr.bf16.mxu0 0
      %1298 = vmatpush1.bf16.msra.mxu0 0
      %1299 = vmatprep.subr.bf16.mxu0 0
      %1300 = vmatpush1.bf16.msra.mxu0 0
      %1301 = vmatprep.subr.bf16.mxu0 0
      %1302 = vmatpush1.bf16.msra.mxu0 0
      %1303 = vmatprep.subr.bf16.mxu0 0
      %1304 = vmatpush1.bf16.msra.mxu0 0
      %1305 = vmatprep.subr.bf16.mxu0 0
      %1306 = vmatpush1.bf16.msra.mxu0 0
      %1307 = vmatprep.subr.bf16.mxu0 0
      %1308 = vmatpush1.bf16.msra.mxu0 0
      %1309 = vmatprep.subr.bf16.mxu0 0
      %1310 = vmatpush1.bf16.msra.mxu0 0
      %1311 = vmatprep.subr.bf16.mxu0 0
      %1312 = vmatpush1.bf16.msra.mxu0 0
      %1313 = vmatprep.subr.bf16.mxu0 0
      %1314 = vmatpush1.bf16.msra.mxu0 0
      %1315 = vmatprep.subr.bf16.mxu0 0
      %1316 = vmatpush1.bf16.msra.mxu0 0
      %1317 = vmatprep.subr.bf16.mxu0 0
      %1318 = vmatpush1.bf16.msra.mxu0 0
      %1319 = vmatprep.mubr.bf16.mxu0 0
      %1320 = vmatmul.mubr.bf16.gmra.mrb[0].mxu0 %v1281
      %v1321 = vpop.f32.mrb[0].mxu0
      %v1322 = vadd.f32 0.0, %v1321
      %v1323 = vpop.f32.mrb[0].mxu0
      %v1324 = vpop.f32.mrb[0].mxu0
      %v1325 = vpop.f32.mrb[0].mxu0
      %1326 = vdwg.mxu0
      %v1328 = vsel %vm587, %v1277, 0
      %v1331 = vsel %vm1283, %v568, 0
      %1333 = vmatprep.subr.bf16.mxu0 0
      %1334 = vmatpush1.bf16.msra.mxu0 %v1331
      %1335 = vmatprep.subr.bf16.mxu0 0
      %1336 = vmatpush1.bf16.msra.mxu0 0
      %1337 = vmatprep.subr.bf16.mxu0 0
      %1338 = vmatpush1.bf16.msra.mxu0 0
      %1339 = vmatprep.subr.bf16.mxu0 0
      %1340 = vmatpush1.bf16.msra.mxu0 0
      %1341 = vmatprep.subr.bf16.mxu0 0
      %1342 = vmatpush1.bf16.msra.mxu0 0
      %1343 = vmatprep.subr.bf16.mxu0 0
      %1344 = vmatpush1.bf16.msra.mxu0 0
      %1345 = vmatprep.subr.bf16.mxu0 0
      %1346 = vmatpush1.bf16.msra.mxu0 0
      %1347 = vmatprep.subr.bf16.mxu0 0
      %1348 = vmatpush1.bf16.msra.mxu0 0
      %1349 = vmatprep.subr.bf16.mxu0 0
      %1350 = vmatpush1.bf16.msra.mxu0 0
      %1351 = vmatprep.subr.bf16.mxu0 0
      %1352 = vmatpush1.bf16.msra.mxu0 0
      %1353 = vmatprep.subr.bf16.mxu0 0
      %1354 = vmatpush1.bf16.msra.mxu0 0
      %1355 = vmatprep.subr.bf16.mxu0 0
      %1356 = vmatpush1.bf16.msra.mxu0 0
      %1357 = vmatprep.subr.bf16.mxu0 0
      %1358 = vmatpush1.bf16.msra.mxu0 0
      %1359 = vmatprep.subr.bf16.mxu0 0
      %1360 = vmatpush1.bf16.msra.mxu0 0
      %1361 = vmatprep.subr.bf16.mxu0 0
      %1362 = vmatpush1.bf16.msra.mxu0 0
      %1363 = vmatprep.subr.bf16.mxu0 0
      %1364 = vmatpush1.bf16.msra.mxu0 0
      %1365 = vmatprep.mubr.bf16.mxu0 0
      %1366 = vmatmul.mubr.bf16.gmra.mrb[0].mxu0 %v1328
      %v1367 = vpop.f32.mrb[0].mxu0
      %v1368 = vadd.f32 0.0, %v1367
      %v1369 = vpop.f32.mrb[0].mxu0
      %v1370 = vpop.f32.mrb[0].mxu0
      %v1371 = vpop.f32.mrb[0].mxu0
      %1372 = vdwg.mxu0
      %v1374 = vsel %vm587, %v1278, 0
      %v1377 = vsel %vm1283, %v569, 0
      %1379 = vmatprep.subr.bf16.mxu0 0
      %1380 = vmatpush1.bf16.msra.mxu0 %v1377
      %1381 = vmatprep.subr.bf16.mxu0 0
      %1382 = vmatpush1.bf16.msra.mxu0 0
      %1383 = vmatprep.subr.bf16.mxu0 0
      %1384 = vmatpush1.bf16.msra.mxu0 0
      %1385 = vmatprep.subr.bf16.mxu0 0
      %1386 = vmatpush1.bf16.msra.mxu0 0
      %1387 = vmatprep.subr.bf16.mxu0 0
      %1388 = vmatpush1.bf16.msra.mxu0 0
      %1389 = vmatprep.subr.bf16.mxu0 0
      %1390 = vmatpush1.bf16.msra.mxu0 0
      %1391 = vmatprep.subr.bf16.mxu0 0
      %1392 = vmatpush1.bf16.msra.mxu0 0
      %1393 = vmatprep.subr.bf16.mxu0 0
      %1394 = vmatpush1.bf16.msra.mxu0 0
      %1395 = vmatprep.subr.bf16.mxu0 0
      %1396 = vmatpush1.bf16.msra.mxu0 0
      %1397 = vmatprep.subr.bf16.mxu0 0
      %1398 = vmatpush1.bf16.msra.mxu0 0
      %1399 = vmatprep.subr.bf16.mxu0 0
      %1400 = vmatpush1.bf16.msra.mxu0 0
      %1401 = vmatprep.subr.bf16.mxu0 0
      %1402 = vmatpush1.bf16.msra.mxu0 0
      %1403 = vmatprep.subr.bf16.mxu0 0
      %1404 = vmatpush1.bf16.msra.mxu0 0
      %1405 = vmatprep.subr.bf16.mxu0 0
      %1406 = vmatpush1.bf16.msra.mxu0 0
      %1407 = vmatprep.subr.bf16.mxu0 0
      %1408 = vmatpush1.bf16.msra.mxu0 0
      %1409 = vmatprep.subr.bf16.mxu0 0
      %1410 = vmatpush1.bf16.msra.mxu0 0
      %1411 = vmatprep.mubr.bf16.mxu0 0
      %1412 = vmatmul.mubr.bf16.gmra.mrb[0].mxu0 %v1374
      %v1413 = vpop.f32.mrb[0].mxu0
      %v1414 = vadd.f32 0.0, %v1413
      %v1415 = vpop.f32.mrb[0].mxu0
      %v1416 = vpop.f32.mrb[0].mxu0
      %v1417 = vpop.f32.mrb[0].mxu0
      %1418 = vdwg.mxu0
      %v1420 = vsel %vm587, %v1279, 0
      %v1423 = vsel %vm1283, %v570, 0
      %1425 = vmatprep.subr.bf16.mxu0 0
      %1426 = vmatpush1.bf16.msra.mxu0 %v1423
      %1427 = vmatprep.subr.bf16.mxu0 0
      %1428 = vmatpush1.bf16.msra.mxu0 0
      %1429 = vmatprep.subr.bf16.mxu0 0
      %1430 = vmatpush1.bf16.msra.mxu0 0
      %1431 = vmatprep.subr.bf16.mxu0 0
      %1432 = vmatpush1.bf16.msra.mxu0 0
      %1433 = vmatprep.subr.bf16.mxu0 0
      %1434 = vmatpush1.bf16.msra.mxu0 0
      %1435 = vmatprep.subr.bf16.mxu0 0
      %1436 = vmatpush1.bf16.msra.mxu0 0
      %1437 = vmatprep.subr.bf16.mxu0 0
      %1438 = vmatpush1.bf16.msra.mxu0 0
      %1439 = vmatprep.subr.bf16.mxu0 0
      %1440 = vmatpush1.bf16.msra.mxu0 0
      %1441 = vmatprep.subr.bf16.mxu0 0
      %1442 = vmatpush1.bf16.msra.mxu0 0
      %1443 = vmatprep.subr.bf16.mxu0 0
      %1444 = vmatpush1.bf16.msra.mxu0 0
      %1445 = vmatprep.subr.bf16.mxu0 0
      %1446 = vmatpush1.bf16.msra.mxu0 0
      %1447 = vmatprep.subr.bf16.mxu0 0
      %1448 = vmatpush1.bf16.msra.mxu0 0
      %1449 = vmatprep.subr.bf16.mxu0 0
      %1450 = vmatpush1.bf16.msra.mxu0 0
      %1451 = vmatprep.subr.bf16.mxu0 0
      %1452 = vmatpush1.bf16.msra.mxu0 0
      %1453 = vmatprep.subr.bf16.mxu0 0
      %1454 = vmatpush1.bf16.msra.mxu0 0
      %1455 = vmatprep.subr.bf16.mxu0 0
      %1456 = vmatpush1.bf16.msra.mxu0 0
      %1457 = vmatprep.mubr.bf16.mxu0 0
      %1458 = vmatmul.mubr.bf16.gmra.mrb[0].mxu0 %v1420
      %v1459 = vpop.f32.mrb[0].mxu0
      %v1460 = vadd.f32 0.0, %v1459
      %v1461 = vpop.f32.mrb[0].mxu0
      %v1462 = vpop.f32.mrb[0].mxu0
      %v1463 = vpop.f32.mrb[0].mxu0
      %1464 = vdwg.mxu0
      %v1466 = vunpack.c.l.s4 1983009808
      %v1467 = vunpack.c.0.s8 %v1466
      %v1468 = vlaneseq
      %v1469 = vshrl.u32 %v1468, 7
      %v1470 = vsub.s32 %v1467, %v1469
      %v1471 = vrot.slane %v1276, %v1470
      %v1473 = vunpack.c.l.s4 1983009808
      %v1474 = vunpack.c.0.s8 %v1473
      %v1475 = vlaneseq
      %v1476 = vshrl.u32 %v1475, 7
      %v1477 = vsub.s32 %v1474, %v1476
      %v1478 = vrot.slane %v1278, %v1477
      %v1479 = vcombine.low %v1471, %v1478
      %v1480 = vcombine.high %v1471, %v1478
      %v1482 = vunpack.c.l.s4 1934713408
      %v1483 = vunpack.c.0.s8 %v1482
      %v1484 = vlaneseq
      %v1485 = vshrl.u32 %v1484, 7
      %v1486 = vsub.s32 %v1483, %v1485
      %v1487 = vrot.slane %v1479, %v1486
      %v1489 = vunpack.c.l.s4 1934713408
      %v1490 = vunpack.c.0.s8 %v1489
      %v1491 = vlaneseq
      %v1492 = vshrl.u32 %v1491, 7
      %v1493 = vsub.s32 %v1490, %v1492
      %v1494 = vrot.slane %v1480, %v1493
      %v1495 = vcombine.high %v1487, 0
      %v1496 = vcombine.high %v1494, 0
      %v1498 = vunpack.c.l.s4 1983009808
      %v1499 = vunpack.c.0.s8 %v1498
      %v1500 = vlaneseq
      %v1501 = vshrl.u32 %v1500, 7
      %v1502 = vsub.s32 %v1499, %v1501
      %v1503 = vrot.slane %v1277, %v1502
      %v1505 = vunpack.c.l.s4 1983009808
      %v1506 = vunpack.c.0.s8 %v1505
      %v1507 = vlaneseq
      %v1508 = vshrl.u32 %v1507, 7
      %v1509 = vsub.s32 %v1506, %v1508
      %v1510 = vrot.slane %v1279, %v1509
      %v1511 = vcombine.low %v1503, %v1510
      %v1512 = vcombine.high %v1503, %v1510
      %v1514 = vunpack.c.l.s4 1934713408
      %v1515 = vunpack.c.0.s8 %v1514
      %v1516 = vlaneseq
      %v1517 = vshrl.u32 %v1516, 7
      %v1518 = vsub.s32 %v1515, %v1517
      %v1519 = vrot.slane %v1511, %v1518
      %v1521 = vunpack.c.l.s4 1934713408
      %v1522 = vunpack.c.0.s8 %v1521
      %v1523 = vlaneseq
      %v1524 = vshrl.u32 %v1523, 7
      %v1525 = vsub.s32 %v1522, %v1524
      %v1526 = vrot.slane %v1512, %v1525
      %v1527 = vcombine.high %v1519, 0
      %v1528 = vcombine.high %v1526, 0
      %v1531 = vpack.i.b16 %v1519, %v1487
      %v1532 = vshrl.u32 %v1487, 16
      %v1533 = vshrl.u32 %v1519, 16
      %v1534 = vpack.i.b16 %v1533, %v1532
      %v1537 = vpack.i.b16 %v1527, %v1495
      %v1538 = vshrl.u32 %v1495, 16
      %v1539 = vshrl.u32 %v1527, 16
      %v1540 = vpack.i.b16 %v1539, %v1538
      %v1543 = vpack.i.b16 %v1526, %v1494
      %v1544 = vshrl.u32 %v1494, 16
      %v1545 = vshrl.u32 %v1526, 16
      %v1546 = vpack.i.b16 %v1545, %v1544
      %v1549 = vpack.i.b16 %v1528, %v1496
      %v1550 = vshrl.u32 %v1496, 16
      %v1551 = vshrl.u32 %v1528, 16
      %v1552 = vpack.i.b16 %v1551, %v1550
      %v1554 = vsel %vm587, %v1531, 0
      %v1556 = vsel %vm1283, %v571, 0
      %1558 = vmatprep.subr.bf16.mxu0 0
      %1559 = vmatpush1.bf16.msra.mxu0 %v1556
      %1560 = vmatprep.subr.bf16.mxu0 0
      %1561 = vmatpush1.bf16.msra.mxu0 0
      %1562 = vmatprep.subr.bf16.mxu0 0
      %1563 = vmatpush1.bf16.msra.mxu0 0
      %1564 = vmatprep.subr.bf16.mxu0 0
      %1565 = vmatpush1.bf16.msra.mxu0 0
      %1566 = vmatprep.subr.bf16.mxu0 0
      %1567 = vmatpush1.bf16.msra.mxu0 0
      %1568 = vmatprep.subr.bf16.mxu0 0
      %1569 = vmatpush1.bf16.msra.mxu0 0
      %1570 = vmatprep.subr.bf16.mxu0 0
      %1571 = vmatpush1.bf16.msra.mxu0 0
      %1572 = vmatprep.subr.bf16.mxu0 0
      %1573 = vmatpush1.bf16.msra.mxu0 0
      %1574 = vmatprep.subr.bf16.mxu0 0
      %1575 = vmatpush1.bf16.msra.mxu0 0
      %1576 = vmatprep.subr.bf16.mxu0 0
      %1577 = vmatpush1.bf16.msra.mxu0 0
      %1578 = vmatprep.subr.bf16.mxu0 0
      %1579 = vmatpush1.bf16.msra.mxu0 0
      %1580 = vmatprep.subr.bf16.mxu0 0
      %1581 = vmatpush1.bf16.msra.mxu0 0
      %1582 = vmatprep.subr.bf16.mxu0 0
      %1583 = vmatpush1.bf16.msra.mxu0 0
      %1584 = vmatprep.subr.bf16.mxu0 0
      %1585 = vmatpush1.bf16.msra.mxu0 0
      %1586 = vmatprep.subr.bf16.mxu0 0
      %1587 = vmatpush1.bf16.msra.mxu0 0
      %1588 = vmatprep.subr.bf16.mxu0 0
      %1589 = vmatpush1.bf16.msra.mxu0 0
      %1590 = vmatprep.mubr.bf16.mxu0 0
      %1591 = vmatmul.mubr.bf16.gmra.mrb[0].mxu0 %v1554
      %v1592 = vpop.f32.mrb[0].mxu0
      %v1593 = vadd.f32 0.0, %v1592
      %v1594 = vpop.f32.mrb[0].mxu0
      %v1595 = vpop.f32.mrb[0].mxu0
      %v1596 = vpop.f32.mrb[0].mxu0
      %1597 = vdwg.mxu0
      %v1599 = vsel %vm587, %v1534, 0
      %v1601 = vsel %vm1283, %v572, 0
      %1603 = vmatprep.subr.bf16.mxu0 0
      %1604 = vmatpush1.bf16.msra.mxu0 %v1601
      %1605 = vmatprep.subr.bf16.mxu0 0
      %1606 = vmatpush1.bf16.msra.mxu0 0
      %1607 = vmatprep.subr.bf16.mxu0 0
      %1608 = vmatpush1.bf16.msra.mxu0 0
      %1609 = vmatprep.subr.bf16.mxu0 0
      %1610 = vmatpush1.bf16.msra.mxu0 0
      %1611 = vmatprep.subr.bf16.mxu0 0
      %1612 = vmatpush1.bf16.msra.mxu0 0
      %1613 = vmatprep.subr.bf16.mxu0 0
      %1614 = vmatpush1.bf16.msra.mxu0 0
      %1615 = vmatprep.subr.bf16.mxu0 0
      %1616 = vmatpush1.bf16.msra.mxu0 0
      %1617 = vmatprep.subr.bf16.mxu0 0
      %1618 = vmatpush1.bf16.msra.mxu0 0
      %1619 = vmatprep.subr.bf16.mxu0 0
      %1620 = vmatpush1.bf16.msra.mxu0 0
      %1621 = vmatprep.subr.bf16.mxu0 0
      %1622 = vmatpush1.bf16.msra.mxu0 0
      %1623 = vmatprep.subr.bf16.mxu0 0
      %1624 = vmatpush1.bf16.msra.mxu0 0
      %1625 = vmatprep.subr.bf16.mxu0 0
      %1626 = vmatpush1.bf16.msra.mxu0 0
      %1627 = vmatprep.subr.bf16.mxu0 0
      %1628 = vmatpush1.bf16.msra.mxu0 0
      %1629 = vmatprep.subr.bf16.mxu0 0
      %1630 = vmatpush1.bf16.msra.mxu0 0
      %1631 = vmatprep.subr.bf16.mxu0 0
      %1632 = vmatpush1.bf16.msra.mxu0 0
      %1633 = vmatprep.subr.bf16.mxu0 0
      %1634 = vmatpush1.bf16.msra.mxu0 0
      %1635 = vmatprep.mubr.bf16.mxu0 0
      %1636 = vmatmul.mubr.bf16.gmra.mrb[0].mxu0 %v1599
      %v1637 = vpop.f32.mrb[0].mxu0
      %v1638 = vadd.f32 0.0, %v1637
      %v1639 = vpop.f32.mrb[0].mxu0
      %v1640 = vpop.f32.mrb[0].mxu0
      %v1641 = vpop.f32.mrb[0].mxu0
      %1642 = vdwg.mxu0
      %v1644 = vsel %vm587, %v1537, 0
      %v1646 = vsel %vm1283, %v573, 0
      %1648 = vmatprep.subr.bf16.mxu0 0
      %1649 = vmatpush1.bf16.msra.mxu0 %v1646
      %1650 = vmatprep.subr.bf16.mxu0 0
      %1651 = vmatpush1.bf16.msra.mxu0 0
      %1652 = vmatprep.subr.bf16.mxu0 0
      %1653 = vmatpush1.bf16.msra.mxu0 0
      %1654 = vmatprep.subr.bf16.mxu0 0
      %1655 = vmatpush1.bf16.msra.mxu0 0
      %1656 = vmatprep.subr.bf16.mxu0 0
      %1657 = vmatpush1.bf16.msra.mxu0 0
      %1658 = vmatprep.subr.bf16.mxu0 0
      %1659 = vmatpush1.bf16.msra.mxu0 0
      %1660 = vmatprep.subr.bf16.mxu0 0
      %1661 = vmatpush1.bf16.msra.mxu0 0
      %1662 = vmatprep.subr.bf16.mxu0 0
      %1663 = vmatpush1.bf16.msra.mxu0 0
      %1664 = vmatprep.subr.bf16.mxu0 0
      %1665 = vmatpush1.bf16.msra.mxu0 0
      %1666 = vmatprep.subr.bf16.mxu0 0
      %1667 = vmatpush1.bf16.msra.mxu0 0
      %1668 = vmatprep.subr.bf16.mxu0 0
      %1669 = vmatpush1.bf16.msra.mxu0 0
      %1670 = vmatprep.subr.bf16.mxu0 0
      %1671 = vmatpush1.bf16.msra.mxu0 0
      %1672 = vmatprep.subr.bf16.mxu0 0
      %1673 = vmatpush1.bf16.msra.mxu0 0
      %1674 = vmatprep.subr.bf16.mxu0 0
      %1675 = vmatpush1.bf16.msra.mxu0 0
      %1676 = vmatprep.subr.bf16.mxu0 0
      %1677 = vmatpush1.bf16.msra.mxu0 0
      %1678 = vmatprep.subr.bf16.mxu0 0
      %1679 = vmatpush1.bf16.msra.mxu0 0
      %1680 = vmatprep.mubr.bf16.mxu0 0
      %1681 = vmatmul.mubr.bf16.gmra.mrb[0].mxu0 %v1644
      %v1682 = vpop.f32.mrb[0].mxu0
      %v1683 = vadd.f32 0.0, %v1682
      %v1684 = vpop.f32.mrb[0].mxu0
      %v1685 = vpop.f32.mrb[0].mxu0
      %v1686 = vpop.f32.mrb[0].mxu0
      %1687 = vdwg.mxu0
      %v1689 = vsel %vm587, %v1540, 0
      %v1691 = vsel %vm1283, %v574, 0
      %1693 = vmatprep.subr.bf16.mxu0 0
      %1694 = vmatpush1.bf16.msra.mxu0 %v1691
      %1695 = vmatprep.subr.bf16.mxu0 0
      %1696 = vmatpush1.bf16.msra.mxu0 0
      %1697 = vmatprep.subr.bf16.mxu0 0
      %1698 = vmatpush1.bf16.msra.mxu0 0
      %1699 = vmatprep.subr.bf16.mxu0 0
      %1700 = vmatpush1.bf16.msra.mxu0 0
      %1701 = vmatprep.subr.bf16.mxu0 0
      %1702 = vmatpush1.bf16.msra.mxu0 0
      %1703 = vmatprep.subr.bf16.mxu0 0
      %1704 = vmatpush1.bf16.msra.mxu0 0
      %1705 = vmatprep.subr.bf16.mxu0 0
      %1706 = vmatpush1.bf16.msra.mxu0 0
      %1707 = vmatprep.subr.bf16.mxu0 0
      %1708 = vmatpush1.bf16.msra.mxu0 0
      %1709 = vmatprep.subr.bf16.mxu0 0
      %1710 = vmatpush1.bf16.msra.mxu0 0
      %1711 = vmatprep.subr.bf16.mxu0 0
      %1712 = vmatpush1.bf16.msra.mxu0 0
      %1713 = vmatprep.subr.bf16.mxu0 0
      %1714 = vmatpush1.bf16.msra.mxu0 0
      %1715 = vmatprep.subr.bf16.mxu0 0
      %1716 = vmatpush1.bf16.msra.mxu0 0
      %1717 = vmatprep.subr.bf16.mxu0 0
      %1718 = vmatpush1.bf16.msra.mxu0 0
      %1719 = vmatprep.subr.bf16.mxu0 0
      %1720 = vmatpush1.bf16.msra.mxu0 0
      %1721 = vmatprep.subr.bf16.mxu0 0
      %1722 = vmatpush1.bf16.msra.mxu0 0
      %1723 = vmatprep.subr.bf16.mxu0 0
      %1724 = vmatpush1.bf16.msra.mxu0 0
      %1725 = vmatprep.mubr.bf16.mxu0 0
      %1726 = vmatmul.mubr.bf16.gmra.mrb[0].mxu0 %v1689
      %v1727 = vpop.f32.mrb[0].mxu0
      %v1728 = vadd.f32 0.0, %v1727
      %v1729 = vpop.f32.mrb[0].mxu0
      %v1730 = vpop.f32.mrb[0].mxu0
      %v1731 = vpop.f32.mrb[0].mxu0
      %1732 = vdwg.mxu0
      %v1734 = vsel %vm587, %v1543, 0
      %v1736 = vsel %vm1283, %v575, 0
      %1738 = vmatprep.subr.bf16.mxu0 0
      %1739 = vmatpush1.bf16.msra.mxu0 %v1736
      %1740 = vmatprep.subr.bf16.mxu0 0
      %1741 = vmatpush1.bf16.msra.mxu0 0
      %1742 = vmatprep.subr.bf16.mxu0 0
      %1743 = vmatpush1.bf16.msra.mxu0 0
      %1744 = vmatprep.subr.bf16.mxu0 0
      %1745 = vmatpush1.bf16.msra.mxu0 0
      %1746 = vmatprep.subr.bf16.mxu0 0
      %1747 = vmatpush1.bf16.msra.mxu0 0
      %1748 = vmatprep.subr.bf16.mxu0 0
      %1749 = vmatpush1.bf16.msra.mxu0 0
      %1750 = vmatprep.subr.bf16.mxu0 0
      %1751 = vmatpush1.bf16.msra.mxu0 0
      %1752 = vmatprep.subr.bf16.mxu0 0
      %1753 = vmatpush1.bf16.msra.mxu0 0
      %1754 = vmatprep.subr.bf16.mxu0 0
      %1755 = vmatpush1.bf16.msra.mxu0 0
      %1756 = vmatprep.subr.bf16.mxu0 0
      %1757 = vmatpush1.bf16.msra.mxu0 0
      %1758 = vmatprep.subr.bf16.mxu0 0
      %1759 = vmatpush1.bf16.msra.mxu0 0
      %1760 = vmatprep.subr.bf16.mxu0 0
      %1761 = vmatpush1.bf16.msra.mxu0 0
      %1762 = vmatprep.subr.bf16.mxu0 0
      %1763 = vmatpush1.bf16.msra.mxu0 0
      %1764 = vmatprep.subr.bf16.mxu0 0
      %1765 = vmatpush1.bf16.msra.mxu0 0
      %1766 = vmatprep.subr.bf16.mxu0 0
      %1767 = vmatpush1.bf16.msra.mxu0 0
      %1768 = vmatprep.subr.bf16.mxu0 0
      %1769 = vmatpush1.bf16.msra.mxu0 0
      %1770 = vmatprep.mubr.bf16.mxu0 0
      %1771 = vmatmul.mubr.bf16.gmra.mrb[0].mxu0 %v1734
      %v1772 = vpop.f32.mrb[0].mxu0
      %v1773 = vadd.f32 0.0, %v1772
      %v1774 = vpop.f32.mrb[0].mxu0
      %v1775 = vpop.f32.mrb[0].mxu0
      %v1776 = vpop.f32.mrb[0].mxu0
      %1777 = vdwg.mxu0
      %v1779 = vsel %vm587, %v1546, 0
      %v1781 = vsel %vm1283, %v576, 0
      %1783 = vmatprep.subr.bf16.mxu0 0
      %1784 = vmatpush1.bf16.msra.mxu0 %v1781
      %1785 = vmatprep.subr.bf16.mxu0 0
      %1786 = vmatpush1.bf16.msra.mxu0 0
      %1787 = vmatprep.subr.bf16.mxu0 0
      %1788 = vmatpush1.bf16.msra.mxu0 0
      %1789 = vmatprep.subr.bf16.mxu0 0
      %1790 = vmatpush1.bf16.msra.mxu0 0
      %1791 = vmatprep.subr.bf16.mxu0 0
      %1792 = vmatpush1.bf16.msra.mxu0 0
      %1793 = vmatprep.subr.bf16.mxu0 0
      %1794 = vmatpush1.bf16.msra.mxu0 0
      %1795 = vmatprep.subr.bf16.mxu0 0
      %1796 = vmatpush1.bf16.msra.mxu0 0
      %1797 = vmatprep.subr.bf16.mxu0 0
      %1798 = vmatpush1.bf16.msra.mxu0 0
      %1799 = vmatprep.subr.bf16.mxu0 0
      %1800 = vmatpush1.bf16.msra.mxu0 0
      %1801 = vmatprep.subr.bf16.mxu0 0
      %1802 = vmatpush1.bf16.msra.mxu0 0
      %1803 = vmatprep.subr.bf16.mxu0 0
      %1804 = vmatpush1.bf16.msra.mxu0 0
      %1805 = vmatprep.subr.bf16.mxu0 0
      %1806 = vmatpush1.bf16.msra.mxu0 0
      %1807 = vmatprep.subr.bf16.mxu0 0
      %1808 = vmatpush1.bf16.msra.mxu0 0
      %1809 = vmatprep.subr.bf16.mxu0 0
      %1810 = vmatpush1.bf16.msra.mxu0 0
      %1811 = vmatprep.subr.bf16.mxu0 0
      %1812 = vmatpush1.bf16.msra.mxu0 0
      %1813 = vmatprep.subr.bf16.mxu0 0
      %1814 = vmatpush1.bf16.msra.mxu0 0
      %1815 = vmatprep.mubr.bf16.mxu0 0
      %1816 = vmatmul.mubr.bf16.gmra.mrb[0].mxu0 %v1779
      %v1817 = vpop.f32.mrb[0].mxu0
      %v1818 = vadd.f32 0.0, %v1817
      %v1819 = vpop.f32.mrb[0].mxu0
      %v1820 = vpop.f32.mrb[0].mxu0
      %v1821 = vpop.f32.mrb[0].mxu0
      %1822 = vdwg.mxu0
      %v1824 = vsel %vm587, %v1549, 0
      %v1826 = vsel %vm1283, %v577, 0
      %1828 = vmatprep.subr.bf16.mxu0 0
      %1829 = vmatpush1.bf16.msra.mxu0 %v1826
      %1830 = vmatprep.subr.bf16.mxu0 0
      %1831 = vmatpush1.bf16.msra.mxu0 0
      %1832 = vmatprep.subr.bf16.mxu0 0
      %1833 = vmatpush1.bf16.msra.mxu0 0
      %1834 = vmatprep.subr.bf16.mxu0 0
      %1835 = vmatpush1.bf16.msra.mxu0 0
      %1836 = vmatprep.subr.bf16.mxu0 0
      %1837 = vmatpush1.bf16.msra.mxu0 0
      %1838 = vmatprep.subr.bf16.mxu0 0
      %1839 = vmatpush1.bf16.msra.mxu0 0
      %1840 = vmatprep.subr.bf16.mxu0 0
      %1841 = vmatpush1.bf16.msra.mxu0 0
      %1842 = vmatprep.subr.bf16.mxu0 0
      %1843 = vmatpush1.bf16.msra.mxu0 0
      %1844 = vmatprep.subr.bf16.mxu0 0
      %1845 = vmatpush1.bf16.msra.mxu0 0
      %1846 = vmatprep.subr.bf16.mxu0 0
      %1847 = vmatpush1.bf16.msra.mxu0 0
      %1848 = vmatprep.subr.bf16.mxu0 0
      %1849 = vmatpush1.bf16.msra.mxu0 0
      %1850 = vmatprep.subr.bf16.mxu0 0
      %1851 = vmatpush1.bf16.msra.mxu0 0
      %1852 = vmatprep.subr.bf16.mxu0 0
      %1853 = vmatpush1.bf16.msra.mxu0 0
      %1854 = vmatprep.subr.bf16.mxu0 0
      %1855 = vmatpush1.bf16.msra.mxu0 0
      %1856 = vmatprep.subr.bf16.mxu0 0
      %1857 = vmatpush1.bf16.msra.mxu0 0
      %1858 = vmatprep.subr.bf16.mxu0 0
      %1859 = vmatpush1.bf16.msra.mxu0 0
      %1860 = vmatprep.mubr.bf16.mxu0 0
      %1861 = vmatmul.mubr.bf16.gmra.mrb[0].mxu0 %v1824
      %v1862 = vpop.f32.mrb[0].mxu0
      %v1863 = vadd.f32 0.0, %v1862
      %v1864 = vpop.f32.mrb[0].mxu0
      %v1865 = vpop.f32.mrb[0].mxu0
      %v1866 = vpop.f32.mrb[0].mxu0
      %1867 = vdwg.mxu0
      %v1869 = vsel %vm587, %v1552, 0
      %v1871 = vsel %vm1283, %v578, 0
      %1873 = vmatprep.subr.bf16.mxu0 0
      %1874 = vmatpush1.bf16.msra.mxu0 %v1871
      %1875 = vmatprep.subr.bf16.mxu0 0
      %1876 = vmatpush1.bf16.msra.mxu0 0
      %1877 = vmatprep.subr.bf16.mxu0 0
      %1878 = vmatpush1.bf16.msra.mxu0 0
      %1879 = vmatprep.subr.bf16.mxu0 0
      %1880 = vmatpush1.bf16.msra.mxu0 0
      %1881 = vmatprep.subr.bf16.mxu0 0
      %1882 = vmatpush1.bf16.msra.mxu0 0
      %1883 = vmatprep.subr.bf16.mxu0 0
      %1884 = vmatpush1.bf16.msra.mxu0 0
      %1885 = vmatprep.subr.bf16.mxu0 0
      %1886 = vmatpush1.bf16.msra.mxu0 0
      %1887 = vmatprep.subr.bf16.mxu0 0
      %1888 = vmatpush1.bf16.msra.mxu0 0
      %1889 = vmatprep.subr.bf16.mxu0 0
      %1890 = vmatpush1.bf16.msra.mxu0 0
      %1891 = vmatprep.subr.bf16.mxu0 0
      %1892 = vmatpush1.bf16.msra.mxu0 0
      %1893 = vmatprep.subr.bf16.mxu0 0
      %1894 = vmatpush1.bf16.msra.mxu0 0
      %1895 = vmatprep.subr.bf16.mxu0 0
      %1896 = vmatpush1.bf16.msra.mxu0 0
      %1897 = vmatprep.subr.bf16.mxu0 0
      %1898 = vmatpush1.bf16.msra.mxu0 0
      %1899 = vmatprep.subr.bf16.mxu0 0
      %1900 = vmatpush1.bf16.msra.mxu0 0
      %1901 = vmatprep.subr.bf16.mxu0 0
      %1902 = vmatpush1.bf16.msra.mxu0 0
      %1903 = vmatprep.subr.bf16.mxu0 0
      %1904 = vmatpush1.bf16.msra.mxu0 0
      %1905 = vmatprep.mubr.bf16.mxu0 0
      %1906 = vmatmul.mubr.bf16.gmra.mrb[0].mxu0 %v1869
      %v1907 = vpop.f32.mrb[0].mxu0
      %v1908 = vadd.f32 0.0, %v1907
      %v1909 = vpop.f32.mrb[0].mxu0
      %v1910 = vpop.f32.mrb[0].mxu0
      %v1911 = vpop.f32.mrb[0].mxu0
      %1912 = vdwg.mxu0
      %v1913 = vcombine.low %v1593, %v1683
      %v1915 = vunpack.c.l.s4 1983009808
      %v1916 = vunpack.c.0.s8 %v1915
      %v1917 = vlaneseq
      %v1918 = vshrl.u32 %v1917, 7
      %v1919 = vsub.s32 %v1916, %v1918
      %v1920 = vrot.slane %v1913, %v1919
      %v1921 = vcombine.low %v1638, %v1728
      %v1923 = vunpack.c.l.s4 1983009808
      %v1924 = vunpack.c.0.s8 %v1923
      %v1925 = vlaneseq
      %v1926 = vshrl.u32 %v1925, 7
      %v1927 = vsub.s32 %v1924, %v1926
      %v1928 = vrot.slane %v1921, %v1927
      %v1929 = vcombine.low %v1773, %v1863
      %v1931 = vunpack.c.l.s4 1983009808
      %v1932 = vunpack.c.0.s8 %v1931
      %v1933 = vlaneseq
      %v1934 = vshrl.u32 %v1933, 7
      %v1935 = vsub.s32 %v1932, %v1934
      %v1936 = vrot.slane %v1929, %v1935
      %v1937 = vcombine.low %v1818, %v1908
      %v1939 = vunpack.c.l.s4 1983009808
      %v1940 = vunpack.c.0.s8 %v1939
      %v1941 = vlaneseq
      %v1942 = vshrl.u32 %v1941, 7
      %v1943 = vsub.s32 %v1940, %v1942
      %v1944 = vrot.slane %v1937, %v1943
      %v1945 = vcombine.low %v1920, %v1928
      %v1946 = vcombine.high %v1920, %v1928
      %v1948 = vunpack.c.l.s4 1934713408
      %v1949 = vunpack.c.0.s8 %v1948
      %v1950 = vlaneseq
      %v1951 = vshrl.u32 %v1950, 7
      %v1952 = vsub.s32 %v1949, %v1951
      %v1953 = vrot.slane %v1945, %v1952
      %v1955 = vunpack.c.l.s4 1934713408
      %v1956 = vunpack.c.0.s8 %v1955
      %v1957 = vlaneseq
      %v1958 = vshrl.u32 %v1957, 7
      %v1959 = vsub.s32 %v1956, %v1958
      %v1960 = vrot.slane %v1946, %v1959
      %v1961 = vcombine.low %v1936, %v1944
      %v1962 = vcombine.high %v1936, %v1944
      %v1964 = vunpack.c.l.s4 1934713408
      %v1965 = vunpack.c.0.s8 %v1964
      %v1966 = vlaneseq
      %v1967 = vshrl.u32 %v1966, 7
      %v1968 = vsub.s32 %v1965, %v1967
      %v1969 = vrot.slane %v1961, %v1968
      %v1971 = vunpack.c.l.s4 1934713408
      %v1972 = vunpack.c.0.s8 %v1971
      %v1973 = vlaneseq
      %v1974 = vshrl.u32 %v1973, 7
      %v1975 = vsub.s32 %v1972, %v1974
      %v1976 = vrot.slane %v1962, %v1975
      %v1977 = vcombine.low %v1953, %v1969
      %v1978 = vcombine.high %v1953, %v1969
      %v1979 = vcombine.low %v1960, %v1976
      %v1980 = vcombine.high %v1960, %v1976
      %v1981 = vld [vmem:[%s5] sm:$0xf]
      %v1984 = vunpack.c.l.s4 1966171168
      %v1985 = vunpack.c.0.s8 %v1984
      %v1986 = vlaneseq
      %v1987 = vshrl.u32 %v1986, 7
      %v1988 = vsub.s32 %v1985, %v1987
      %v1989 = vrot.slane %v1981, %v1988
      %v1990 = vcombine.high %v1989, %v1989
      %v1992 = vunpack.c.l.s4 1966171168
      %v1993 = vunpack.c.0.s8 %v1992
      %v1994 = vlaneseq
      %v1995 = vshrl.u32 %v1994, 7
      %v1996 = vsub.s32 %v1993, %v1995
      %v1997 = vrot.slane %v1989, %v1996
      %v1999 = vunpack.c.l.s4 1966171168
      %v2000 = vunpack.c.0.s8 %v1999
      %v2001 = vlaneseq
      %v2002 = vshrl.u32 %v2001, 7
      %v2003 = vsub.s32 %v2000, %v2002
      %v2004 = vrot.slane %v1990, %v2003
      %v2005 = vcombine.high %v1997, %v1997
      %v2006 = vcombine.high %v2004, %v2004
      %v2007 = vlaneseq
      %v2008 = vshrl.u32 %v2007, 7
      %v2009 = vsub.s32 0, %v2008
      %v2010 = vrot.slane %v1997, %v2009
      %v2011 = vlaneseq
      %v2012 = vshrl.u32 %v2011, 7
      %v2013 = vsub.s32 0, %v2012
      %v2014 = vrot.slane %v2004, %v2013
      %v2015 = vlaneseq
      %v2016 = vshrl.u32 %v2015, 7
      %v2017 = vsub.s32 0, %v2016
      %v2018 = vrot.slane %v2005, %v2017
      %v2019 = vlaneseq
      %v2020 = vshrl.u32 %v2019, 7
      %v2021 = vsub.s32 0, %v2020
      %v2022 = vrot.slane %v2006, %v2021
      %v2027 = vmul.f32 %v1977, %v2010
      %v2028 = vmul.f32 %v1978, %v2014
      %v2029 = vmul.f32 %v1979, %v2018
      %v2030 = vmul.f32 %v1980, %v2022
      %vm2031 = vcmask 7168
      %2032 = vst.msk [vmem:[#allocation2] sm:$0xff] %vm2031, %v1228
      %2033 = vst.msk [vmem:[#allocation2 + $0x8] sm:$0xff] %vm2031, %v1229
      %2034 = vst.msk [vmem:[#allocation2 + $0x10] sm:$0xff] %vm2031, %v1230
      %2035 = vst.msk [vmem:[#allocation2 + $0x18] sm:$0xff] %vm2031, %v1231
      %v2036 = vld [vmem:[#allocation3] sm:$0xff]
      %v2037 = vld [vmem:[#allocation3 + $0x8] sm:$0xff]
      %v2038 = vld [vmem:[#allocation3 + $0x10] sm:$0xff]
      %v2039 = vld [vmem:[#allocation3 + $0x18] sm:$0xff]
      %v2040 = vmul.f32 %v1237, %v2036
      %v2041 = vmul.f32 %v1239, %v2037
      %v2042 = vmul.f32 %v1241, %v2038
      %v2043 = vmul.f32 %v1243, %v2039
      %v2044 = vsel %vm587, %v1269, 0.0
      %2045 = vadd.xlane.f32.xlu0 %v2044
      %v2046 = vpop.xlane.xlu0 %2045
      %v2047 = vsel %vm587, %v1271, 0.0
      %2048 = vadd.xlane.f32.xlu0 %v2047
      %v2049 = vpop.xlane.xlu0 %2048
      %v2050 = vsel %vm587, %v1273, 0.0
      %2051 = vadd.xlane.f32.xlu0 %v2050
      %v2052 = vpop.xlane.xlu0 %2051
      %v2053 = vsel %vm587, %v1275, 0.0
      %2054 = vadd.xlane.f32.xlu0 %v2053
      %v2055 = vpop.xlane.xlu0 %2054
      %v2056 = vadd.f32 %v2040, %v2046
      %v2057 = vadd.f32 %v2041, %v2049
      %v2058 = vadd.f32 %v2042, %v2052
      %v2059 = vadd.f32 %v2043, %v2055
      %2060 = vst.msk [vmem:[#allocation3] sm:$0xff] %vm2031, %v2056
      %2061 = vst.msk [vmem:[#allocation3 + $0x8] sm:$0xff] %vm2031, %v2057
      %2062 = vst.msk [vmem:[#allocation3 + $0x10] sm:$0xff] %vm2031, %v2058
      %2063 = vst.msk [vmem:[#allocation3 + $0x18] sm:$0xff] %vm2031, %v2059
      %v2064 = vld [vmem:[#allocation4] sm:$0xff]
      %v2065 = vld [vmem:[#allocation4 + $0x8] sm:$0xff]
      %v2066 = vld [vmem:[#allocation4 + $0x10] sm:$0xff]
      %v2067 = vld [vmem:[#allocation4 + $0x18] sm:$0xff]
      %2069 = vset.pattern.permute.xlu0 0
      %2070 = vperm.xlu0 %2069, %v1237
      %v2071 = vpop.permute.xlu0 %2070
      %2074 = vset.pattern.permute.xlu0 0
      %2075 = vperm.xlu0 %2074, %v1239
      %v2076 = vpop.permute.xlu0 %2075
      %2079 = vset.pattern.permute.xlu0 0
      %2080 = vperm.xlu0 %2079, %v1241
      %v2081 = vpop.permute.xlu0 %2080
      %2084 = vset.pattern.permute.xlu0 0
      %2085 = vperm.xlu0 %2084, %v1243
      %v2086 = vpop.permute.xlu0 %2085
      %v2088 = vmul.f32 %v2071, %v2064
      %v2089 = vmul.f32 %v2076, %v2065
      %v2090 = vmul.f32 %v2081, %v2066
      %v2091 = vmul.f32 %v2086, %v2067
      %v2092 = vadd.f32 %v2088, %v1322
      %v2093 = vadd.f32 %v2089, %v1368
      %v2094 = vadd.f32 %v2090, %v1414
      %v2095 = vadd.f32 %v2091, %v1460
      %v2096 = vadd.f32 %v2092, %v2027
      %v2097 = vadd.f32 %v2093, %v2028
      %v2098 = vadd.f32 %v2094, %v2029
      %v2099 = vadd.f32 %v2095, %v2030
      %2100 = vst.msk [vmem:[#allocation4] sm:$0xff] %vm587, %v2096
      %2101 = vst.msk [vmem:[#allocation4 + $0x8] sm:$0xff] %vm587, %v2097
      %2102 = vst.msk [vmem:[#allocation4 + $0x10] sm:$0xff] %vm587, %v2098
      %2103 = vst.msk [vmem:[#allocation4 + $0x18] sm:$0xff] %vm587, %v2099
      // Predicated region
      $region49: #{rat_mha_forward.8} parent=43 // pred_check
        %p2104 = pneg %p398
      $region50: #{rat_mha_forward.8} parent=43 // pred_check_branch
        %2106 = sbr.rel (%p2104) target = $region52
      $region51: #{rat_mha_forward.8} parent=43 // pred_region
        %v2107 = vld [vmem:[#allocation3] sm:$0xff]
        %v2108 = vld [vmem:[#allocation3 + $0x8] sm:$0xff]
        %v2109 = vld [vmem:[#allocation3 + $0x10] sm:$0xff]
        %v2110 = vld [vmem:[#allocation3 + $0x18] sm:$0xff]
        %v2111 = vrcp.pop %v2107
        %v2112 = vrcp.pop %v2108
        %v2113 = vrcp.pop %v2109
        %v2114 = vrcp.pop %v2110
        %v2115 = vld [vmem:[#allocation4] sm:$0xff]
        %v2116 = vld [vmem:[#allocation4 + $0x8] sm:$0xff]
        %v2117 = vld [vmem:[#allocation4 + $0x10] sm:$0xff]
        %v2118 = vld [vmem:[#allocation4 + $0x18] sm:$0xff]
        %2120 = vset.pattern.permute.xlu0 0
        %2121 = vperm.xlu0 %2120, %v2111
        %v2122 = vpop.permute.xlu0 %2121
        %2125 = vset.pattern.permute.xlu0 0
        %2126 = vperm.xlu0 %2125, %v2112
        %v2127 = vpop.permute.xlu0 %2126
        %2130 = vset.pattern.permute.xlu0 0
        %2131 = vperm.xlu0 %2130, %v2113
        %v2132 = vpop.permute.xlu0 %2131
        %2135 = vset.pattern.permute.xlu0 0
        %2136 = vperm.xlu0 %2135, %v2114
        %v2137 = vpop.permute.xlu0 %2136
        %v2139 = vmul.f32 %v2115, %v2122
        %v2140 = vmul.f32 %v2116, %v2127
        %v2141 = vmul.f32 %v2117, %v2132
        %v2142 = vmul.f32 %v2118, %v2137
        %2144 = vrot.lane.b32.xlu0 %v2140, 8
        %v2145 = vpop.permute.xlu0 %2144
        %2148 = vrot.lane.b32.xlu0 %v2141, 16
        %v2149 = vpop.permute.xlu0 %2148
        %2152 = vrot.lane.b32.xlu0 %v2142, 24
        %v2153 = vpop.permute.xlu0 %2152
        %v2155 = vsel %vm587, %v2139, %v2145
        %vm2156 = vcmask 130048
        %v2157 = vsel %vm2156, %v2155, %v2149
        %vm2158 = vcmask 195584
        %v2159 = vsel %vm2158, %v2157, %v2153
        %v2160 = vpack.c.bf16 %v2159, %v2159
        %vm2161 = vcmask 257024
        %2162 = vst.msk [vmem:[%s396] sm:$0xf] %vm2161, %v2160
      $region52: #{rat_mha_forward.8} parent=43 // pred_fallthru
        _
      %p2163 = scmp.lt.s32.totalorder %s22, 1
      %s2164 = scalar_select %p2163, %s22, 1
      %p2165 = scmp.lt.s32.totalorder %s23, 0
      %s2166 = scalar_select %p2165, %s23, 0
      %s2167 = sadd.s32 %s2166, %s2164
      %s2168 = smul.addr %s2167, 4
      %s2169 = scalar_lea.vmem %s6, %s2168
      // Predicated region
      $region53: #{rat_mha_forward.8} parent=43 // pred_check
        %p2170 = pneg %p212
      $region54: #{rat_mha_forward.8} parent=43 // pred_check_branch
        %2172 = sbr.rel (%p2170) target = $region56
      $region55: #{rat_mha_forward.8} parent=43 // pred_region
        _
      $region56: #{rat_mha_forward.8} parent=43 // pred_fallthru
        _
    $region44: #{rat_mha_forward.8} parent=5 // pred_fallthru
      _
    %p2173 = scmp.le.s32.totalorder 2, %s12
    // Predicated region
    $region57: #{rat_mha_forward.8} parent=5 // pred_check
      %p2174 = pneg %p2173
    $region58: #{rat_mha_forward.8} parent=5 // pred_check_branch
      %2176 = sbr.rel (%p2174) target = $region60
    $region59: #{rat_mha_forward.8} parent=5 // pred_region
      %s2177 = ssub.s32 %s12, 2
      // Predicated region
      $region61: #{rat_mha_forward.8} parent=59 // pred_check
        %p2178 = pneg %p218
      $region62: #{rat_mha_forward.8} parent=59 // pred_check_branch
        %2180 = sbr.rel (%p2178) target = $region64
      $region63: #{rat_mha_forward.8} parent=59 // pred_region
        %p2181 = scmp.lt.s32.totalorder %s25, 1
        %s2182 = scalar_select %p2181, %s25, 1
        %p2183 = scmp.lt.s32.totalorder %s26, 0
        %s2184 = scalar_select %p2183, %s26, 0
        %s2185 = sadd.s32 %s2184, %s2182
        %s2186 = smul.addr %s2185, 4
        %s2187 = scalar_lea.vmem %s6, %s2186
      $region64: #{rat_mha_forward.8} parent=59 // pred_fallthru
        _
    $region60: #{rat_mha_forward.8} parent=5 // pred_fallthru
      _
  $region6: #{rat_mha_forward.8} parent=0 // loop_footer
    %s16 = sadd.s32 1, %s12
  $region7: #{rat_mha_forward.8} parent=0 // loop_footer_branch
    %11 = sbr.rel target = $region3
  $region8: #{rat_mha_forward.8} parent=0 // loop_exit
    _

</llo_original>
